<compile_context>
chip_gen: v7x
topology: tpu7x:2x2x1
jax: 0.10.0
libtpu: 0.0.40
codegen_flags: <defaults>
</compile_context>

<pallas_src>
import functools

import jax
import jax.numpy as jnp
from jax import lax
from jax.experimental import pallas as pl
from jax.experimental.pallas import tpu as pltpu

KSIZE = 7        # SpatialGate kernel size (fixed by the module)
EPS = 1e-5       # BatchNorm eps


# ----------------------------- tiling helpers -----------------------------
def _pick_tile(n, pref, align):
    """Largest divisor of n that is a multiple of `align` and <= pref; else n."""
    if n <= align or n % align != 0:
        return n
    t = max(min(pref, n) // align * align, align)
    while t >= align:
        if n % t == 0:
            return t
        t -= align
    return n


def _lane_tile(hw, rows, target_bytes):
    """Last-dim (lane) tile so that rows*tile*4 bytes ~= target_bytes."""
    pref = target_bytes // (4 * max(rows, 1))
    pref = max(128, min(2048, (pref // 128) * 128))
    return _pick_tile(hw, pref, 128)


# ------------------------------- kernels ----------------------------------
def channel_gate_kernel(x_ref, w1_ref, b1_ref, w2_ref, b2_ref, cs_ref,
                        sum_sc, max_sc, *, inv_hw):
    """Streamed spatial avg/max pools + shared MLP -> channel scale.

    grid = (B, HW_tiles); HW axis is the reduction ('arbitrary').
    x_ref : (1, C, ts)  current HW tile of one batch sample
    cs_ref: (1, 1, C)   lane-dense channel scale for this batch sample
    """
    s = pl.program_id(1)
    ns = pl.num_programs(1)

    x = x_ref[...].astype(jnp.float32)            # (1, C, ts)
    tile_sum = jnp.sum(x, axis=2)                 # (1, C)
    tile_max = jnp.max(x, axis=2)                 # (1, C)

    @pl.when(s == 0)
    def _():
        sum_sc[...] = tile_sum
        max_sc[...] = tile_max

    @pl.when(s > 0)
    def _():
        sum_sc[...] = sum_sc[...] + tile_sum
        max_sc[...] = jnp.maximum(max_sc[...], tile_max)

    @pl.when(s == ns - 1)
    def _():
        avg_p = sum_sc[...] * inv_hw              # (1, C)
        max_p = max_sc[...]                       # (1, C)

        def mlp(p):                               # p: (1, C) -> (1, C), on the MXU
            h = jnp.dot(p, w1_ref[...],
                        precision=lax.Precision.HIGHEST,
                        preferred_element_type=jnp.float32) + b1_ref[...]
            h = jnp.maximum(h, 0.0)               # (1, Hd)
            return jnp.dot(h, w2_ref[...],
                           precision=lax.Precision.HIGHEST,
                           preferred_element_type=jnp.float32) + b2_ref[...]

        att = mlp(avg_p) + mlp(max_p)             # (1, C)
        cs_ref[...] = jax.nn.sigmoid(att)[None]   # (1, 1, C), full-lane store


def channel_pool_kernel(x_ref, cs_ref, mx_ref, mn_ref, *, inv_c):
    """ChannelPool of x * cscale over one HW tile (full C, full B per block)."""
    x = x_ref[...].astype(jnp.float32)            # (B, C, ts)
    x1 = x * cs_ref[...]                          # cs: (B, C, 1), lane broadcast
    mx_ref[...] = jnp.max(x1, axis=1)             # (B, ts)
    mn_ref[...] = jnp.sum(x1, axis=1) * inv_c     # (B, ts)


def spatial_gate_kernel(mx_ref, mn_ref, wsp_ref, gam_ref, bet_ref, ss_ref,
                        *, H, W, K):
    """7x7 'same' conv (2->1) + BN(1, training stats) + sigmoid on (B, HW)."""
    B, HW = mx_ref.shape
    cp_max = mx_ref[...]                          # (B, HW)
    cp_mean = mn_ref[...]                         # (B, HW)

    lane = lax.broadcasted_iota(jnp.int32, (1, HW), 1)
    h_idx = lane // W
    w_idx = lane % W
    R = K // 2

    # Precompute the 49 combined boundary masks once, as float32 (FMA later).
    masks = []
    for dy in range(-R, R + 1):
        row_ok = (h_idx + dy >= 0) & (h_idx + dy < H)
        for dx in range(-R, R + 1):
            col_ok = (w_idx + dx >= 0) & (w_idx + dx < W)
            masks.append((row_ok & col_ok).astype(jnp.float32))

    acc = jnp.zeros((B, HW), jnp.float32)
    t = 0
    for dy in range(-R, R + 1):
        for dx in range(-R, R + 1):
            ky, kx = dy + R, dx + R
            w_mx = wsp_ref[ky * K + kx]               # weight, max channel
            w_mn = wsp_ref[K * K + ky * K + kx]       # weight, mean channel
            tap = w_mx * cp_max + w_mn * cp_mean      # (B, HW)
            off = dy * W + dx
            if off != 0:
                # want tap'[p] = tap[(p + off) % HW]  (wrap is masked off below)
                tap = pltpu.roll(tap, shift=(-off) % HW, axis=1)
            acc = acc + masks[t] * tap
            t += 1

    # BatchNorm(1), training mode: batch stats over (B, HW), biased variance.
    # Two-pass statistics for numerical safety.
    n = float(B * HW)
    mu = jnp.sum(acc, keepdims=True) * (1.0 / n)      # (1, 1)
    d = acc - mu
    var = jnp.sum(d * d, keepdims=True) * (1.0 / n)   # (1, 1)
    qn = gam_ref[0] * d * lax.rsqrt(var + EPS) + bet_ref[0]
    ss_ref[...] = jax.nn.sigmoid(qn)                  # (B, HW)


def apply_kernel(x_ref, cs_ref, ss_ref, y_ref):
    """y = x * channel_scale * spatial_scale (tiled, pipelined, lane-dense)."""
    x = x_ref[...].astype(jnp.float32)            # (1, tc, ts)
    y = x * cs_ref[...] * ss_ref[...]             # (1,tc,1) and (1,1,ts) broadcasts
    y_ref[...] = y.astype(y_ref.dtype)


# ------------------------------- wrapper -----------------------------------
def cbam_forward(x, params):
    B, C, H, W = x.shape
    w1, b1, w2, b2, wsp, gamma, beta = params
    Hd = w1.shape[0]
    HW = H * W

    xf = x.reshape(B, C, HW)                 # lane-dense layout (HW on lanes)
    w1_t = jnp.transpose(w1)                 # (C, Hd)  == Linear1.weight.T
    b1_r = b1.reshape(1, Hd)
    w2_t = jnp.transpose(w2)                 # (Hd, C)  == Linear2.weight.T
    b2_r = b2.reshape(1, C)
    wsp_f = wsp.reshape(-1)                  # (2*K*K,)

    # ---- Stage 1: ChannelGate (streamed pools + MXU MLP) --------------------
    ts1 = _lane_tile(HW, C, 1 << 20)
    ns1 = HW // ts1
    cscale = pl.pallas_call(
        functools.partial(channel_gate_kernel, inv_hw=1.0 / HW),
        out_shape=jax.ShapeDtypeStruct((B, 1, C), jnp.float32),
        grid=(B, ns1),
        in_specs=[
            pl.BlockSpec((1, C, ts1), lambda b, s: (b, 0, s)),
            pl.BlockSpec((C, Hd), lambda b, s: (0, 0)),
            pl.BlockSpec((1, Hd), lambda b, s: (0, 0)),
            pl.BlockSpec((Hd, C), lambda b, s: (0, 0)),
            pl.BlockSpec((1, C), lambda b, s: (0, 0)),
        ],
        out_specs=pl.BlockSpec((1, 1, C), lambda b, s: (b, 0, 0)),
        scratch_shapes=[pltpu.VMEM((1, C), jnp.float32),    # running sum
                        pltpu.VMEM((1, C), jnp.float32)],   # running max
        compiler_params=pltpu.CompilerParams(
            dimension_semantics=("parallel", "arbitrary")),
    )(xf, w1_t, b1_r, w2_t, b2_r)

    # Free metadata reshape: (B,1,C) -> (B,C,1) sublane-per-channel consumer layout.
    cs3 = cscale.reshape(B, C, 1)

    # ---- Stage 2a: ChannelPool of x * cscale (streamed over HW tiles) -------
    ts2 = _lane_tile(HW, B * C, 2 << 20)
    ns2 = HW // ts2
    cp_max, cp_mean = pl.pallas_call(
        functools.partial(channel_pool_kernel, inv_c=1.0 / C),
        out_shape=(jax.ShapeDtypeStruct((B, HW), jnp.float32),
                   jax.ShapeDtypeStruct((B, HW), jnp.float32)),
        grid=(ns2,),
        in_specs=[
            pl.BlockSpec((B, C, ts2), lambda s: (0, 0, s)),
            pl.BlockSpec((B, C, 1), lambda s: (0, 0, 0)),
        ],
        out_specs=(pl.BlockSpec((B, ts2), lambda s: (0, s)),
                   pl.BlockSpec((B, ts2), lambda s: (0, s))),
        compiler_params=pltpu.CompilerParams(
            dimension_semantics=("parallel",)),
    )(xf, cs3)

    # ---- Stage 2b: 7x7 conv + BN(1) + sigmoid (small, ungridded) ------------
    vmem = pl.BlockSpec(memory_space=pltpu.MemorySpace.VMEM)
    smem = pl.BlockSpec(memory_space=pltpu.MemorySpace.SMEM)
    sscale = pl.pallas_call(
        functools.partial(spatial_gate_kernel, H=H, W=W, K=KSIZE),
        out_shape=jax.ShapeDtypeStruct((B, HW), jnp.float32),
        in_specs=[vmem, vmem, smem, smem, smem],
        out_specs=vmem,
    )(cp_max, cp_mean, wsp_f, gamma, beta)

    ss3 = sscale.reshape(B, 1, HW)

    # ---- Stage 3: y = x * cscale * sscale (tiled, double-buffered) ----------
    tc3 = _pick_tile(C, 256, 8)
    ts3 = _lane_tile(HW, tc3, 2 << 20)
    y = pl.pallas_call(
        apply_kernel,
        out_shape=jax.ShapeDtypeStruct((B, C, HW), x.dtype),
        grid=(B, C // tc3, HW // ts3),
        in_specs=[
            pl.BlockSpec((1, tc3, ts3), lambda b, c, s: (b, c, s)),
            pl.BlockSpec((1, tc3, 1), lambda b, c, s: (b, c, 0)),
            pl.BlockSpec((1, 1, ts3), lambda b, c, s: (b, 0, s)),
        ],
        out_specs=pl.BlockSpec((1, tc3, ts3), lambda b, c, s: (b, c, s)),
        compiler_params=pltpu.CompilerParams(
            dimension_semantics=("parallel", "parallel", "parallel")),
    )(xf, cs3, ss3)

    return y.reshape(B, C, H, W)


# ------------------------- pure-JAX reference -------------------------
def reference_forward(x, params):
    w1, b1, w2, b2, wsp, gamma, beta = params
    hp = lax.Precision.HIGHEST

    def mlp(p):                                    # p: (B, C)
        h = jnp.maximum(jnp.dot(p, w1.T, precision=hp) + b1, 0.0)
        return jnp.dot(h, w2.T, precision=hp) + b2

    avg_p = x.mean(axis=(2, 3))
    max_p = x.max(axis=(2, 3))
    cscale = jax.nn.sigmoid(mlp(avg_p) + mlp(max_p))[:, :, None, None]
    x1 = x * cscale

    cp = jnp.concatenate([x1.max(axis=1, keepdims=True),
                          x1.mean(axis=1, keepdims=True)], axis=1)
    q = lax.conv_general_dilated(cp, wsp, (1, 1), 'SAME',
                                 dimension_numbers=('NCHW', 'OIHW', 'NCHW'),
                                 precision=hp)
    mu = q.mean(axis=(0, 2, 3), keepdims=True)
    var = ((q - mu) ** 2).mean(axis=(0, 2, 3), keepdims=True)
    qn = (gamma.reshape(1, -1, 1, 1) * (q - mu) * lax.rsqrt(var + EPS)
          + beta.reshape(1, -1, 1, 1))
    return x1 * jax.nn.sigmoid(qn)


if __name__ == "__main__":
    key = jax.random.PRNGKey(0)
    kx, k1, k2, k3, k4, k5 = jax.random.split(key, 6)

    B, C, H, W = 2, 32, 64, 64
    RED = 4                      # reduction_ratio (hidden = C // RED = 8)
    HID = C // RED
    x = jax.random.normal(kx, (B, C, H, W), jnp.float32)

    # Deterministic parameter init (shapes from the module __init__)
    w1 = 0.3 * jax.random.normal(k1, (HID, C), jnp.float32)    # Linear(C -> C//r).weight
    b1 = 0.1 * jax.random.normal(k2, (HID,), jnp.float32)
    w2 = 0.3 * jax.random.normal(k3, (C, HID), jnp.float32)    # Linear(C//r -> C).weight
    b2 = 0.1 * jax.random.normal(k4, (C,), jnp.float32)
    wsp = 0.1 * jax.random.normal(k5, (1, 2, KSIZE, KSIZE), jnp.float32)  # 7x7 conv weight
    gamma = jnp.ones((1,), jnp.float32)      # BN(1) affine
    beta = jnp.zeros((1,), jnp.float32)
    params = (w1, b1, w2, b2, wsp, gamma, beta)

    y = jax.block_until_ready(cbam_forward(x, params))
    y_expected = jax.block_until_ready(reference_forward(x, params))

    err = float(jnp.max(jnp.abs(y - y_expected)))
    assert y.shape == x.shape and y.dtype == x.dtype
    assert err < 1e-3, f"mismatch vs reference: max abs err {err}"
    print("KERNEL_OK")
</pallas_src>

<mosaic_0001>
module attributes {stable_mosaic.version = 11 : i64} {
  func.func @channel_gate_kernel(%arg0: i32, %arg1: i32, %arg2: memref<1x32x2048xf32, #tpu.memory_space<vmem>>, %arg3: memref<32x8xf32, #tpu.memory_space<vmem>>, %arg4: memref<1x8xf32, #tpu.memory_space<vmem>>, %arg5: memref<8x32xf32, #tpu.memory_space<vmem>>, %arg6: memref<1x32xf32, #tpu.memory_space<vmem>>, %arg7: memref<1x1x32xf32, #tpu.memory_space<vmem>>, %arg8: memref<1x32xf32, #tpu.memory_space<vmem>>, %arg9: memref<1x32xf32, #tpu.memory_space<vmem>>) attributes {dimension_semantics = [#tpu.dimension_semantics<parallel>, #tpu.dimension_semantics<arbitrary>], iteration_bounds = array<i64: 2, 2>, scalar_prefetch = 0 : i64, scratch_operands = 2 : i64, tpu.core_type = #tpu.core_type<tc>, window_params = [{transform_indices = @transform_0, window_bounds = array<i64: 1, 32, 2048>}, {pipeline_mode = #tpu.pipeline_mode<synchronous>, transform_indices = @transform_1, window_bounds = array<i64: 32, 8>}, {pipeline_mode = #tpu.pipeline_mode<synchronous>, transform_indices = @transform_2, window_bounds = array<i64: 1, 8>}, {pipeline_mode = #tpu.pipeline_mode<synchronous>, transform_indices = @transform_3, window_bounds = array<i64: 8, 32>}, {pipeline_mode = #tpu.pipeline_mode<synchronous>, transform_indices = @transform_4, window_bounds = array<i64: 1, 32>}, {transform_indices = @transform_5, window_bounds = array<i64: 1, 1, 32>}]} {
    %c0 = arith.constant 0 : index
    %c0_0 = arith.constant 0 : index
    %c0_1 = arith.constant 0 : index
    %0 = vector.load %arg2[%c0, %c0_0, %c0_1] : memref<1x32x2048xf32, #tpu.memory_space<vmem>>, vector<1x32x2048xf32>
    %cst = arith.constant dense<0.000000e+00> : vector<1x32xf32>
    %1 = vector.multi_reduction <add>, %0, %cst [2] : vector<1x32x2048xf32> to vector<1x32xf32>
    %cst_2 = arith.constant dense<0xFF800000> : vector<1x32xf32>
    %2 = vector.multi_reduction <maximumf>, %0, %cst_2 [2] : vector<1x32x2048xf32> to vector<1x32xf32>
    %c0_i32 = arith.constant 0 : i32
    %3 = arith.cmpi eq, %arg1, %c0_i32 : i32
    %4 = arith.extui %3 : i1 to i32
    %c0_i32_3 = arith.constant 0 : i32
    %5 = arith.cmpi ne, %4, %c0_i32_3 : i32
    scf.if %5 {
      %c0_7 = arith.constant 0 : index
      %c0_8 = arith.constant 0 : index
      %12 = vector.load %arg8[%c0_7, %c0_8] : memref<1x32xf32, #tpu.memory_space<vmem>>, vector<1x32xf32>
      tpu.vector_store %arg8[%c0_7, %c0_8], %1 {strides = array<i32>} : memref<1x32xf32, #tpu.memory_space<vmem>>, vector<1x32xf32>,
      %c0_9 = arith.constant 0 : index
      %c0_10 = arith.constant 0 : index
      %13 = vector.load %arg9[%c0_9, %c0_10] : memref<1x32xf32, #tpu.memory_space<vmem>>, vector<1x32xf32>
      tpu.vector_store %arg9[%c0_9, %c0_10], %2 {strides = array<i32>} : memref<1x32xf32, #tpu.memory_space<vmem>>, vector<1x32xf32>,
    } else {
    }
    %c0_i32_4 = arith.constant 0 : i32
    %6 = arith.cmpi sgt, %arg1, %c0_i32_4 : i32
    %7 = arith.extui %6 : i1 to i32
    %c0_i32_5 = arith.constant 0 : i32
    %8 = arith.cmpi ne, %7, %c0_i32_5 : i32
    scf.if %8 {
      %c0_7 = arith.constant 0 : index
      %c0_8 = arith.constant 0 : index
      %12 = vector.load %arg8[%c0_7, %c0_8] : memref<1x32xf32, #tpu.memory_space<vmem>>, vector<1x32xf32>
      %13 = arith.addf %12, %1 : vector<1x32xf32>
      %c0_9 = arith.constant 0 : index
      %c0_10 = arith.constant 0 : index
      %14 = vector.load %arg8[%c0_9, %c0_10] : memref<1x32xf32, #tpu.memory_space<vmem>>, vector<1x32xf32>
      tpu.vector_store %arg8[%c0_9, %c0_10], %13 {strides = array<i32>} : memref<1x32xf32, #tpu.memory_space<vmem>>, vector<1x32xf32>,
      %c0_11 = arith.constant 0 : index
      %c0_12 = arith.constant 0 : index
      %15 = vector.load %arg9[%c0_11, %c0_12] : memref<1x32xf32, #tpu.memory_space<vmem>>, vector<1x32xf32>
      %16 = arith.maximumf %15, %2 : vector<1x32xf32>
      %c0_13 = arith.constant 0 : index
      %c0_14 = arith.constant 0 : index
      %17 = vector.load %arg9[%c0_13, %c0_14] : memref<1x32xf32, #tpu.memory_space<vmem>>, vector<1x32xf32>
      tpu.vector_store %arg9[%c0_13, %c0_14], %16 {strides = array<i32>} : memref<1x32xf32, #tpu.memory_space<vmem>>, vector<1x32xf32>,
    } else {
    }
    %c1_i32 = arith.constant 1 : i32
    %9 = arith.cmpi eq, %arg1, %c1_i32 : i32
    %10 = arith.extui %9 : i1 to i32
    %c0_i32_6 = arith.constant 0 : i32
    %11 = arith.cmpi ne, %10, %c0_i32_6 : i32
    scf.if %11 {
      %c0_7 = arith.constant 0 : index
      %c0_8 = arith.constant 0 : index
      %12 = vector.load %arg8[%c0_7, %c0_8] : memref<1x32xf32, #tpu.memory_space<vmem>>, vector<1x32xf32>
      %cst_9 = arith.constant 2.44140625E-4 : f32
      %13 = vector.broadcast %cst_9 : f32 to vector<1x32xf32>
      %14 = arith.mulf %12, %13 : vector<1x32xf32>
      %c0_10 = arith.constant 0 : index
      %c0_11 = arith.constant 0 : index
      %15 = vector.load %arg9[%c0_10, %c0_11] : memref<1x32xf32, #tpu.memory_space<vmem>>, vector<1x32xf32>
      %c0_12 = arith.constant 0 : index
      %c0_13 = arith.constant 0 : index
      %16 = vector.load %arg3[%c0_12, %c0_13] : memref<32x8xf32, #tpu.memory_space<vmem>>, vector<32x8xf32>
      %cst_14 = arith.constant dense<0.000000e+00> : vector<1x8xf32>
      %17 = tpu.matmul %14, %16, %cst_14 {dimension_numbers = #tpu.dot_dimension_numbers<[1], [0], [0], [1], [0, 0, 1, 1], [], []>, precision = #tpu.contract_precision<fp32>} : vector<1x32xf32>, vector<32x8xf32>, vector<1x8xf32> -> vector<1x8xf32>
      %c0_15 = arith.constant 0 : index
      %c0_16 = arith.constant 0 : index
      %18 = vector.load %arg4[%c0_15, %c0_16] : memref<1x8xf32, #tpu.memory_space<vmem>>, vector<1x8xf32>
      %19 = arith.addf %17, %18 : vector<1x8xf32>
      %cst_17 = arith.constant 0.000000e+00 : f32
      %20 = vector.broadcast %cst_17 : f32 to vector<1x8xf32>
      %21 = arith.maximumf %19, %20 : vector<1x8xf32>
      %c0_18 = arith.constant 0 : index
      %c0_19 = arith.constant 0 : index
      %22 = vector.load %arg5[%c0_18, %c0_19] : memref<8x32xf32, #tpu.memory_space<vmem>>, vector<8x32xf32>
      %cst_20 = arith.constant dense<0.000000e+00> : vector<1x32xf32>
      %23 = tpu.matmul %21, %22, %cst_20 {dimension_numbers = #tpu.dot_dimension_numbers<[1], [0], [0], [1], [0, 0, 1, 1], [], []>, precision = #tpu.contract_precision<fp32>} : vector<1x8xf32>, vector<8x32xf32>, vector<1x32xf32> -> vector<1x32xf32>
      %c0_21 = arith.constant 0 : index
      %c0_22 = arith.constant 0 : index
      %24 = vector.load %arg6[%c0_21, %c0_22] : memref<1x32xf32, #tpu.memory_space<vmem>>, vector<1x32xf32>
      %25 = arith.addf %23, %24 : vector<1x32xf32>
      %c0_23 = arith.constant 0 : index
      %c0_24 = arith.constant 0 : index
      %26 = vector.load %arg3[%c0_23, %c0_24] : memref<32x8xf32, #tpu.memory_space<vmem>>, vector<32x8xf32>
      %cst_25 = arith.constant dense<0.000000e+00> : vector<1x8xf32>
      %27 = tpu.matmul %15, %26, %cst_25 {dimension_numbers = #tpu.dot_dimension_numbers<[1], [0], [0], [1], [0, 0, 1, 1], [], []>, precision = #tpu.contract_precision<fp32>} : vector<1x32xf32>, vector<32x8xf32>, vector<1x8xf32> -> vector<1x8xf32>
      %c0_26 = arith.constant 0 : index
      %c0_27 = arith.constant 0 : index
      %28 = vector.load %arg4[%c0_26, %c0_27] : memref<1x8xf32, #tpu.memory_space<vmem>>, vector<1x8xf32>
      %29 = arith.addf %27, %28 : vector<1x8xf32>
      %cst_28 = arith.constant 0.000000e+00 : f32
      %30 = vector.broadcast %cst_28 : f32 to vector<1x8xf32>
      %31 = arith.maximumf %29, %30 : vector<1x8xf32>
      %c0_29 = arith.constant 0 : index
      %c0_30 = arith.constant 0 : index
      %32 = vector.load %arg5[%c0_29, %c0_30] : memref<8x32xf32, #tpu.memory_space<vmem>>, vector<8x32xf32>
      %cst_31 = arith.constant dense<0.000000e+00> : vector<1x32xf32>
      %33 = tpu.matmul %31, %32, %cst_31 {dimension_numbers = #tpu.dot_dimension_numbers<[1], [0], [0], [1], [0, 0, 1, 1], [], []>, precision = #tpu.contract_precision<fp32>} : vector<1x8xf32>, vector<8x32xf32>, vector<1x32xf32> -> vector<1x32xf32>
      %c0_32 = arith.constant 0 : index
      %c0_33 = arith.constant 0 : index
      %34 = vector.load %arg6[%c0_32, %c0_33] : memref<1x32xf32, #tpu.memory_space<vmem>>, vector<1x32xf32>
      %35 = arith.addf %33, %34 : vector<1x32xf32>
      %36 = arith.addf %25, %35 : vector<1x32xf32>
      %37 = arith.negf %36 : vector<1x32xf32>
      %38 = math.exp %37 : vector<1x32xf32>
      %cst_34 = arith.constant 1.000000e+00 : f32
      %39 = vector.broadcast %cst_34 : f32 to vector<1x32xf32>
      %40 = arith.addf %39, %38 : vector<1x32xf32>
      %41 = arith.divf %39, %40 : vector<1x32xf32>
      %42 = vector.shape_cast %41 : vector<1x32xf32> to vector<1x1x32xf32>
      %c0_35 = arith.constant 0 : index
      %c0_36 = arith.constant 0 : index
      %c0_37 = arith.constant 0 : index
      %43 = vector.load %arg7[%c0_35, %c0_36, %c0_37] : memref<1x1x32xf32, #tpu.memory_space<vmem>>, vector<1x1x32xf32>
      tpu.vector_store %arg7[%c0_35, %c0_36, %c0_37], %42 {strides = array<i32>} : memref<1x1x32xf32, #tpu.memory_space<vmem>>, vector<1x1x32xf32>,
    } else {
    }
    return
  }
  func.func @transform_0(%arg0: i32, %arg1: i32) -> (i32, i32, i32) {
    %c0_i32 = arith.constant 0 : i32
    %c0_i32_0 = arith.constant 0 : i32
    return %arg0, %c0_i32, %arg1 : i32, i32, i32
  }
  func.func @transform_1(%arg0: i32, %arg1: i32) -> (i32, i32) {
    %c0_i32 = arith.constant 0 : i32
    %c0_i32_0 = arith.constant 0 : i32
    %c0_i32_1 = arith.constant 0 : i32
    return %c0_i32, %c0_i32_0 : i32, i32
  }
  func.func @transform_2(%arg0: i32, %arg1: i32) -> (i32, i32) {
    %c0_i32 = arith.constant 0 : i32
    %c0_i32_0 = arith.constant 0 : i32
    %c0_i32_1 = arith.constant 0 : i32
    return %c0_i32, %c0_i32_0 : i32, i32
  }
  func.func @transform_3(%arg0: i32, %arg1: i32) -> (i32, i32) {
    %c0_i32 = arith.constant 0 : i32
    %c0_i32_0 = arith.constant 0 : i32
    %c0_i32_1 = arith.constant 0 : i32
    return %c0_i32, %c0_i32_0 : i32, i32
  }
  func.func @transform_4(%arg0: i32, %arg1: i32) -> (i32, i32) {
    %c0_i32 = arith.constant 0 : i32
    %c0_i32_0 = arith.constant 0 : i32
    %c0_i32_1 = arith.constant 0 : i32
    return %c0_i32, %c0_i32_0 : i32, i32
  }
  func.func @transform_5(%arg0: i32, %arg1: i32) -> (i32, i32, i32) {
    %c0_i32 = arith.constant 0 : i32
    %c0_i32_0 = arith.constant 0 : i32
    %c0_i32_1 = arith.constant 0 : i32
    return %arg0, %c0_i32, %c0_i32_0 : i32, i32, i32
  }
}

</mosaic_0001>

<llo_original>
// kernel: tpu_custom_call.1
$region0: #{tpu_custom_call.1}
  #allocation0 [shape = 'u32[]', space=smem, size = 0x4, offset = 0x4, fixed_abs, tag = 'smem constant byte address 0x4 - core index']
  #allocation1 [shape = 'u32[144,128]{1,0:T(1,128)}', space=vmem, size = 0x12000, scoped, tag = 'internal scratch']
  #allocation2 [shape = 'f32[1,32]{1,0:T(1,128)}', space=vmem, size = 0x200, scoped, tag = 'scratch operand']
  #allocation3 [shape = 'f32[1,32]{1,0:T(1,128)}', space=vmem, size = 0x200, scoped, tag = 'scratch operand']
  %s0 = inlined_call_operand.hbm [shape: f32[2,32,4096], index: 0, kind: input, shape index: {}]
  %s1 = inlined_call_operand.vmem [shape: f32[32,8], index: 1, kind: input, shape index: {}]
  %s2 = inlined_call_operand.vmem [shape: f32[1,8], index: 2, kind: input, shape index: {}]
  %s3 = inlined_call_operand.vmem [shape: f32[8,32], index: 3, kind: input, shape index: {}]
  %s4 = inlined_call_operand.vmem [shape: f32[1,32], index: 4, kind: input, shape index: {}]
  %s5 = inlined_call_operand.hbm [shape: f32[2,1,32], index: 5, kind: output, shape index: {}]
  %s6 = sld [smem:[#allocation0]]
  $region69: #{tpu_custom_call.1} parent=0
    _
  %s8 = ssub.s32 1, %s6
  %s9 = scalar_select 0, %s8, %s6
  $region1: #{tpu_custom_call.1} parent=0
    #allocation4 [shape = 'u8[524288]{0}', space=vmem, size = 0x80000, scoped, tag = 'input window, operand 0']
    #allocation5 [shape = 's32[2]{0}', space=sflag, size = 0x8, scoped, tag = 'scoped memory for tpu_custom_call.1']
    #allocation6 [shape = 's32[2]{0}', space=sflag, size = 0x8, scoped, tag = 'scoped memory for tpu_custom_call.1']
    #allocation7 [shape = 'u8[1024]{0}', space=vmem, size = 0x400, scoped, tag = 'output window, operand 0']
    %10 = vsyncpa [#allocation5], 0
    %s11 = scalar_lea.sflag [#allocation5], 1
    %12 = vsyncpa %s11, 0
    %13 = vsyncpa [#allocation6], 0
    %s14 = scalar_lea.sflag [#allocation6], 1
    %15 = vsyncpa %s14, 0
    loop: start=0, step=1, limit=6
    $region2: #{tpu_custom_call.1} parent=1 // loop_pre_header
      _
    $region3: #{tpu_custom_call.1} parent=1 // loop_header
      %s17 = sphi 0, %s21
      %p18 = scmp.ge.s32.totalorder %s17, 6
      %s24 = sphi 0, %s36
      %s25 = sphi 0, %s32
      %s26 = sphi 0, %s24
      %s27 = sphi 0, %s25
      %s28 = sphi 0, %s26
      %s29 = sphi 0, %s27
      %s41 = sphi 0, %s43
      %s44 = sphi 0, %s41
      %s45 = sphi 0, %s44
      %s61 = sphi 0, %s45
      %s65 = sphi 0, %s65
      %s67 = sphi 0, %s65
      %s68 = sphi 0, %s67
      %s82 = sphi 0, %s68
      %s86 = sphi 0, %s86
      %s88 = sphi 0, %s86
      %s89 = sphi 0, %s88
      %s103 = sphi 0, %s89
      %s107 = sphi 0, %s107
      %s109 = sphi 0, %s107
      %s110 = sphi 0, %s109
      %s124 = sphi 0, %s110
      %s128 = sphi 0, %s128
      %s130 = sphi 0, %s128
      %s131 = sphi 0, %s130
      %s145 = sphi 0, %s131
      %s151 = sphi 0, %s153
      %s154 = sphi 0, %s151
      %s155 = sphi 0, %s154
      %s171 = sphi 0, %s155
    $region4: #{tpu_custom_call.1} parent=1 // loop_header_branch
      %20 = sbr.rel (%p18) target = $region8
    $region5: #{tpu_custom_call.1} parent=1 // loop_body
      %s22 = ssub.s32 %s17, 1
      %s23 = ssub.s32 %s17, 2
      %s30 = sadd.s32 1, %s25
      %p31 = scmp.ge.s32.totalorder %s30, 2
      %s32 = scalar_select %p31, 0, %s30
      %s33 = sadd.s32 1, %s24
      %s34 = scalar_select %p31, %s33, %s24
      %p35 = scmp.ge.s32.totalorder %s34, 2
      %s36 = scalar_select %p35, 0, %s34
      %s37 = ssub.s32 %s24, %s36
      %s38 = ssub.s32 %s25, %s32
      %s39 = sor.u32 %s37, %s38
      %p40 = scmp.eq.s32.totalorder %s39, 0
      %s42 = sadd.s32 %s41, 1
      %s43 = scalar_select %p40, %s41, %s42
      %p46 = pneg %p40
      %p47 = scmp.eq.s32.totalorder %s17, 3
      %p48 = por %p46, %p47
      %p49 = scmp.ne.s32.totalorder %s41, %s44
      %p50 = scmp.eq.s32.totalorder %s17, 0
      %p51 = por %p49, %p50
      %p52 = scmp.ne.s32.totalorder %s41, %s44
      %p53 = scmp.eq.s32.totalorder %s22, 3
      %p54 = por %p52, %p53
      %p55 = scmp.ne.s32.totalorder %s44, %s45
      %p56 = scmp.eq.s32.totalorder %s22, 0
      %p57 = por %p55, %p56
      %p58 = scmp.ne.s32.totalorder %s44, %s45
      %p59 = scmp.eq.s32.totalorder %s23, 3
      %p60 = por %p58, %p59
      %p62 = scmp.ne.s32.totalorder %s45, %s61
      %p63 = scmp.eq.s32.totalorder %s23, 0
      %p64 = por %p62, %p63
      %s66 = sadd.s32 %s65, 1
      %p69 = scmp.eq.s32.totalorder %s17, 3
      %p70 = scmp.ne.s32.totalorder %s65, %s67
      %p71 = scmp.eq.s32.totalorder %s17, 0
      %p72 = por %p70, %p71
      %p73 = scmp.ne.s32.totalorder %s65, %s67
      %p74 = scmp.eq.s32.totalorder %s22, 3
      %p75 = por %p73, %p74
      %p76 = scmp.ne.s32.totalorder %s67, %s68
      %p77 = scmp.eq.s32.totalorder %s22, 0
      %p78 = por %p76, %p77
      %p79 = scmp.ne.s32.totalorder %s67, %s68
      %p80 = scmp.eq.s32.totalorder %s23, 3
      %p81 = por %p79, %p80
      %p83 = scmp.ne.s32.totalorder %s68, %s82
      %p84 = scmp.eq.s32.totalorder %s23, 0
      %p85 = por %p83, %p84
      %s87 = sadd.s32 %s86, 1
      %p90 = scmp.eq.s32.totalorder %s17, 3
      %p91 = scmp.ne.s32.totalorder %s86, %s88
      %p92 = scmp.eq.s32.totalorder %s17, 0
      %p93 = por %p91, %p92
      %p94 = scmp.ne.s32.totalorder %s86, %s88
      %p95 = scmp.eq.s32.totalorder %s22, 3
      %p96 = por %p94, %p95
      %p97 = scmp.ne.s32.totalorder %s88, %s89
      %p98 = scmp.eq.s32.totalorder %s22, 0
      %p99 = por %p97, %p98
      %p100 = scmp.ne.s32.totalorder %s88, %s89
      %p101 = scmp.eq.s32.totalorder %s23, 3
      %p102 = por %p100, %p101
      %p104 = scmp.ne.s32.totalorder %s89, %s103
      %p105 = scmp.eq.s32.totalorder %s23, 0
      %p106 = por %p104, %p105
      %s108 = sadd.s32 %s107, 1
      %p111 = scmp.eq.s32.totalorder %s17, 3
      %p112 = scmp.ne.s32.totalorder %s107, %s109
      %p113 = scmp.eq.s32.totalorder %s17, 0
      %p114 = por %p112, %p113
      %p115 = scmp.ne.s32.totalorder %s107, %s109
      %p116 = scmp.eq.s32.totalorder %s22, 3
      %p117 = por %p115, %p116
      %p118 = scmp.ne.s32.totalorder %s109, %s110
      %p119 = scmp.eq.s32.totalorder %s22, 0
      %p120 = por %p118, %p119
      %p121 = scmp.ne.s32.totalorder %s109, %s110
      %p122 = scmp.eq.s32.totalorder %s23, 3
      %p123 = por %p121, %p122
      %p125 = scmp.ne.s32.totalorder %s110, %s124
      %p126 = scmp.eq.s32.totalorder %s23, 0
      %p127 = por %p125, %p126
      %s129 = sadd.s32 %s128, 1
      %p132 = scmp.eq.s32.totalorder %s17, 3
      %p133 = scmp.ne.s32.totalorder %s128, %s130
      %p134 = scmp.eq.s32.totalorder %s17, 0
      %p135 = por %p133, %p134
      %p136 = scmp.ne.s32.totalorder %s128, %s130
      %p137 = scmp.eq.s32.totalorder %s22, 3
      %p138 = por %p136, %p137
      %p139 = scmp.ne.s32.totalorder %s130, %s131
      %p140 = scmp.eq.s32.totalorder %s22, 0
      %p141 = por %p139, %p140
      %p142 = scmp.ne.s32.totalorder %s130, %s131
      %p143 = scmp.eq.s32.totalorder %s23, 3
      %p144 = por %p142, %p143
      %p146 = scmp.ne.s32.totalorder %s131, %s145
      %p147 = scmp.eq.s32.totalorder %s23, 0
      %p148 = por %p146, %p147
      %s149 = ssub.s32 %s24, %s36
      %p150 = scmp.eq.s32.totalorder %s149, 0
      %s152 = sadd.s32 %s151, 1
      %s153 = scalar_select %p150, %s151, %s152
      %p156 = pneg %p150
      %p157 = scmp.eq.s32.totalorder %s17, 3
      %p158 = por %p156, %p157
      %p159 = scmp.ne.s32.totalorder %s151, %s154
      %p160 = scmp.eq.s32.totalorder %s17, 0
      %p161 = por %p159, %p160
      %p162 = scmp.ne.s32.totalorder %s151, %s154
      %p163 = scmp.eq.s32.totalorder %s22, 3
      %p164 = por %p162, %p163
      %p165 = scmp.ne.s32.totalorder %s154, %s155
      %p166 = scmp.eq.s32.totalorder %s22, 0
      %p167 = por %p165, %p166
      %p168 = scmp.ne.s32.totalorder %s154, %s155
      %p169 = scmp.eq.s32.totalorder %s23, 3
      %p170 = por %p168, %p169
      %p172 = scmp.ne.s32.totalorder %s155, %s171
      %p173 = scmp.eq.s32.totalorder %s23, 0
      %p174 = por %p172, %p173
      %p175 = scmp.le.s32.totalorder 1, %s17
      %p176 = scmp.lt.s32.totalorder %s17, 5
      %p177 = pnand %p175, %p176
      %p178 = pneg %p177
      // Predicated region
      $region9: #{tpu_custom_call.1} parent=5 // pred_check
        _
      $region10: #{tpu_custom_call.1} parent=5 // pred_check_branch
        %180 = sbr.rel (%p177) target = $region12
      $region11: #{tpu_custom_call.1} parent=5 // pred_region
        %s181 = ssub.s32 %s17, 1
        // Predicated region
        $region13: #{tpu_custom_call.1} parent=11 // pred_check
          %p182 = pneg %p78
        $region14: #{tpu_custom_call.1} parent=11 // pred_check_branch
          %184 = sbr.rel (%p182) target = $region16
        $region15: #{tpu_custom_call.1} parent=11 // pred_region
          _
        $region16: #{tpu_custom_call.1} parent=11 // pred_fallthru
          _
        // Predicated region
        $region17: #{tpu_custom_call.1} parent=11 // pred_check
          %p185 = pneg %p99
        $region18: #{tpu_custom_call.1} parent=11 // pred_check_branch
          %187 = sbr.rel (%p185) target = $region20
        $region19: #{tpu_custom_call.1} parent=11 // pred_region
          _
        $region20: #{tpu_custom_call.1} parent=11 // pred_fallthru
          _
        // Predicated region
        $region21: #{tpu_custom_call.1} parent=11 // pred_check
          %p188 = pneg %p120
        $region22: #{tpu_custom_call.1} parent=11 // pred_check_branch
          %190 = sbr.rel (%p188) target = $region24
        $region23: #{tpu_custom_call.1} parent=11 // pred_region
          _
        $region24: #{tpu_custom_call.1} parent=11 // pred_fallthru
          _
        // Predicated region
        $region25: #{tpu_custom_call.1} parent=11 // pred_check
          %p191 = pneg %p141
        $region26: #{tpu_custom_call.1} parent=11 // pred_check_branch
          %193 = sbr.rel (%p191) target = $region28
        $region27: #{tpu_custom_call.1} parent=11 // pred_region
          _
        $region28: #{tpu_custom_call.1} parent=11 // pred_fallthru
          _
      $region12: #{tpu_custom_call.1} parent=5 // pred_fallthru
        _
      %p194 = scmp.lt.s32.totalorder %s17, 4
      // Predicated region
      $region29: #{tpu_custom_call.1} parent=5 // pred_check
        %p195 = pneg %p194
      $region30: #{tpu_custom_call.1} parent=5 // pred_check_branch
        %197 = sbr.rel (%p195) target = $region32
      $region31: #{tpu_custom_call.1} parent=5 // pred_region
        // Predicated region
        $region33: #{tpu_custom_call.1} parent=31 // pred_check
          %p198 = pneg %p51
        $region34: #{tpu_custom_call.1} parent=31 // pred_check_branch
          %200 = sbr.rel (%p198) target = $region36
        $region35: #{tpu_custom_call.1} parent=31 // pred_region
          %s201 = sand.u32 %s41, 1
          %s202 = scalar_lea.sflag [#allocation5], %s201
          %s203 = sand.u32 %s41, 1
          %s204 = smul.addr %s203, 512
          %s205 = scalar_lea.vmem [#allocation4], %s204
          %s206 = smul.u32 16, %s25
          %s208 = ssub.s32 8192, 8192
          %209 = vsyncadd %s202, %s208
          %s210 = smul.addr %s24, 128
          %s211 = sadd.s32 %s206, %s210
          %s212 = smul.addr %s211, 128
          %s213 = scalar_lea.hbm %s0, %s212
          %s214 = sshll.u32 %s205, 4
          %s215 = int_to_ptr.vmem [resolvable:$true] %s214
          %220 = dma.hbm_to_vmem [thread:$0]  %s213, 8192, %s215, %s202, 4096, 2048, 128
        $region36: #{tpu_custom_call.1} parent=31 // pred_fallthru
          _
      $region32: #{tpu_custom_call.1} parent=5 // pred_fallthru
        _
      %p221 = scmp.le.s32.totalorder 1, %s17
      %p222 = scmp.lt.s32.totalorder %s17, 5
      %p223 = pnand %p221, %p222
      %p224 = pneg %p223
      // Predicated region
      $region37: #{tpu_custom_call.1} parent=5 // pred_check
        _
      $region38: #{tpu_custom_call.1} parent=5 // pred_check_branch
        %226 = sbr.rel (%p223) target = $region40
      $region39: #{tpu_custom_call.1} parent=5 // pred_region
        %s227 = ssub.s32 %s17, 1
        %s228 = sand.u32 %s44, 1
        %s229 = scalar_lea.sflag [#allocation5], %s228
        %s230 = sand.u32 %s44, 1
        %s231 = smul.addr %s230, 512
        %s232 = scalar_lea.vmem [#allocation4], %s231
        // Predicated region
        $region41: #{tpu_custom_call.1} parent=39 // pred_check
          %p233 = pneg %p57
        $region42: #{tpu_custom_call.1} parent=39 // pred_check_branch
          %235 = sbr.rel (%p233) target = $region44
        $region43: #{tpu_custom_call.1} parent=39 // pred_region
          %236 = dma.done %s229, 8192
        $region44: #{tpu_custom_call.1} parent=39 // pred_fallthru
          _
        %s237 = sand.u32 %s44, 1
        %s238 = scalar_lea.sflag [#allocation5], %s237
        %s239 = sand.u32 %s44, 1
        %s240 = smul.addr %s239, 512
        %s241 = scalar_lea.vmem [#allocation4], %s240
        %p242 = pneg %p57
        %p243 = pneg %p54
        %p244 = pneg %p78
        %p245 = pneg %p75
        %p246 = pneg %p99
        %p247 = pneg %p96
        %p248 = pneg %p120
        %p249 = pneg %p117
        %p250 = pneg %p141
        %p251 = pneg %p138
        %p252 = pneg %p167
        %p253 = pneg %p164
        %s254 = sand.u32 %s154, 1
        %s255 = scalar_lea.sflag [#allocation6], %s254
        %s256 = sand.u32 %s154, 1
        %s257 = scalar_lea.vmem [#allocation7], %s256
        %s258 = smul.u32 16, %s27
        %v259 = vld [vmem:[%s232] sm:$0xff]
        %v260 = vld [vmem:[%s232 + $0x8] sm:$0xff]
        %v261 = vld [vmem:[%s232 + $0x10] sm:$0xff]
        %v262 = vld [vmem:[%s232 + $0x18] sm:$0xff]
        %v263 = vld [vmem:[%s232 + $0x20] sm:$0xff]
        %v264 = vld [vmem:[%s232 + $0x28] sm:$0xff]
        %v265 = vld [vmem:[%s232 + $0x30] sm:$0xff]
        %v266 = vld [vmem:[%s232 + $0x38] sm:$0xff]
        %v267 = vld [vmem:[%s232 + $0x40] sm:$0xff]
        %v268 = vld [vmem:[%s232 + $0x48] sm:$0xff]
        %v269 = vld [vmem:[%s232 + $0x50] sm:$0xff]
        %v270 = vld [vmem:[%s232 + $0x58] sm:$0xff]
        %v271 = vld [vmem:[%s232 + $0x60] sm:$0xff]
        %v272 = vld [vmem:[%s232 + $0x68] sm:$0xff]
        %v273 = vld [vmem:[%s232 + $0x70] sm:$0xff]
        %v274 = vld [vmem:[%s232 + $0x78] sm:$0xff]
        %v275 = vld [vmem:[%s232 + $0x80] sm:$0xff]
        %v276 = vld [vmem:[%s232 + $0x88] sm:$0xff]
        %v277 = vld [vmem:[%s232 + $0x90] sm:$0xff]
        %v278 = vld [vmem:[%s232 + $0x98] sm:$0xff]
        %v279 = vld [vmem:[%s232 + $0xa0] sm:$0xff]
        %v280 = vld [vmem:[%s232 + $0xa8] sm:$0xff]
        %v281 = vld [vmem:[%s232 + $0xb0] sm:$0xff]
        %v282 = vld [vmem:[%s232 + $0xb8] sm:$0xff]
        %v283 = vld [vmem:[%s232 + $0xc0] sm:$0xff]
        %v284 = vld [vmem:[%s232 + $0xc8] sm:$0xff]
        %v285 = vld [vmem:[%s232 + $0xd0] sm:$0xff]
        %v286 = vld [vmem:[%s232 + $0xd8] sm:$0xff]
        %v287 = vld [vmem:[%s232 + $0xe0] sm:$0xff]
        %v288 = vld [vmem:[%s232 + $0xe8] sm:$0xff]
        %v289 = vld [vmem:[%s232 + $0xf0] sm:$0xff]
        %v290 = vld [vmem:[%s232 + $0xf8] sm:$0xff]
        %v291 = vld [vmem:[%s232 + $0x100] sm:$0xff]
        %v292 = vld [vmem:[%s232 + $0x108] sm:$0xff]
        %v293 = vld [vmem:[%s232 + $0x110] sm:$0xff]
        %v294 = vld [vmem:[%s232 + $0x118] sm:$0xff]
        %v295 = vld [vmem:[%s232 + $0x120] sm:$0xff]
        %v296 = vld [vmem:[%s232 + $0x128] sm:$0xff]
        %v297 = vld [vmem:[%s232 + $0x130] sm:$0xff]
        %v298 = vld [vmem:[%s232 + $0x138] sm:$0xff]
        %v299 = vld [vmem:[%s232 + $0x140] sm:$0xff]
        %v300 = vld [vmem:[%s232 + $0x148] sm:$0xff]
        %v301 = vld [vmem:[%s232 + $0x150] sm:$0xff]
        %v302 = vld [vmem:[%s232 + $0x158] sm:$0xff]
        %v303 = vld [vmem:[%s232 + $0x160] sm:$0xff]
        %v304 = vld [vmem:[%s232 + $0x168] sm:$0xff]
        %v305 = vld [vmem:[%s232 + $0x170] sm:$0xff]
        %v306 = vld [vmem:[%s232 + $0x178] sm:$0xff]
        %v307 = vld [vmem:[%s232 + $0x180] sm:$0xff]
        %v308 = vld [vmem:[%s232 + $0x188] sm:$0xff]
        %v309 = vld [vmem:[%s232 + $0x190] sm:$0xff]
        %v310 = vld [vmem:[%s232 + $0x198] sm:$0xff]
        %v311 = vld [vmem:[%s232 + $0x1a0] sm:$0xff]
        %v312 = vld [vmem:[%s232 + $0x1a8] sm:$0xff]
        %v313 = vld [vmem:[%s232 + $0x1b0] sm:$0xff]
        %v314 = vld [vmem:[%s232 + $0x1b8] sm:$0xff]
        %v315 = vld [vmem:[%s232 + $0x1c0] sm:$0xff]
        %v316 = vld [vmem:[%s232 + $0x1c8] sm:$0xff]
        %v317 = vld [vmem:[%s232 + $0x1d0] sm:$0xff]
        %v318 = vld [vmem:[%s232 + $0x1d8] sm:$0xff]
        %v319 = vld [vmem:[%s232 + $0x1e0] sm:$0xff]
        %v320 = vld [vmem:[%s232 + $0x1e8] sm:$0xff]
        %v321 = vld [vmem:[%s232 + $0x1f0] sm:$0xff]
        %v322 = vld [vmem:[%s232 + $0x1f8] sm:$0xff]
        %v323 = vadd.f32 %v259, %v260
        %v324 = vadd.f32 %v323, %v261
        %v325 = vadd.f32 %v324, %v262
        %v326 = vadd.f32 %v325, %v263
        %v327 = vadd.f32 %v326, %v264
        %v328 = vadd.f32 %v327, %v265
        %v329 = vadd.f32 %v328, %v266
        %v330 = vadd.f32 %v329, %v267
        %v331 = vadd.f32 %v330, %v268
        %v332 = vadd.f32 %v331, %v269
        %v333 = vadd.f32 %v332, %v270
        %v334 = vadd.f32 %v333, %v271
        %v335 = vadd.f32 %v334, %v272
        %v336 = vadd.f32 %v335, %v273
        %v337 = vadd.f32 %v336, %v274
        %338 = vadd.xlane.f32.xlu0 %v337
        %v339 = vpop.xlane.xlu0 %338
        %v340 = vadd.f32 %v275, %v276
        %v341 = vadd.f32 %v340, %v277
        %v342 = vadd.f32 %v341, %v278
        %v343 = vadd.f32 %v342, %v279
        %v344 = vadd.f32 %v343, %v280
        %v345 = vadd.f32 %v344, %v281
        %v346 = vadd.f32 %v345, %v282
        %v347 = vadd.f32 %v346, %v283
        %v348 = vadd.f32 %v347, %v284
        %v349 = vadd.f32 %v348, %v285
        %v350 = vadd.f32 %v349, %v286
        %v351 = vadd.f32 %v350, %v287
        %v352 = vadd.f32 %v351, %v288
        %v353 = vadd.f32 %v352, %v289
        %v354 = vadd.f32 %v353, %v290
        %355 = vadd.xlane.f32.xlu0 %v354
        %v356 = vpop.xlane.xlu0 %355
        %v357 = vadd.f32 %v291, %v292
        %v358 = vadd.f32 %v357, %v293
        %v359 = vadd.f32 %v358, %v294
        %v360 = vadd.f32 %v359, %v295
        %v361 = vadd.f32 %v360, %v296
        %v362 = vadd.f32 %v361, %v297
        %v363 = vadd.f32 %v362, %v298
        %v364 = vadd.f32 %v363, %v299
        %v365 = vadd.f32 %v364, %v300
        %v366 = vadd.f32 %v365, %v301
        %v367 = vadd.f32 %v366, %v302
        %v368 = vadd.f32 %v367, %v303
        %v369 = vadd.f32 %v368, %v304
        %v370 = vadd.f32 %v369, %v305
        %v371 = vadd.f32 %v370, %v306
        %372 = vadd.xlane.f32.xlu0 %v371
        %v373 = vpop.xlane.xlu0 %372
        %v374 = vadd.f32 %v307, %v308
        %v375 = vadd.f32 %v374, %v309
        %v376 = vadd.f32 %v375, %v310
        %v377 = vadd.f32 %v376, %v311
        %v378 = vadd.f32 %v377, %v312
        %v379 = vadd.f32 %v378, %v313
        %v380 = vadd.f32 %v379, %v314
        %v381 = vadd.f32 %v380, %v315
        %v382 = vadd.f32 %v381, %v316
        %v383 = vadd.f32 %v382, %v317
        %v384 = vadd.f32 %v383, %v318
        %v385 = vadd.f32 %v384, %v319
        %v386 = vadd.f32 %v385, %v320
        %v387 = vadd.f32 %v386, %v321
        %v388 = vadd.f32 %v387, %v322
        %389 = vadd.xlane.f32.xlu0 %v388
        %v390 = vpop.xlane.xlu0 %389
        %v391 = vmax.f32 %v259, %v260
        %v392 = vmax.f32 %v391, %v261
        %v393 = vmax.f32 %v392, %v262
        %v394 = vmax.f32 %v393, %v263
        %v395 = vmax.f32 %v394, %v264
        %v396 = vmax.f32 %v395, %v265
        %v397 = vmax.f32 %v396, %v266
        %v398 = vmax.f32 %v397, %v267
        %v399 = vmax.f32 %v398, %v268
        %v400 = vmax.f32 %v399, %v269
        %v401 = vmax.f32 %v400, %v270
        %v402 = vmax.f32 %v401, %v271
        %v403 = vmax.f32 %v402, %v272
        %v404 = vmax.f32 %v403, %v273
        %v405 = vmax.f32 %v404, %v274
        %406 = vmax.xlane.f32.xlu0 %v405
        %v407 = vpop.xlane.xlu0 %406
        %v408 = vmax.f32 %v275, %v276
        %v409 = vmax.f32 %v408, %v277
        %v410 = vmax.f32 %v409, %v278
        %v411 = vmax.f32 %v410, %v279
        %v412 = vmax.f32 %v411, %v280
        %v413 = vmax.f32 %v412, %v281
        %v414 = vmax.f32 %v413, %v282
        %v415 = vmax.f32 %v414, %v283
        %v416 = vmax.f32 %v415, %v284
        %v417 = vmax.f32 %v416, %v285
        %v418 = vmax.f32 %v417, %v286
        %v419 = vmax.f32 %v418, %v287
        %v420 = vmax.f32 %v419, %v288
        %v421 = vmax.f32 %v420, %v289
        %v422 = vmax.f32 %v421, %v290
        %423 = vmax.xlane.f32.xlu0 %v422
        %v424 = vpop.xlane.xlu0 %423
        %v425 = vmax.f32 %v291, %v292
        %v426 = vmax.f32 %v425, %v293
        %v427 = vmax.f32 %v426, %v294
        %v428 = vmax.f32 %v427, %v295
        %v429 = vmax.f32 %v428, %v296
        %v430 = vmax.f32 %v429, %v297
        %v431 = vmax.f32 %v430, %v298
        %v432 = vmax.f32 %v431, %v299
        %v433 = vmax.f32 %v432, %v300
        %v434 = vmax.f32 %v433, %v301
        %v435 = vmax.f32 %v434, %v302
        %v436 = vmax.f32 %v435, %v303
        %v437 = vmax.f32 %v436, %v304
        %v438 = vmax.f32 %v437, %v305
        %v439 = vmax.f32 %v438, %v306
        %440 = vmax.xlane.f32.xlu0 %v439
        %v441 = vpop.xlane.xlu0 %440
        %v442 = vmax.f32 %v307, %v308
        %v443 = vmax.f32 %v442, %v309
        %v444 = vmax.f32 %v443, %v310
        %v445 = vmax.f32 %v444, %v311
        %v446 = vmax.f32 %v445, %v312
        %v447 = vmax.f32 %v446, %v313
        %v448 = vmax.f32 %v447, %v314
        %v449 = vmax.f32 %v448, %v315
        %v450 = vmax.f32 %v449, %v316
        %v451 = vmax.f32 %v450, %v317
        %v452 = vmax.f32 %v451, %v318
        %v453 = vmax.f32 %v452, %v319
        %v454 = vmax.f32 %v453, %v320
        %v455 = vmax.f32 %v454, %v321
        %v456 = vmax.f32 %v455, %v322
        %457 = vmax.xlane.f32.xlu0 %v456
        %v458 = vpop.xlane.xlu0 %457
        %p459 = scmp.eq.s32.totalorder %s27, 0
        // Predicated region
        $region45: #{tpu_custom_call.1} parent=39 // pred_check
          %p460 = pneg %p459
        $region46: #{tpu_custom_call.1} parent=39 // pred_check_branch
          %462 = sbr.rel (%p460) target = $region48
        $region47: #{tpu_custom_call.1} parent=39 // pred_region
          %v467 = vlaneseq
          %v468 = vand.u32 %v467, 127
          %v469 = vlaneseq
          %v470 = vshrl.u32 %v469, 7
          %v471 = vsub.s32 %v468, %v470
          %v472 = vrot.slane %v339, %v471
          %v473 = vadd.s32 %v468, 4294967288
          %v474 = vlaneseq
          %v475 = vshrl.u32 %v474, 7
          %v476 = vsub.s32 %v473, %v475
          %v477 = vrot.slane %v356, %v476
          %vm478 = vcmask 130112
          %v479 = vsel %vm478, %v477, %v472
          %v480 = vadd.s32 %v468, 4294967280
          %v481 = vlaneseq
          %v482 = vshrl.u32 %v481, 7
          %v483 = vsub.s32 %v480, %v482
          %v484 = vrot.slane %v373, %v483
          %vm485 = vcmask 195712
          %v486 = vsel %vm485, %v484, %v479
          %v487 = vadd.s32 %v468, 4294967272
          %v488 = vlaneseq
          %v489 = vshrl.u32 %v488, 7
          %v490 = vsub.s32 %v487, %v489
          %v491 = vrot.slane %v390, %v490
          %vm492 = vcmask 261312
          %v493 = vsel %vm492, %v491, %v486
          %vm495 = vcmask 253952
          %496 = vst.msk [vmem:[#allocation2] sm:$0x1] %vm495, %v493
          %v501 = vlaneseq
          %v502 = vshrl.u32 %v501, 7
          %v503 = vsub.s32 %v468, %v502
          %v504 = vrot.slane %v407, %v503
          %v505 = vlaneseq
          %v506 = vshrl.u32 %v505, 7
          %v507 = vsub.s32 %v473, %v506
          %v508 = vrot.slane %v424, %v507
          %v509 = vsel %vm478, %v508, %v504
          %v510 = vlaneseq
          %v511 = vshrl.u32 %v510, 7
          %v512 = vsub.s32 %v480, %v511
          %v513 = vrot.slane %v441, %v512
          %v514 = vsel %vm485, %v513, %v509
          %v515 = vlaneseq
          %v516 = vshrl.u32 %v515, 7
          %v517 = vsub.s32 %v487, %v516
          %v518 = vrot.slane %v458, %v517
          %v519 = vsel %vm492, %v518, %v514
          %521 = vst.msk [vmem:[#allocation3] sm:$0x1] %vm495, %v519
        $region48: #{tpu_custom_call.1} parent=39 // pred_fallthru
          _
        %p522 = scmp.gt.s32.totalorder %s27, 0
        // Predicated region
        $region49: #{tpu_custom_call.1} parent=39 // pred_check
          %p523 = pneg %p522
        $region50: #{tpu_custom_call.1} parent=39 // pred_check_branch
          %525 = sbr.rel (%p523) target = $region52
        $region51: #{tpu_custom_call.1} parent=39 // pred_region
          %v526 = vld [vmem:[#allocation2] sm:$0x1]
          %v531 = vlaneseq
          %v532 = vshrl.u32 %v531, 7
          %v533 = vsub.s32 0, %v532
          %v534 = vrot.slane %v339, %v533
          %v535 = vlaneseq
          %v536 = vshrl.u32 %v535, 7
          %v537 = vsub.s32 1, %v536
          %v538 = vrot.slane %v339, %v537
          %v539 = vlaneseq
          %v540 = vshrl.u32 %v539, 7
          %v541 = vsub.s32 2, %v540
          %v542 = vrot.slane %v339, %v541
          %v543 = vlaneseq
          %v544 = vshrl.u32 %v543, 7
          %v545 = vsub.s32 3, %v544
          %v546 = vrot.slane %v339, %v545
          %v547 = vlaneseq
          %v548 = vshrl.u32 %v547, 7
          %v549 = vsub.s32 4, %v548
          %v550 = vrot.slane %v339, %v549
          %v551 = vlaneseq
          %v552 = vshrl.u32 %v551, 7
          %v553 = vsub.s32 5, %v552
          %v554 = vrot.slane %v339, %v553
          %v555 = vlaneseq
          %v556 = vshrl.u32 %v555, 7
          %v557 = vsub.s32 6, %v556
          %v558 = vrot.slane %v339, %v557
          %v559 = vlaneseq
          %v560 = vshrl.u32 %v559, 7
          %v561 = vsub.s32 7, %v560
          %v562 = vrot.slane %v339, %v561
          %v563 = vlaneseq
          %v564 = vshrl.u32 %v563, 7
          %v565 = vsub.s32 0, %v564
          %v566 = vrot.slane %v356, %v565
          %v567 = vlaneseq
          %v568 = vshrl.u32 %v567, 7
          %v569 = vsub.s32 1, %v568
          %v570 = vrot.slane %v356, %v569
          %v571 = vlaneseq
          %v572 = vshrl.u32 %v571, 7
          %v573 = vsub.s32 2, %v572
          %v574 = vrot.slane %v356, %v573
          %v575 = vlaneseq
          %v576 = vshrl.u32 %v575, 7
          %v577 = vsub.s32 3, %v576
          %v578 = vrot.slane %v356, %v577
          %v579 = vlaneseq
          %v580 = vshrl.u32 %v579, 7
          %v581 = vsub.s32 4, %v580
          %v582 = vrot.slane %v356, %v581
          %v583 = vlaneseq
          %v584 = vshrl.u32 %v583, 7
          %v585 = vsub.s32 5, %v584
          %v586 = vrot.slane %v356, %v585
          %v587 = vlaneseq
          %v588 = vshrl.u32 %v587, 7
          %v589 = vsub.s32 6, %v588
          %v590 = vrot.slane %v356, %v589
          %v591 = vlaneseq
          %v592 = vshrl.u32 %v591, 7
          %v593 = vsub.s32 7, %v592
          %v594 = vrot.slane %v356, %v593
          %v595 = vlaneseq
          %v596 = vshrl.u32 %v595, 7
          %v597 = vsub.s32 0, %v596
          %v598 = vrot.slane %v373, %v597
          %v599 = vlaneseq
          %v600 = vshrl.u32 %v599, 7
          %v601 = vsub.s32 1, %v600
          %v602 = vrot.slane %v373, %v601
          %v603 = vlaneseq
          %v604 = vshrl.u32 %v603, 7
          %v605 = vsub.s32 2, %v604
          %v606 = vrot.slane %v373, %v605
          %v607 = vlaneseq
          %v608 = vshrl.u32 %v607, 7
          %v609 = vsub.s32 3, %v608
          %v610 = vrot.slane %v373, %v609
          %v611 = vlaneseq
          %v612 = vshrl.u32 %v611, 7
          %v613 = vsub.s32 4, %v612
          %v614 = vrot.slane %v373, %v613
          %v615 = vlaneseq
          %v616 = vshrl.u32 %v615, 7
          %v617 = vsub.s32 5, %v616
          %v618 = vrot.slane %v373, %v617
          %v619 = vlaneseq
          %v620 = vshrl.u32 %v619, 7
          %v621 = vsub.s32 6, %v620
          %v622 = vrot.slane %v373, %v621
          %v623 = vlaneseq
          %v624 = vshrl.u32 %v623, 7
          %v625 = vsub.s32 7, %v624
          %v626 = vrot.slane %v373, %v625
          %v627 = vlaneseq
          %v628 = vshrl.u32 %v627, 7
          %v629 = vsub.s32 0, %v628
          %v630 = vrot.slane %v390, %v629
          %v631 = vlaneseq
          %v632 = vshrl.u32 %v631, 7
          %v633 = vsub.s32 1, %v632
          %v634 = vrot.slane %v390, %v633
          %v635 = vlaneseq
          %v636 = vshrl.u32 %v635, 7
          %v637 = vsub.s32 2, %v636
          %v638 = vrot.slane %v390, %v637
          %v639 = vlaneseq
          %v640 = vshrl.u32 %v639, 7
          %v641 = vsub.s32 3, %v640
          %v642 = vrot.slane %v390, %v641
          %v643 = vlaneseq
          %v644 = vshrl.u32 %v643, 7
          %v645 = vsub.s32 4, %v644
          %v646 = vrot.slane %v390, %v645
          %v647 = vlaneseq
          %v648 = vshrl.u32 %v647, 7
          %v649 = vsub.s32 5, %v648
          %v650 = vrot.slane %v390, %v649
          %v651 = vlaneseq
          %v652 = vshrl.u32 %v651, 7
          %v653 = vsub.s32 6, %v652
          %v654 = vrot.slane %v390, %v653
          %v655 = vlaneseq
          %v656 = vshrl.u32 %v655, 7
          %v657 = vsub.s32 7, %v656
          %v658 = vrot.slane %v390, %v657
          %v659 = vcombine.low %v534, %v538
          %v660 = vcombine.low %v542, %v546
          %v661 = vcombine.low %v550, %v554
          %v662 = vcombine.low %v558, %v562
          %v664 = vunpack.c.l.s4 1966171168
          %v665 = vunpack.c.0.s8 %v664
          %v666 = vlaneseq
          %v667 = vshrl.u32 %v666, 7
          %v668 = vsub.s32 %v665, %v667
          %v669 = vrot.slane %v659, %v668
          %v671 = vunpack.c.l.s4 1966171168
          %v672 = vunpack.c.0.s8 %v671
          %v673 = vlaneseq
          %v674 = vshrl.u32 %v673, 7
          %v675 = vsub.s32 %v672, %v674
          %v676 = vrot.slane %v660, %v675
          %v678 = vunpack.c.l.s4 1966171168
          %v679 = vunpack.c.0.s8 %v678
          %v680 = vlaneseq
          %v681 = vshrl.u32 %v680, 7
          %v682 = vsub.s32 %v679, %v681
          %v683 = vrot.slane %v661, %v682
          %v685 = vunpack.c.l.s4 1966171168
          %v686 = vunpack.c.0.s8 %v685
          %v687 = vlaneseq
          %v688 = vshrl.u32 %v687, 7
          %v689 = vsub.s32 %v686, %v688
          %v690 = vrot.slane %v662, %v689
          %v691 = vcombine.low %v669, %v676
          %v692 = vcombine.low %v683, %v690
          %v694 = vunpack.c.l.s4 1966171168
          %v695 = vunpack.c.0.s8 %v694
          %v696 = vlaneseq
          %v697 = vshrl.u32 %v696, 7
          %v698 = vsub.s32 %v695, %v697
          %v699 = vrot.slane %v691, %v698
          %v701 = vunpack.c.l.s4 1966171168
          %v702 = vunpack.c.0.s8 %v701
          %v703 = vlaneseq
          %v704 = vshrl.u32 %v703, 7
          %v705 = vsub.s32 %v702, %v704
          %v706 = vrot.slane %v692, %v705
          %v707 = vcombine.low %v699, %v706
          %v708 = vcombine.low %v566, %v570
          %v709 = vcombine.low %v574, %v578
          %v710 = vcombine.low %v582, %v586
          %v711 = vcombine.low %v590, %v594
          %v713 = vunpack.c.l.s4 1966171168
          %v714 = vunpack.c.0.s8 %v713
          %v715 = vlaneseq
          %v716 = vshrl.u32 %v715, 7
          %v717 = vsub.s32 %v714, %v716
          %v718 = vrot.slane %v708, %v717
          %v720 = vunpack.c.l.s4 1966171168
          %v721 = vunpack.c.0.s8 %v720
          %v722 = vlaneseq
          %v723 = vshrl.u32 %v722, 7
          %v724 = vsub.s32 %v721, %v723
          %v725 = vrot.slane %v709, %v724
          %v727 = vunpack.c.l.s4 1966171168
          %v728 = vunpack.c.0.s8 %v727
          %v729 = vlaneseq
          %v730 = vshrl.u32 %v729, 7
          %v731 = vsub.s32 %v728, %v730
          %v732 = vrot.slane %v710, %v731
          %v734 = vunpack.c.l.s4 1966171168
          %v735 = vunpack.c.0.s8 %v734
          %v736 = vlaneseq
          %v737 = vshrl.u32 %v736, 7
          %v738 = vsub.s32 %v735, %v737
          %v739 = vrot.slane %v711, %v738
          %v740 = vcombine.low %v718, %v725
          %v741 = vcombine.low %v732, %v739
          %v743 = vunpack.c.l.s4 1966171168
          %v744 = vunpack.c.0.s8 %v743
          %v745 = vlaneseq
          %v746 = vshrl.u32 %v745, 7
          %v747 = vsub.s32 %v744, %v746
          %v748 = vrot.slane %v740, %v747
          %v750 = vunpack.c.l.s4 1966171168
          %v751 = vunpack.c.0.s8 %v750
          %v752 = vlaneseq
          %v753 = vshrl.u32 %v752, 7
          %v754 = vsub.s32 %v751, %v753
          %v755 = vrot.slane %v741, %v754
          %v756 = vcombine.low %v748, %v755
          %v757 = vcombine.low %v598, %v602
          %v758 = vcombine.low %v606, %v610
          %v759 = vcombine.low %v614, %v618
          %v760 = vcombine.low %v622, %v626
          %v762 = vunpack.c.l.s4 1966171168
          %v763 = vunpack.c.0.s8 %v762
          %v764 = vlaneseq
          %v765 = vshrl.u32 %v764, 7
          %v766 = vsub.s32 %v763, %v765
          %v767 = vrot.slane %v757, %v766
          %v769 = vunpack.c.l.s4 1966171168
          %v770 = vunpack.c.0.s8 %v769
          %v771 = vlaneseq
          %v772 = vshrl.u32 %v771, 7
          %v773 = vsub.s32 %v770, %v772
          %v774 = vrot.slane %v758, %v773
          %v776 = vunpack.c.l.s4 1966171168
          %v777 = vunpack.c.0.s8 %v776
          %v778 = vlaneseq
          %v779 = vshrl.u32 %v778, 7
          %v780 = vsub.s32 %v777, %v779
          %v781 = vrot.slane %v759, %v780
          %v783 = vunpack.c.l.s4 1966171168
          %v784 = vunpack.c.0.s8 %v783
          %v785 = vlaneseq
          %v786 = vshrl.u32 %v785, 7
          %v787 = vsub.s32 %v784, %v786
          %v788 = vrot.slane %v760, %v787
          %v789 = vcombine.low %v767, %v774
          %v790 = vcombine.low %v781, %v788
          %v792 = vunpack.c.l.s4 1966171168
          %v793 = vunpack.c.0.s8 %v792
          %v794 = vlaneseq
          %v795 = vshrl.u32 %v794, 7
          %v796 = vsub.s32 %v793, %v795
          %v797 = vrot.slane %v789, %v796
          %v799 = vunpack.c.l.s4 1966171168
          %v800 = vunpack.c.0.s8 %v799
          %v801 = vlaneseq
          %v802 = vshrl.u32 %v801, 7
          %v803 = vsub.s32 %v800, %v802
          %v804 = vrot.slane %v790, %v803
          %v805 = vcombine.low %v797, %v804
          %v806 = vcombine.low %v630, %v634
          %v807 = vcombine.low %v638, %v642
          %v808 = vcombine.low %v646, %v650
          %v809 = vcombine.low %v654, %v658
          %v811 = vunpack.c.l.s4 1966171168
          %v812 = vunpack.c.0.s8 %v811
          %v813 = vlaneseq
          %v814 = vshrl.u32 %v813, 7
          %v815 = vsub.s32 %v812, %v814
          %v816 = vrot.slane %v806, %v815
          %v818 = vunpack.c.l.s4 1966171168
          %v819 = vunpack.c.0.s8 %v818
          %v820 = vlaneseq
          %v821 = vshrl.u32 %v820, 7
          %v822 = vsub.s32 %v819, %v821
          %v823 = vrot.slane %v807, %v822
          %v825 = vunpack.c.l.s4 1966171168
          %v826 = vunpack.c.0.s8 %v825
          %v827 = vlaneseq
          %v828 = vshrl.u32 %v827, 7
          %v829 = vsub.s32 %v826, %v828
          %v830 = vrot.slane %v808, %v829
          %v832 = vunpack.c.l.s4 1966171168
          %v833 = vunpack.c.0.s8 %v832
          %v834 = vlaneseq
          %v835 = vshrl.u32 %v834, 7
          %v836 = vsub.s32 %v833, %v835
          %v837 = vrot.slane %v809, %v836
          %v838 = vcombine.low %v816, %v823
          %v839 = vcombine.low %v830, %v837
          %v841 = vunpack.c.l.s4 1966171168
          %v842 = vunpack.c.0.s8 %v841
          %v843 = vlaneseq
          %v844 = vshrl.u32 %v843, 7
          %v845 = vsub.s32 %v842, %v844
          %v846 = vrot.slane %v838, %v845
          %v848 = vunpack.c.l.s4 1966171168
          %v849 = vunpack.c.0.s8 %v848
          %v850 = vlaneseq
          %v851 = vshrl.u32 %v850, 7
          %v852 = vsub.s32 %v849, %v851
          %v853 = vrot.slane %v839, %v852
          %v854 = vcombine.low %v846, %v853
          %855 = vset.pattern.permute.xlu0 0
          %856 = vperm.xlu0 %855, %v707
          %v857 = vpop.permute.xlu0 %856
          %858 = vset.pattern.permute.xlu0 0
          %859 = vperm.xlu0 %858, %v756
          %v860 = vpop.permute.xlu0 %859
          %861 = vset.pattern.permute.xlu0 0
          %862 = vperm.xlu0 %861, %v805
          %v863 = vpop.permute.xlu0 %862
          %864 = vset.pattern.permute.xlu0 0
          %865 = vperm.xlu0 %864, %v854
          %v866 = vpop.permute.xlu0 %865
          %v867 = vlaneseq
          %v868 = vand.u32 %v867, 127
          %v869 = vlaneseq
          %v870 = vshrl.u32 %v869, 7
          %v871 = vsub.s32 %v868, %v870
          %v872 = vrot.slane %v857, %v871
          %v873 = vadd.s32 %v868, 4294967288
          %v874 = vlaneseq
          %v875 = vshrl.u32 %v874, 7
          %v876 = vsub.s32 %v873, %v875
          %v877 = vrot.slane %v860, %v876
          %vm878 = vcmask 130112
          %v879 = vsel %vm878, %v877, %v872
          %v880 = vadd.s32 %v868, 4294967280
          %v881 = vlaneseq
          %v882 = vshrl.u32 %v881, 7
          %v883 = vsub.s32 %v880, %v882
          %v884 = vrot.slane %v863, %v883
          %vm885 = vcmask 195712
          %v886 = vsel %vm885, %v884, %v879
          %v887 = vadd.s32 %v868, 4294967272
          %v888 = vlaneseq
          %v889 = vshrl.u32 %v888, 7
          %v890 = vsub.s32 %v887, %v889
          %v891 = vrot.slane %v866, %v890
          %vm892 = vcmask 261312
          %v893 = vsel %vm892, %v891, %v886
          %v895 = vunpack.c.l.s4 1966171168
          %v896 = vunpack.c.0.s8 %v895
          %v897 = vlaneseq
          %v898 = vshrl.u32 %v897, 7
          %v899 = vsub.s32 %v896, %v898
          %v900 = vrot.slane %v893, %v899
          %v902 = vunpack.c.l.s4 1966171168
          %v903 = vunpack.c.0.s8 %v902
          %v904 = vlaneseq
          %v905 = vshrl.u32 %v904, 7
          %v906 = vsub.s32 %v903, %v905
          %v907 = vrot.slane %v900, %v906
          %v909 = vadd.f32 %v526, %v907
          %vm910 = vcmask 253952
          %911 = vst.msk [vmem:[#allocation2] sm:$0x1] %vm910, %v909
          %v912 = vld [vmem:[#allocation3] sm:$0x1]
          %v917 = vlaneseq
          %v918 = vshrl.u32 %v917, 7
          %v919 = vsub.s32 0, %v918
          %v920 = vrot.slane %v407, %v919
          %v921 = vlaneseq
          %v922 = vshrl.u32 %v921, 7
          %v923 = vsub.s32 1, %v922
          %v924 = vrot.slane %v407, %v923
          %v925 = vlaneseq
          %v926 = vshrl.u32 %v925, 7
          %v927 = vsub.s32 2, %v926
          %v928 = vrot.slane %v407, %v927
          %v929 = vlaneseq
          %v930 = vshrl.u32 %v929, 7
          %v931 = vsub.s32 3, %v930
          %v932 = vrot.slane %v407, %v931
          %v933 = vlaneseq
          %v934 = vshrl.u32 %v933, 7
          %v935 = vsub.s32 4, %v934
          %v936 = vrot.slane %v407, %v935
          %v937 = vlaneseq
          %v938 = vshrl.u32 %v937, 7
          %v939 = vsub.s32 5, %v938
          %v940 = vrot.slane %v407, %v939
          %v941 = vlaneseq
          %v942 = vshrl.u32 %v941, 7
          %v943 = vsub.s32 6, %v942
          %v944 = vrot.slane %v407, %v943
          %v945 = vlaneseq
          %v946 = vshrl.u32 %v945, 7
          %v947 = vsub.s32 7, %v946
          %v948 = vrot.slane %v407, %v947
          %v949 = vlaneseq
          %v950 = vshrl.u32 %v949, 7
          %v951 = vsub.s32 0, %v950
          %v952 = vrot.slane %v424, %v951
          %v953 = vlaneseq
          %v954 = vshrl.u32 %v953, 7
          %v955 = vsub.s32 1, %v954
          %v956 = vrot.slane %v424, %v955
          %v957 = vlaneseq
          %v958 = vshrl.u32 %v957, 7
          %v959 = vsub.s32 2, %v958
          %v960 = vrot.slane %v424, %v959
          %v961 = vlaneseq
          %v962 = vshrl.u32 %v961, 7
          %v963 = vsub.s32 3, %v962
          %v964 = vrot.slane %v424, %v963
          %v965 = vlaneseq
          %v966 = vshrl.u32 %v965, 7
          %v967 = vsub.s32 4, %v966
          %v968 = vrot.slane %v424, %v967
          %v969 = vlaneseq
          %v970 = vshrl.u32 %v969, 7
          %v971 = vsub.s32 5, %v970
          %v972 = vrot.slane %v424, %v971
          %v973 = vlaneseq
          %v974 = vshrl.u32 %v973, 7
          %v975 = vsub.s32 6, %v974
          %v976 = vrot.slane %v424, %v975
          %v977 = vlaneseq
          %v978 = vshrl.u32 %v977, 7
          %v979 = vsub.s32 7, %v978
          %v980 = vrot.slane %v424, %v979
          %v981 = vlaneseq
          %v982 = vshrl.u32 %v981, 7
          %v983 = vsub.s32 0, %v982
          %v984 = vrot.slane %v441, %v983
          %v985 = vlaneseq
          %v986 = vshrl.u32 %v985, 7
          %v987 = vsub.s32 1, %v986
          %v988 = vrot.slane %v441, %v987
          %v989 = vlaneseq
          %v990 = vshrl.u32 %v989, 7
          %v991 = vsub.s32 2, %v990
          %v992 = vrot.slane %v441, %v991
          %v993 = vlaneseq
          %v994 = vshrl.u32 %v993, 7
          %v995 = vsub.s32 3, %v994
          %v996 = vrot.slane %v441, %v995
          %v997 = vlaneseq
          %v998 = vshrl.u32 %v997, 7
          %v999 = vsub.s32 4, %v998
          %v1000 = vrot.slane %v441, %v999
          %v1001 = vlaneseq
          %v1002 = vshrl.u32 %v1001, 7
          %v1003 = vsub.s32 5, %v1002
          %v1004 = vrot.slane %v441, %v1003
          %v1005 = vlaneseq
          %v1006 = vshrl.u32 %v1005, 7
          %v1007 = vsub.s32 6, %v1006
          %v1008 = vrot.slane %v441, %v1007
          %v1009 = vlaneseq
          %v1010 = vshrl.u32 %v1009, 7
          %v1011 = vsub.s32 7, %v1010
          %v1012 = vrot.slane %v441, %v1011
          %v1013 = vlaneseq
          %v1014 = vshrl.u32 %v1013, 7
          %v1015 = vsub.s32 0, %v1014
          %v1016 = vrot.slane %v458, %v1015
          %v1017 = vlaneseq
          %v1018 = vshrl.u32 %v1017, 7
          %v1019 = vsub.s32 1, %v1018
          %v1020 = vrot.slane %v458, %v1019
          %v1021 = vlaneseq
          %v1022 = vshrl.u32 %v1021, 7
          %v1023 = vsub.s32 2, %v1022
          %v1024 = vrot.slane %v458, %v1023
          %v1025 = vlaneseq
          %v1026 = vshrl.u32 %v1025, 7
          %v1027 = vsub.s32 3, %v1026
          %v1028 = vrot.slane %v458, %v1027
          %v1029 = vlaneseq
          %v1030 = vshrl.u32 %v1029, 7
          %v1031 = vsub.s32 4, %v1030
          %v1032 = vrot.slane %v458, %v1031
          %v1033 = vlaneseq
          %v1034 = vshrl.u32 %v1033, 7
          %v1035 = vsub.s32 5, %v1034
          %v1036 = vrot.slane %v458, %v1035
          %v1037 = vlaneseq
          %v1038 = vshrl.u32 %v1037, 7
          %v1039 = vsub.s32 6, %v1038
          %v1040 = vrot.slane %v458, %v1039
          %v1041 = vlaneseq
          %v1042 = vshrl.u32 %v1041, 7
          %v1043 = vsub.s32 7, %v1042
          %v1044 = vrot.slane %v458, %v1043
          %v1045 = vcombine.low %v920, %v924
          %v1046 = vcombine.low %v928, %v932
          %v1047 = vcombine.low %v936, %v940
          %v1048 = vcombine.low %v944, %v948
          %v1050 = vunpack.c.l.s4 1966171168
          %v1051 = vunpack.c.0.s8 %v1050
          %v1052 = vlaneseq
          %v1053 = vshrl.u32 %v1052, 7
          %v1054 = vsub.s32 %v1051, %v1053
          %v1055 = vrot.slane %v1045, %v1054
          %v1057 = vunpack.c.l.s4 1966171168
          %v1058 = vunpack.c.0.s8 %v1057
          %v1059 = vlaneseq
          %v1060 = vshrl.u32 %v1059, 7
          %v1061 = vsub.s32 %v1058, %v1060
          %v1062 = vrot.slane %v1046, %v1061
          %v1064 = vunpack.c.l.s4 1966171168
          %v1065 = vunpack.c.0.s8 %v1064
          %v1066 = vlaneseq
          %v1067 = vshrl.u32 %v1066, 7
          %v1068 = vsub.s32 %v1065, %v1067
          %v1069 = vrot.slane %v1047, %v1068
          %v1071 = vunpack.c.l.s4 1966171168
          %v1072 = vunpack.c.0.s8 %v1071
          %v1073 = vlaneseq
          %v1074 = vshrl.u32 %v1073, 7
          %v1075 = vsub.s32 %v1072, %v1074
          %v1076 = vrot.slane %v1048, %v1075
          %v1077 = vcombine.low %v1055, %v1062
          %v1078 = vcombine.low %v1069, %v1076
          %v1080 = vunpack.c.l.s4 1966171168
          %v1081 = vunpack.c.0.s8 %v1080
          %v1082 = vlaneseq
          %v1083 = vshrl.u32 %v1082, 7
          %v1084 = vsub.s32 %v1081, %v1083
          %v1085 = vrot.slane %v1077, %v1084
          %v1087 = vunpack.c.l.s4 1966171168
          %v1088 = vunpack.c.0.s8 %v1087
          %v1089 = vlaneseq
          %v1090 = vshrl.u32 %v1089, 7
          %v1091 = vsub.s32 %v1088, %v1090
          %v1092 = vrot.slane %v1078, %v1091
          %v1093 = vcombine.low %v1085, %v1092
          %v1094 = vcombine.low %v952, %v956
          %v1095 = vcombine.low %v960, %v964
          %v1096 = vcombine.low %v968, %v972
          %v1097 = vcombine.low %v976, %v980
          %v1099 = vunpack.c.l.s4 1966171168
          %v1100 = vunpack.c.0.s8 %v1099
          %v1101 = vlaneseq
          %v1102 = vshrl.u32 %v1101, 7
          %v1103 = vsub.s32 %v1100, %v1102
          %v1104 = vrot.slane %v1094, %v1103
          %v1106 = vunpack.c.l.s4 1966171168
          %v1107 = vunpack.c.0.s8 %v1106
          %v1108 = vlaneseq
          %v1109 = vshrl.u32 %v1108, 7
          %v1110 = vsub.s32 %v1107, %v1109
          %v1111 = vrot.slane %v1095, %v1110
          %v1113 = vunpack.c.l.s4 1966171168
          %v1114 = vunpack.c.0.s8 %v1113
          %v1115 = vlaneseq
          %v1116 = vshrl.u32 %v1115, 7
          %v1117 = vsub.s32 %v1114, %v1116
          %v1118 = vrot.slane %v1096, %v1117
          %v1120 = vunpack.c.l.s4 1966171168
          %v1121 = vunpack.c.0.s8 %v1120
          %v1122 = vlaneseq
          %v1123 = vshrl.u32 %v1122, 7
          %v1124 = vsub.s32 %v1121, %v1123
          %v1125 = vrot.slane %v1097, %v1124
          %v1126 = vcombine.low %v1104, %v1111
          %v1127 = vcombine.low %v1118, %v1125
          %v1129 = vunpack.c.l.s4 1966171168
          %v1130 = vunpack.c.0.s8 %v1129
          %v1131 = vlaneseq
          %v1132 = vshrl.u32 %v1131, 7
          %v1133 = vsub.s32 %v1130, %v1132
          %v1134 = vrot.slane %v1126, %v1133
          %v1136 = vunpack.c.l.s4 1966171168
          %v1137 = vunpack.c.0.s8 %v1136
          %v1138 = vlaneseq
          %v1139 = vshrl.u32 %v1138, 7
          %v1140 = vsub.s32 %v1137, %v1139
          %v1141 = vrot.slane %v1127, %v1140
          %v1142 = vcombine.low %v1134, %v1141
          %v1143 = vcombine.low %v984, %v988
          %v1144 = vcombine.low %v992, %v996
          %v1145 = vcombine.low %v1000, %v1004
          %v1146 = vcombine.low %v1008, %v1012
          %v1148 = vunpack.c.l.s4 1966171168
          %v1149 = vunpack.c.0.s8 %v1148
          %v1150 = vlaneseq
          %v1151 = vshrl.u32 %v1150, 7
          %v1152 = vsub.s32 %v1149, %v1151
          %v1153 = vrot.slane %v1143, %v1152
          %v1155 = vunpack.c.l.s4 1966171168
          %v1156 = vunpack.c.0.s8 %v1155
          %v1157 = vlaneseq
          %v1158 = vshrl.u32 %v1157, 7
          %v1159 = vsub.s32 %v1156, %v1158
          %v1160 = vrot.slane %v1144, %v1159
          %v1162 = vunpack.c.l.s4 1966171168
          %v1163 = vunpack.c.0.s8 %v1162
          %v1164 = vlaneseq
          %v1165 = vshrl.u32 %v1164, 7
          %v1166 = vsub.s32 %v1163, %v1165
          %v1167 = vrot.slane %v1145, %v1166
          %v1169 = vunpack.c.l.s4 1966171168
          %v1170 = vunpack.c.0.s8 %v1169
          %v1171 = vlaneseq
          %v1172 = vshrl.u32 %v1171, 7
          %v1173 = vsub.s32 %v1170, %v1172
          %v1174 = vrot.slane %v1146, %v1173
          %v1175 = vcombine.low %v1153, %v1160
          %v1176 = vcombine.low %v1167, %v1174
          %v1178 = vunpack.c.l.s4 1966171168
          %v1179 = vunpack.c.0.s8 %v1178
          %v1180 = vlaneseq
          %v1181 = vshrl.u32 %v1180, 7
          %v1182 = vsub.s32 %v1179, %v1181
          %v1183 = vrot.slane %v1175, %v1182
          %v1185 = vunpack.c.l.s4 1966171168
          %v1186 = vunpack.c.0.s8 %v1185
          %v1187 = vlaneseq
          %v1188 = vshrl.u32 %v1187, 7
          %v1189 = vsub.s32 %v1186, %v1188
          %v1190 = vrot.slane %v1176, %v1189
          %v1191 = vcombine.low %v1183, %v1190
          %v1192 = vcombine.low %v1016, %v1020
          %v1193 = vcombine.low %v1024, %v1028
          %v1194 = vcombine.low %v1032, %v1036
          %v1195 = vcombine.low %v1040, %v1044
          %v1197 = vunpack.c.l.s4 1966171168
          %v1198 = vunpack.c.0.s8 %v1197
          %v1199 = vlaneseq
          %v1200 = vshrl.u32 %v1199, 7
          %v1201 = vsub.s32 %v1198, %v1200
          %v1202 = vrot.slane %v1192, %v1201
          %v1204 = vunpack.c.l.s4 1966171168
          %v1205 = vunpack.c.0.s8 %v1204
          %v1206 = vlaneseq
          %v1207 = vshrl.u32 %v1206, 7
          %v1208 = vsub.s32 %v1205, %v1207
          %v1209 = vrot.slane %v1193, %v1208
          %v1211 = vunpack.c.l.s4 1966171168
          %v1212 = vunpack.c.0.s8 %v1211
          %v1213 = vlaneseq
          %v1214 = vshrl.u32 %v1213, 7
          %v1215 = vsub.s32 %v1212, %v1214
          %v1216 = vrot.slane %v1194, %v1215
          %v1218 = vunpack.c.l.s4 1966171168
          %v1219 = vunpack.c.0.s8 %v1218
          %v1220 = vlaneseq
          %v1221 = vshrl.u32 %v1220, 7
          %v1222 = vsub.s32 %v1219, %v1221
          %v1223 = vrot.slane %v1195, %v1222
          %v1224 = vcombine.low %v1202, %v1209
          %v1225 = vcombine.low %v1216, %v1223
          %v1227 = vunpack.c.l.s4 1966171168
          %v1228 = vunpack.c.0.s8 %v1227
          %v1229 = vlaneseq
          %v1230 = vshrl.u32 %v1229, 7
          %v1231 = vsub.s32 %v1228, %v1230
          %v1232 = vrot.slane %v1224, %v1231
          %v1234 = vunpack.c.l.s4 1966171168
          %v1235 = vunpack.c.0.s8 %v1234
          %v1236 = vlaneseq
          %v1237 = vshrl.u32 %v1236, 7
          %v1238 = vsub.s32 %v1235, %v1237
          %v1239 = vrot.slane %v1225, %v1238
          %v1240 = vcombine.low %v1232, %v1239
          %1241 = vset.pattern.permute.xlu0 0
          %1242 = vperm.xlu0 %1241, %v1093
          %v1243 = vpop.permute.xlu0 %1242
          %1244 = vset.pattern.permute.xlu0 0
          %1245 = vperm.xlu0 %1244, %v1142
          %v1246 = vpop.permute.xlu0 %1245
          %1247 = vset.pattern.permute.xlu0 0
          %1248 = vperm.xlu0 %1247, %v1191
          %v1249 = vpop.permute.xlu0 %1248
          %1250 = vset.pattern.permute.xlu0 0
          %1251 = vperm.xlu0 %1250, %v1240
          %v1252 = vpop.permute.xlu0 %1251
          %v1253 = vlaneseq
          %v1254 = vshrl.u32 %v1253, 7
          %v1255 = vsub.s32 %v868, %v1254
          %v1256 = vrot.slane %v1243, %v1255
          %v1257 = vlaneseq
          %v1258 = vshrl.u32 %v1257, 7
          %v1259 = vsub.s32 %v873, %v1258
          %v1260 = vrot.slane %v1246, %v1259
          %v1261 = vsel %vm878, %v1260, %v1256
          %v1262 = vlaneseq
          %v1263 = vshrl.u32 %v1262, 7
          %v1264 = vsub.s32 %v880, %v1263
          %v1265 = vrot.slane %v1249, %v1264
          %v1266 = vsel %vm885, %v1265, %v1261
          %v1267 = vlaneseq
          %v1268 = vshrl.u32 %v1267, 7
          %v1269 = vsub.s32 %v887, %v1268
          %v1270 = vrot.slane %v1252, %v1269
          %v1271 = vsel %vm892, %v1270, %v1266
          %v1273 = vunpack.c.l.s4 1966171168
          %v1274 = vunpack.c.0.s8 %v1273
          %v1275 = vlaneseq
          %v1276 = vshrl.u32 %v1275, 7
          %v1277 = vsub.s32 %v1274, %v1276
          %v1278 = vrot.slane %v1271, %v1277
          %v1280 = vunpack.c.l.s4 1966171168
          %v1281 = vunpack.c.0.s8 %v1280
          %v1282 = vlaneseq
          %v1283 = vshrl.u32 %v1282, 7
          %v1284 = vsub.s32 %v1281, %v1283
          %v1285 = vrot.slane %v1278, %v1284
          %v1287 = vmax.f32 %v912, %v1285
          %1288 = vst.msk [vmem:[#allocation3] sm:$0x1] %vm910, %v1287
        $region52: #{tpu_custom_call.1} parent=39 // pred_fallthru
          _
        %p1289 = scmp.eq.s32.totalorder %s27, 1
        // Predicated region
        $region53: #{tpu_custom_call.1} parent=39 // pred_check
          %p1290 = pneg %p1289
        $region54: #{tpu_custom_call.1} parent=39 // pred_check_branch
          %1292 = sbr.rel (%p1290) target = $region56
        $region55: #{tpu_custom_call.1} parent=39 // pred_region
          %v1293 = vld [vmem:[#allocation2] sm:$0x1]
          %v1294 = vmul.f32 %v1293, 0.00024414063
          %v1295 = vld [vmem:[#allocation3] sm:$0x1]
          %v1296 = vld [vmem:[%s1] sm:$0xff]
          %v1297 = vld [vmem:[%s1 + $0x8] sm:$0xff]
          %v1298 = vld [vmem:[%s1 + $0x10] sm:$0xff]
          %v1299 = vld [vmem:[%s1 + $0x18] sm:$0xff]
          %v1300 = vld [vmem:[%s2] sm:$0x1]
          %vm1301 = vcmask 261120
          %v1303 = vsel %vm1301, %v1294, 0
          %1305 = vmatprep.subr.mxu0 0.0
          %v1306 = vand.u32 %v1296, 4294901760
          %1307 = vmatpush1.msra.mxu0 %v1306
          %1308 = vmatprep.subr.mxu0 0.0
          %v1309 = vand.u32 %v1297, 4294901760
          %1310 = vmatpush1.msra.mxu0 %v1309
          %1311 = vmatprep.subr.mxu0 0.0
          %v1312 = vand.u32 %v1298, 4294901760
          %1313 = vmatpush1.msra.mxu0 %v1312
          %1314 = vmatprep.subr.mxu0 0.0
          %v1315 = vand.u32 %v1299, 4294901760
          %1316 = vmatpush1.msra.mxu0 %v1315
          %1317 = vmatprep.subr.mxu0 0.0
          %1318 = vmatpush1.msra.mxu0 0.0
          %1319 = vmatprep.subr.mxu0 0.0
          %1320 = vmatpush1.msra.mxu0 0.0
          %1321 = vmatprep.subr.mxu0 0.0
          %1322 = vmatpush1.msra.mxu0 0.0
          %1323 = vmatprep.subr.mxu0 0.0
          %1324 = vmatpush1.msra.mxu0 0.0
          %1325 = vmatprep.subr.mxu0 0.0
          %1326 = vmatpush1.msra.mxu0 0.0
          %1327 = vmatprep.subr.mxu0 0.0
          %1328 = vmatpush1.msra.mxu0 0.0
          %1329 = vmatprep.subr.mxu0 0.0
          %1330 = vmatpush1.msra.mxu0 0.0
          %1331 = vmatprep.subr.mxu0 0.0
          %1332 = vmatpush1.msra.mxu0 0.0
          %1333 = vmatprep.subr.mxu0 0.0
          %1334 = vmatpush1.msra.mxu0 0.0
          %1335 = vmatprep.subr.mxu0 0.0
          %1336 = vmatpush1.msra.mxu0 0.0
          %1337 = vmatprep.subr.mxu0 0.0
          %1338 = vmatpush1.msra.mxu0 0.0
          %1339 = vmatprep.subr.mxu0 0.0
          %1340 = vmatpush1.msra.mxu0 0.0
          %1341 = vmatprep.subr.mxu0 0.0
          %1342 = vmatpush1.msra.mxu0 0.0
          %1343 = vmatprep.subr.mxu0 0.0
          %1344 = vmatpush1.msra.mxu0 0.0
          %1345 = vmatprep.subr.mxu0 0.0
          %1346 = vmatpush1.msra.mxu0 0.0
          %1347 = vmatprep.subr.mxu0 0.0
          %1348 = vmatpush1.msra.mxu0 0.0
          %1349 = vmatprep.subr.mxu0 0.0
          %1350 = vmatpush1.msra.mxu0 0.0
          %1351 = vmatprep.subr.mxu0 0.0
          %1352 = vmatpush1.msra.mxu0 0.0
          %1353 = vmatprep.subr.mxu0 0.0
          %1354 = vmatpush1.msra.mxu0 0.0
          %1355 = vmatprep.subr.mxu0 0.0
          %1356 = vmatpush1.msra.mxu0 0.0
          %1357 = vmatprep.subr.mxu0 0.0
          %1358 = vmatpush1.msra.mxu0 0.0
          %1359 = vmatprep.subr.mxu0 0.0
          %1360 = vmatpush1.msra.mxu0 0.0
          %1361 = vmatprep.subr.mxu0 0.0
          %1362 = vmatpush1.msra.mxu0 0.0
          %1363 = vmatprep.subr.mxu0 0.0
          %1364 = vmatpush1.msra.mxu0 0.0
          %1365 = vmatprep.subr.mxu0 0.0
          %1366 = vmatpush1.msra.mxu0 0.0
          %1367 = vmatprep.subr.mxu0 0.0
          %1368 = vmatpush1.msra.mxu0 0.0
          %1369 = vmatprep.subr.mxu0 0.0
          %1370 = vmatpush1.msra.mxu0 0.0
          %1371 = vmatprep.subr.mxu0 0.0
          %1372 = vmatpush1.msra.mxu0 0.0
          %1373 = vmatprep.mubr.f32.mxu0 0.0
          %v1374 = vand.u32 %v1303, 4294901760
          %v1375 = vsub.f32 %v1303, %v1374
          %v1376 = vand.u32 %v1375, 4294901760
          %v1377 = vsub.f32 %v1375, %v1376
          %v1378 = vand.u32 %v1377, 4294901760
          %1379 = vmatmul.mubr.f32.gmra.mrb[0].mxu0 %v1378
          %v1380 = vpop.f32.mrb[0].mxu0
          %v1381 = vadd.f32 %v1300, %v1380
          %v1382 = vpop.f32.mrb[0].mxu0
          %1383 = vdwg.mxu0
          %1384 = vmatprep.subr.mxu0 0.0
          %v1385 = vand.u32 %v1296, 4294901760
          %v1386 = vsub.f32 %v1296, %v1385
          %v1387 = vand.u32 %v1386, 4294901760
          %v1388 = vsub.f32 %v1386, %v1387
          %v1389 = vand.u32 %v1388, 4294901760
          %1390 = vmatpush1.msra.mxu0 %v1389
          %1391 = vmatprep.subr.mxu0 0.0
          %v1392 = vand.u32 %v1297, 4294901760
          %v1393 = vsub.f32 %v1297, %v1392
          %v1394 = vand.u32 %v1393, 4294901760
          %v1395 = vsub.f32 %v1393, %v1394
          %v1396 = vand.u32 %v1395, 4294901760
          %1397 = vmatpush1.msra.mxu0 %v1396
          %1398 = vmatprep.subr.mxu0 0.0
          %v1399 = vand.u32 %v1298, 4294901760
          %v1400 = vsub.f32 %v1298, %v1399
          %v1401 = vand.u32 %v1400, 4294901760
          %v1402 = vsub.f32 %v1400, %v1401
          %v1403 = vand.u32 %v1402, 4294901760
          %1404 = vmatpush1.msra.mxu0 %v1403
          %1405 = vmatprep.subr.mxu0 0.0
          %v1406 = vand.u32 %v1299, 4294901760
          %v1407 = vsub.f32 %v1299, %v1406
          %v1408 = vand.u32 %v1407, 4294901760
          %v1409 = vsub.f32 %v1407, %v1408
          %v1410 = vand.u32 %v1409, 4294901760
          %1411 = vmatpush1.msra.mxu0 %v1410
          %1412 = vmatprep.subr.mxu0 0.0
          %1413 = vmatpush1.msra.mxu0 0.0
          %1414 = vmatprep.subr.mxu0 0.0
          %1415 = vmatpush1.msra.mxu0 0.0
          %1416 = vmatprep.subr.mxu0 0.0
          %1417 = vmatpush1.msra.mxu0 0.0
          %1418 = vmatprep.subr.mxu0 0.0
          %1419 = vmatpush1.msra.mxu0 0.0
          %1420 = vmatprep.subr.mxu0 0.0
          %1421 = vmatpush1.msra.mxu0 0.0
          %1422 = vmatprep.subr.mxu0 0.0
          %1423 = vmatpush1.msra.mxu0 0.0
          %1424 = vmatprep.subr.mxu0 0.0
          %1425 = vmatpush1.msra.mxu0 0.0
          %1426 = vmatprep.subr.mxu0 0.0
          %1427 = vmatpush1.msra.mxu0 0.0
          %1428 = vmatprep.subr.mxu0 0.0
          %1429 = vmatpush1.msra.mxu0 0.0
          %1430 = vmatprep.subr.mxu0 0.0
          %1431 = vmatpush1.msra.mxu0 0.0
          %1432 = vmatprep.subr.mxu0 0.0
          %1433 = vmatpush1.msra.mxu0 0.0
          %1434 = vmatprep.subr.mxu0 0.0
          %1435 = vmatpush1.msra.mxu0 0.0
          %1436 = vmatprep.subr.mxu0 0.0
          %1437 = vmatpush1.msra.mxu0 0.0
          %1438 = vmatprep.subr.mxu0 0.0
          %1439 = vmatpush1.msra.mxu0 0.0
          %1440 = vmatprep.subr.mxu0 0.0
          %1441 = vmatpush1.msra.mxu0 0.0
          %1442 = vmatprep.subr.mxu0 0.0
          %1443 = vmatpush1.msra.mxu0 0.0
          %1444 = vmatprep.subr.mxu0 0.0
          %1445 = vmatpush1.msra.mxu0 0.0
          %1446 = vmatprep.subr.mxu0 0.0
          %1447 = vmatpush1.msra.mxu0 0.0
          %1448 = vmatprep.subr.mxu0 0.0
          %1449 = vmatpush1.msra.mxu0 0.0
          %1450 = vmatprep.subr.mxu0 0.0
          %1451 = vmatpush1.msra.mxu0 0.0
          %1452 = vmatprep.subr.mxu0 0.0
          %1453 = vmatpush1.msra.mxu0 0.0
          %1454 = vmatprep.subr.mxu0 0.0
          %1455 = vmatpush1.msra.mxu0 0.0
          %1456 = vmatprep.subr.mxu0 0.0
          %1457 = vmatpush1.msra.mxu0 0.0
          %1458 = vmatprep.subr.mxu0 0.0
          %1459 = vmatpush1.msra.mxu0 0.0
          %1460 = vmatprep.subr.mxu0 0.0
          %1461 = vmatpush1.msra.mxu0 0.0
          %1462 = vmatprep.subr.mxu0 0.0
          %1463 = vmatpush1.msra.mxu0 0.0
          %1464 = vmatprep.subr.mxu0 0.0
          %1465 = vmatpush1.msra.mxu0 0.0
          %1466 = vmatprep.subr.mxu0 0.0
          %1467 = vmatpush1.msra.mxu0 0.0
          %1468 = vmatprep.mubr.f32.mxu0 0.0
          %v1469 = vand.u32 %v1303, 4294901760
          %1470 = vmatmul.mubr.f32.gmra.mrb[0].mxu0 %v1469
          %v1471 = vpop.f32.mrb[0].mxu0
          %v1472 = vadd.f32 %v1381, %v1471
          %v1473 = vpop.f32.mrb[0].mxu0
          %1474 = vdwg.mxu0
          %1475 = vmatprep.subr.mxu0 0.0
          %v1476 = vand.u32 %v1296, 4294901760
          %v1477 = vsub.f32 %v1296, %v1476
          %1478 = vmatpush1.msra.mxu0 %v1477
          %1479 = vmatprep.subr.mxu0 0.0
          %v1480 = vand.u32 %v1297, 4294901760
          %v1481 = vsub.f32 %v1297, %v1480
          %1482 = vmatpush1.msra.mxu0 %v1481
          %1483 = vmatprep.subr.mxu0 0.0
          %v1484 = vand.u32 %v1298, 4294901760
          %v1485 = vsub.f32 %v1298, %v1484
          %1486 = vmatpush1.msra.mxu0 %v1485
          %1487 = vmatprep.subr.mxu0 0.0
          %v1488 = vand.u32 %v1299, 4294901760
          %v1489 = vsub.f32 %v1299, %v1488
          %1490 = vmatpush1.msra.mxu0 %v1489
          %1491 = vmatprep.subr.mxu0 0.0
          %1492 = vmatpush1.msra.mxu0 0.0
          %1493 = vmatprep.subr.mxu0 0.0
          %1494 = vmatpush1.msra.mxu0 0.0
          %1495 = vmatprep.subr.mxu0 0.0
          %1496 = vmatpush1.msra.mxu0 0.0
          %1497 = vmatprep.subr.mxu0 0.0
          %1498 = vmatpush1.msra.mxu0 0.0
          %1499 = vmatprep.subr.mxu0 0.0
          %1500 = vmatpush1.msra.mxu0 0.0
          %1501 = vmatprep.subr.mxu0 0.0
          %1502 = vmatpush1.msra.mxu0 0.0
          %1503 = vmatprep.subr.mxu0 0.0
          %1504 = vmatpush1.msra.mxu0 0.0
          %1505 = vmatprep.subr.mxu0 0.0
          %1506 = vmatpush1.msra.mxu0 0.0
          %1507 = vmatprep.subr.mxu0 0.0
          %1508 = vmatpush1.msra.mxu0 0.0
          %1509 = vmatprep.subr.mxu0 0.0
          %1510 = vmatpush1.msra.mxu0 0.0
          %1511 = vmatprep.subr.mxu0 0.0
          %1512 = vmatpush1.msra.mxu0 0.0
          %1513 = vmatprep.subr.mxu0 0.0
          %1514 = vmatpush1.msra.mxu0 0.0
          %1515 = vmatprep.subr.mxu0 0.0
          %1516 = vmatpush1.msra.mxu0 0.0
          %1517 = vmatprep.subr.mxu0 0.0
          %1518 = vmatpush1.msra.mxu0 0.0
          %1519 = vmatprep.subr.mxu0 0.0
          %1520 = vmatpush1.msra.mxu0 0.0
          %1521 = vmatprep.subr.mxu0 0.0
          %1522 = vmatpush1.msra.mxu0 0.0
          %1523 = vmatprep.subr.mxu0 0.0
          %1524 = vmatpush1.msra.mxu0 0.0
          %1525 = vmatprep.subr.mxu0 0.0
          %1526 = vmatpush1.msra.mxu0 0.0
          %1527 = vmatprep.subr.mxu0 0.0
          %1528 = vmatpush1.msra.mxu0 0.0
          %1529 = vmatprep.subr.mxu0 0.0
          %1530 = vmatpush1.msra.mxu0 0.0
          %1531 = vmatprep.subr.mxu0 0.0
          %1532 = vmatpush1.msra.mxu0 0.0
          %1533 = vmatprep.subr.mxu0 0.0
          %1534 = vmatpush1.msra.mxu0 0.0
          %1535 = vmatprep.subr.mxu0 0.0
          %1536 = vmatpush1.msra.mxu0 0.0
          %1537 = vmatprep.subr.mxu0 0.0
          %1538 = vmatpush1.msra.mxu0 0.0
          %1539 = vmatprep.subr.mxu0 0.0
          %1540 = vmatpush1.msra.mxu0 0.0
          %1541 = vmatprep.subr.mxu0 0.0
          %1542 = vmatpush1.msra.mxu0 0.0
          %1543 = vmatprep.subr.mxu0 0.0
          %1544 = vmatpush1.msra.mxu0 0.0
          %1545 = vmatprep.subr.mxu0 0.0
          %1546 = vmatpush1.msra.mxu0 0.0
          %1547 = vmatprep.mubr.f32.mxu0 0.0
          %v1548 = vand.u32 %v1303, 4294901760
          %v1549 = vsub.f32 %v1303, %v1548
          %1550 = vmatmul.mubr.f32.gmra.mrb[0].mxu0 %v1549
          %v1551 = vpop.f32.mrb[0].mxu0
          %v1552 = vadd.f32 %v1472, %v1551
          %v1553 = vpop.f32.mrb[0].mxu0
          %1554 = vdwg.mxu0
          %1555 = vmatprep.subr.mxu0 0.0
          %v1556 = vand.u32 %v1296, 4294901760
          %1557 = vmatpush1.msra.mxu0 %v1556
          %1558 = vmatprep.subr.mxu0 0.0
          %v1559 = vand.u32 %v1297, 4294901760
          %1560 = vmatpush1.msra.mxu0 %v1559
          %1561 = vmatprep.subr.mxu0 0.0
          %v1562 = vand.u32 %v1298, 4294901760
          %1563 = vmatpush1.msra.mxu0 %v1562
          %1564 = vmatprep.subr.mxu0 0.0
          %v1565 = vand.u32 %v1299, 4294901760
          %1566 = vmatpush1.msra.mxu0 %v1565
          %1567 = vmatprep.subr.mxu0 0.0
          %1568 = vmatpush1.msra.mxu0 0.0
          %1569 = vmatprep.subr.mxu0 0.0
          %1570 = vmatpush1.msra.mxu0 0.0
          %1571 = vmatprep.subr.mxu0 0.0
          %1572 = vmatpush1.msra.mxu0 0.0
          %1573 = vmatprep.subr.mxu0 0.0
          %1574 = vmatpush1.msra.mxu0 0.0
          %1575 = vmatprep.subr.mxu0 0.0
          %1576 = vmatpush1.msra.mxu0 0.0
          %1577 = vmatprep.subr.mxu0 0.0
          %1578 = vmatpush1.msra.mxu0 0.0
          %1579 = vmatprep.subr.mxu0 0.0
          %1580 = vmatpush1.msra.mxu0 0.0
          %1581 = vmatprep.subr.mxu0 0.0
          %1582 = vmatpush1.msra.mxu0 0.0
          %1583 = vmatprep.subr.mxu0 0.0
          %1584 = vmatpush1.msra.mxu0 0.0
          %1585 = vmatprep.subr.mxu0 0.0
          %1586 = vmatpush1.msra.mxu0 0.0
          %1587 = vmatprep.subr.mxu0 0.0
          %1588 = vmatpush1.msra.mxu0 0.0
          %1589 = vmatprep.subr.mxu0 0.0
          %1590 = vmatpush1.msra.mxu0 0.0
          %1591 = vmatprep.subr.mxu0 0.0
          %1592 = vmatpush1.msra.mxu0 0.0
          %1593 = vmatprep.subr.mxu0 0.0
          %1594 = vmatpush1.msra.mxu0 0.0
          %1595 = vmatprep.subr.mxu0 0.0
          %1596 = vmatpush1.msra.mxu0 0.0
          %1597 = vmatprep.subr.mxu0 0.0
          %1598 = vmatpush1.msra.mxu0 0.0
          %1599 = vmatprep.subr.mxu0 0.0
          %1600 = vmatpush1.msra.mxu0 0.0
          %1601 = vmatprep.subr.mxu0 0.0
          %1602 = vmatpush1.msra.mxu0 0.0
          %1603 = vmatprep.subr.mxu0 0.0
          %1604 = vmatpush1.msra.mxu0 0.0
          %1605 = vmatprep.subr.mxu0 0.0
          %1606 = vmatpush1.msra.mxu0 0.0
          %1607 = vmatprep.subr.mxu0 0.0
          %1608 = vmatpush1.msra.mxu0 0.0
          %1609 = vmatprep.subr.mxu0 0.0
          %1610 = vmatpush1.msra.mxu0 0.0
          %1611 = vmatprep.subr.mxu0 0.0
          %1612 = vmatpush1.msra.mxu0 0.0
          %1613 = vmatprep.subr.mxu0 0.0
          %1614 = vmatpush1.msra.mxu0 0.0
          %1615 = vmatprep.subr.mxu0 0.0
          %1616 = vmatpush1.msra.mxu0 0.0
          %1617 = vmatprep.subr.mxu0 0.0
          %1618 = vmatpush1.msra.mxu0 0.0
          %1619 = vmatprep.subr.mxu0 0.0
          %1620 = vmatpush1.msra.mxu0 0.0
          %1621 = vmatprep.subr.mxu0 0.0
          %1622 = vmatpush1.msra.mxu0 0.0
          %1623 = vmatprep.mubr.f32.mxu0 0.0
          %v1624 = vand.u32 %v1303, 4294901760
          %v1625 = vsub.f32 %v1303, %v1624
          %v1626 = vand.u32 %v1625, 4294901760
          %1627 = vmatmul.mubr.f32.gmra.mrb[0].mxu0 %v1626
          %v1628 = vpop.f32.mrb[0].mxu0
          %v1629 = vadd.f32 %v1552, %v1628
          %v1630 = vpop.f32.mrb[0].mxu0
          %1631 = vdwg.mxu0
          %1632 = vmatprep.subr.mxu0 0.0
          %v1633 = vand.u32 %v1296, 4294901760
          %v1634 = vsub.f32 %v1296, %v1633
          %v1635 = vand.u32 %v1634, 4294901760
          %1636 = vmatpush1.msra.mxu0 %v1635
          %1637 = vmatprep.subr.mxu0 0.0
          %v1638 = vand.u32 %v1297, 4294901760
          %v1639 = vsub.f32 %v1297, %v1638
          %v1640 = vand.u32 %v1639, 4294901760
          %1641 = vmatpush1.msra.mxu0 %v1640
          %1642 = vmatprep.subr.mxu0 0.0
          %v1643 = vand.u32 %v1298, 4294901760
          %v1644 = vsub.f32 %v1298, %v1643
          %v1645 = vand.u32 %v1644, 4294901760
          %1646 = vmatpush1.msra.mxu0 %v1645
          %1647 = vmatprep.subr.mxu0 0.0
          %v1648 = vand.u32 %v1299, 4294901760
          %v1649 = vsub.f32 %v1299, %v1648
          %v1650 = vand.u32 %v1649, 4294901760
          %1651 = vmatpush1.msra.mxu0 %v1650
          %1652 = vmatprep.subr.mxu0 0.0
          %1653 = vmatpush1.msra.mxu0 0.0
          %1654 = vmatprep.subr.mxu0 0.0
          %1655 = vmatpush1.msra.mxu0 0.0
          %1656 = vmatprep.subr.mxu0 0.0
          %1657 = vmatpush1.msra.mxu0 0.0
          %1658 = vmatprep.subr.mxu0 0.0
          %1659 = vmatpush1.msra.mxu0 0.0
          %1660 = vmatprep.subr.mxu0 0.0
          %1661 = vmatpush1.msra.mxu0 0.0
          %1662 = vmatprep.subr.mxu0 0.0
          %1663 = vmatpush1.msra.mxu0 0.0
          %1664 = vmatprep.subr.mxu0 0.0
          %1665 = vmatpush1.msra.mxu0 0.0
          %1666 = vmatprep.subr.mxu0 0.0
          %1667 = vmatpush1.msra.mxu0 0.0
          %1668 = vmatprep.subr.mxu0 0.0
          %1669 = vmatpush1.msra.mxu0 0.0
          %1670 = vmatprep.subr.mxu0 0.0
          %1671 = vmatpush1.msra.mxu0 0.0
          %1672 = vmatprep.subr.mxu0 0.0
          %1673 = vmatpush1.msra.mxu0 0.0
          %1674 = vmatprep.subr.mxu0 0.0
          %1675 = vmatpush1.msra.mxu0 0.0
          %1676 = vmatprep.subr.mxu0 0.0
          %1677 = vmatpush1.msra.mxu0 0.0
          %1678 = vmatprep.subr.mxu0 0.0
          %1679 = vmatpush1.msra.mxu0 0.0
          %1680 = vmatprep.subr.mxu0 0.0
          %1681 = vmatpush1.msra.mxu0 0.0
          %1682 = vmatprep.subr.mxu0 0.0
          %1683 = vmatpush1.msra.mxu0 0.0
          %1684 = vmatprep.subr.mxu0 0.0
          %1685 = vmatpush1.msra.mxu0 0.0
          %1686 = vmatprep.subr.mxu0 0.0
          %1687 = vmatpush1.msra.mxu0 0.0
          %1688 = vmatprep.subr.mxu0 0.0
          %1689 = vmatpush1.msra.mxu0 0.0
          %1690 = vmatprep.subr.mxu0 0.0
          %1691 = vmatpush1.msra.mxu0 0.0
          %1692 = vmatprep.subr.mxu0 0.0
          %1693 = vmatpush1.msra.mxu0 0.0
          %1694 = vmatprep.subr.mxu0 0.0
          %1695 = vmatpush1.msra.mxu0 0.0
          %1696 = vmatprep.subr.mxu0 0.0
          %1697 = vmatpush1.msra.mxu0 0.0
          %1698 = vmatprep.subr.mxu0 0.0
          %1699 = vmatpush1.msra.mxu0 0.0
          %1700 = vmatprep.subr.mxu0 0.0
          %1701 = vmatpush1.msra.mxu0 0.0
          %1702 = vmatprep.subr.mxu0 0.0
          %1703 = vmatpush1.msra.mxu0 0.0
          %1704 = vmatprep.subr.mxu0 0.0
          %1705 = vmatpush1.msra.mxu0 0.0
          %1706 = vmatprep.subr.mxu0 0.0
          %1707 = vmatpush1.msra.mxu0 0.0
          %1708 = vmatprep.mubr.f32.mxu0 0.0
          %v1709 = vand.u32 %v1303, 4294901760
          %1710 = vmatmul.mubr.f32.gmra.mrb[0].mxu0 %v1709
          %v1711 = vpop.f32.mrb[0].mxu0
          %v1712 = vadd.f32 %v1629, %v1711
          %v1713 = vpop.f32.mrb[0].mxu0
          %1714 = vdwg.mxu0
          %1715 = vmatprep.subr.mxu0 0.0
          %v1716 = vand.u32 %v1296, 4294901760
          %1717 = vmatpush1.msra.mxu0 %v1716
          %1718 = vmatprep.subr.mxu0 0.0
          %v1719 = vand.u32 %v1297, 4294901760
          %1720 = vmatpush1.msra.mxu0 %v1719
          %1721 = vmatprep.subr.mxu0 0.0
          %v1722 = vand.u32 %v1298, 4294901760
          %1723 = vmatpush1.msra.mxu0 %v1722
          %1724 = vmatprep.subr.mxu0 0.0
          %v1725 = vand.u32 %v1299, 4294901760
          %1726 = vmatpush1.msra.mxu0 %v1725
          %1727 = vmatprep.subr.mxu0 0.0
          %1728 = vmatpush1.msra.mxu0 0.0
          %1729 = vmatprep.subr.mxu0 0.0
          %1730 = vmatpush1.msra.mxu0 0.0
          %1731 = vmatprep.subr.mxu0 0.0
          %1732 = vmatpush1.msra.mxu0 0.0
          %1733 = vmatprep.subr.mxu0 0.0
          %1734 = vmatpush1.msra.mxu0 0.0
          %1735 = vmatprep.subr.mxu0 0.0
          %1736 = vmatpush1.msra.mxu0 0.0
          %1737 = vmatprep.subr.mxu0 0.0
          %1738 = vmatpush1.msra.mxu0 0.0
          %1739 = vmatprep.subr.mxu0 0.0
          %1740 = vmatpush1.msra.mxu0 0.0
          %1741 = vmatprep.subr.mxu0 0.0
          %1742 = vmatpush1.msra.mxu0 0.0
          %1743 = vmatprep.subr.mxu0 0.0
          %1744 = vmatpush1.msra.mxu0 0.0
          %1745 = vmatprep.subr.mxu0 0.0
          %1746 = vmatpush1.msra.mxu0 0.0
          %1747 = vmatprep.subr.mxu0 0.0
          %1748 = vmatpush1.msra.mxu0 0.0
          %1749 = vmatprep.subr.mxu0 0.0
          %1750 = vmatpush1.msra.mxu0 0.0
          %1751 = vmatprep.subr.mxu0 0.0
          %1752 = vmatpush1.msra.mxu0 0.0
          %1753 = vmatprep.subr.mxu0 0.0
          %1754 = vmatpush1.msra.mxu0 0.0
          %1755 = vmatprep.subr.mxu0 0.0
          %1756 = vmatpush1.msra.mxu0 0.0
          %1757 = vmatprep.subr.mxu0 0.0
          %1758 = vmatpush1.msra.mxu0 0.0
          %1759 = vmatprep.subr.mxu0 0.0
          %1760 = vmatpush1.msra.mxu0 0.0
          %1761 = vmatprep.subr.mxu0 0.0
          %1762 = vmatpush1.msra.mxu0 0.0
          %1763 = vmatprep.subr.mxu0 0.0
          %1764 = vmatpush1.msra.mxu0 0.0
          %1765 = vmatprep.subr.mxu0 0.0
          %1766 = vmatpush1.msra.mxu0 0.0
          %1767 = vmatprep.subr.mxu0 0.0
          %1768 = vmatpush1.msra.mxu0 0.0
          %1769 = vmatprep.subr.mxu0 0.0
          %1770 = vmatpush1.msra.mxu0 0.0
          %1771 = vmatprep.subr.mxu0 0.0
          %1772 = vmatpush1.msra.mxu0 0.0
          %1773 = vmatprep.subr.mxu0 0.0
          %1774 = vmatpush1.msra.mxu0 0.0
          %1775 = vmatprep.subr.mxu0 0.0
          %1776 = vmatpush1.msra.mxu0 0.0
          %1777 = vmatprep.subr.mxu0 0.0
          %1778 = vmatpush1.msra.mxu0 0.0
          %1779 = vmatprep.subr.mxu0 0.0
          %1780 = vmatpush1.msra.mxu0 0.0
          %1781 = vmatprep.subr.mxu0 0.0
          %1782 = vmatpush1.msra.mxu0 0.0
          %1783 = vmatprep.mubr.f32.mxu0 0.0
          %v1784 = vand.u32 %v1303, 4294901760
          %1785 = vmatmul.mubr.f32.gmra.mrb[0].mxu0 %v1784
          %v1786 = vpop.f32.mrb[0].mxu0
          %v1787 = vadd.f32 %v1712, %v1786
          %v1788 = vpop.f32.mrb[0].mxu0
          %1789 = vdwg.mxu0
          %v1790 = vmax.f32 %v1787, 0.0
          %v1791 = vld [vmem:[%s3] sm:$0xff]
          %v1792 = vld [vmem:[%s4] sm:$0x1]
          %vm1793 = vcmask 64512
          %v1795 = vsel %vm1793, %v1790, 0
          %1797 = vmatprep.subr.mxu0 0.0
          %v1798 = vand.u32 %v1791, 4294901760
          %1799 = vmatpush1.msra.mxu0 %v1798
          %1800 = vmatprep.subr.mxu0 0.0
          %1801 = vmatpush1.msra.mxu0 0.0
          %1802 = vmatprep.subr.mxu0 0.0
          %1803 = vmatpush1.msra.mxu0 0.0
          %1804 = vmatprep.subr.mxu0 0.0
          %1805 = vmatpush1.msra.mxu0 0.0
          %1806 = vmatprep.subr.mxu0 0.0
          %1807 = vmatpush1.msra.mxu0 0.0
          %1808 = vmatprep.subr.mxu0 0.0
          %1809 = vmatpush1.msra.mxu0 0.0
          %1810 = vmatprep.subr.mxu0 0.0
          %1811 = vmatpush1.msra.mxu0 0.0
          %1812 = vmatprep.subr.mxu0 0.0
          %1813 = vmatpush1.msra.mxu0 0.0
          %1814 = vmatprep.subr.mxu0 0.0
          %1815 = vmatpush1.msra.mxu0 0.0
          %1816 = vmatprep.subr.mxu0 0.0
          %1817 = vmatpush1.msra.mxu0 0.0
          %1818 = vmatprep.subr.mxu0 0.0
          %1819 = vmatpush1.msra.mxu0 0.0
          %1820 = vmatprep.subr.mxu0 0.0
          %1821 = vmatpush1.msra.mxu0 0.0
          %1822 = vmatprep.subr.mxu0 0.0
          %1823 = vmatpush1.msra.mxu0 0.0
          %1824 = vmatprep.subr.mxu0 0.0
          %1825 = vmatpush1.msra.mxu0 0.0
          %1826 = vmatprep.subr.mxu0 0.0
          %1827 = vmatpush1.msra.mxu0 0.0
          %1828 = vmatprep.subr.mxu0 0.0
          %1829 = vmatpush1.msra.mxu0 0.0
          %1830 = vmatprep.subr.mxu0 0.0
          %1831 = vmatpush1.msra.mxu0 0.0
          %1832 = vmatprep.subr.mxu0 0.0
          %1833 = vmatpush1.msra.mxu0 0.0
          %1834 = vmatprep.subr.mxu0 0.0
          %1835 = vmatpush1.msra.mxu0 0.0
          %1836 = vmatprep.subr.mxu0 0.0
          %1837 = vmatpush1.msra.mxu0 0.0
          %1838 = vmatprep.subr.mxu0 0.0
          %1839 = vmatpush1.msra.mxu0 0.0
          %1840 = vmatprep.subr.mxu0 0.0
          %1841 = vmatpush1.msra.mxu0 0.0
          %1842 = vmatprep.subr.mxu0 0.0
          %1843 = vmatpush1.msra.mxu0 0.0
          %1844 = vmatprep.subr.mxu0 0.0
          %1845 = vmatpush1.msra.mxu0 0.0
          %1846 = vmatprep.subr.mxu0 0.0
          %1847 = vmatpush1.msra.mxu0 0.0
          %1848 = vmatprep.subr.mxu0 0.0
          %1849 = vmatpush1.msra.mxu0 0.0
          %1850 = vmatprep.subr.mxu0 0.0
          %1851 = vmatpush1.msra.mxu0 0.0
          %1852 = vmatprep.subr.mxu0 0.0
          %1853 = vmatpush1.msra.mxu0 0.0
          %1854 = vmatprep.subr.mxu0 0.0
          %1855 = vmatpush1.msra.mxu0 0.0
          %1856 = vmatprep.subr.mxu0 0.0
          %1857 = vmatpush1.msra.mxu0 0.0
          %1858 = vmatprep.subr.mxu0 0.0
          %1859 = vmatpush1.msra.mxu0 0.0
          %1860 = vmatprep.subr.mxu0 0.0
          %1861 = vmatpush1.msra.mxu0 0.0
          %1862 = vmatprep.mubr.f32.mxu0 0.0
          %v1863 = vand.u32 %v1795, 4294901760
          %v1864 = vsub.f32 %v1795, %v1863
          %v1865 = vand.u32 %v1864, 4294901760
          %v1866 = vsub.f32 %v1864, %v1865
          %v1867 = vand.u32 %v1866, 4294901760
          %1868 = vmatmul.mubr.f32.gmra.mrb[0].mxu0 %v1867
          %v1869 = vpop.f32.mrb[0].mxu0
          %v1870 = vadd.f32 %v1792, %v1869
          %v1871 = vpop.f32.mrb[0].mxu0
          %1872 = vdwg.mxu0
          %1873 = vmatprep.subr.mxu0 0.0
          %v1874 = vand.u32 %v1791, 4294901760
          %v1875 = vsub.f32 %v1791, %v1874
          %v1876 = vand.u32 %v1875, 4294901760
          %v1877 = vsub.f32 %v1875, %v1876
          %v1878 = vand.u32 %v1877, 4294901760
          %1879 = vmatpush1.msra.mxu0 %v1878
          %1880 = vmatprep.subr.mxu0 0.0
          %1881 = vmatpush1.msra.mxu0 0.0
          %1882 = vmatprep.subr.mxu0 0.0
          %1883 = vmatpush1.msra.mxu0 0.0
          %1884 = vmatprep.subr.mxu0 0.0
          %1885 = vmatpush1.msra.mxu0 0.0
          %1886 = vmatprep.subr.mxu0 0.0
          %1887 = vmatpush1.msra.mxu0 0.0
          %1888 = vmatprep.subr.mxu0 0.0
          %1889 = vmatpush1.msra.mxu0 0.0
          %1890 = vmatprep.subr.mxu0 0.0
          %1891 = vmatpush1.msra.mxu0 0.0
          %1892 = vmatprep.subr.mxu0 0.0
          %1893 = vmatpush1.msra.mxu0 0.0
          %1894 = vmatprep.subr.mxu0 0.0
          %1895 = vmatpush1.msra.mxu0 0.0
          %1896 = vmatprep.subr.mxu0 0.0
          %1897 = vmatpush1.msra.mxu0 0.0
          %1898 = vmatprep.subr.mxu0 0.0
          %1899 = vmatpush1.msra.mxu0 0.0
          %1900 = vmatprep.subr.mxu0 0.0
          %1901 = vmatpush1.msra.mxu0 0.0
          %1902 = vmatprep.subr.mxu0 0.0
          %1903 = vmatpush1.msra.mxu0 0.0
          %1904 = vmatprep.subr.mxu0 0.0
          %1905 = vmatpush1.msra.mxu0 0.0
          %1906 = vmatprep.subr.mxu0 0.0
          %1907 = vmatpush1.msra.mxu0 0.0
          %1908 = vmatprep.subr.mxu0 0.0
          %1909 = vmatpush1.msra.mxu0 0.0
          %1910 = vmatprep.subr.mxu0 0.0
          %1911 = vmatpush1.msra.mxu0 0.0
          %1912 = vmatprep.subr.mxu0 0.0
          %1913 = vmatpush1.msra.mxu0 0.0
          %1914 = vmatprep.subr.mxu0 0.0
          %1915 = vmatpush1.msra.mxu0 0.0
          %1916 = vmatprep.subr.mxu0 0.0
          %1917 = vmatpush1.msra.mxu0 0.0
          %1918 = vmatprep.subr.mxu0 0.0
          %1919 = vmatpush1.msra.mxu0 0.0
          %1920 = vmatprep.subr.mxu0 0.0
          %1921 = vmatpush1.msra.mxu0 0.0
          %1922 = vmatprep.subr.mxu0 0.0
          %1923 = vmatpush1.msra.mxu0 0.0
          %1924 = vmatprep.subr.mxu0 0.0
          %1925 = vmatpush1.msra.mxu0 0.0
          %1926 = vmatprep.subr.mxu0 0.0
          %1927 = vmatpush1.msra.mxu0 0.0
          %1928 = vmatprep.subr.mxu0 0.0
          %1929 = vmatpush1.msra.mxu0 0.0
          %1930 = vmatprep.subr.mxu0 0.0
          %1931 = vmatpush1.msra.mxu0 0.0
          %1932 = vmatprep.subr.mxu0 0.0
          %1933 = vmatpush1.msra.mxu0 0.0
          %1934 = vmatprep.subr.mxu0 0.0
          %1935 = vmatpush1.msra.mxu0 0.0
          %1936 = vmatprep.subr.mxu0 0.0
          %1937 = vmatpush1.msra.mxu0 0.0
          %1938 = vmatprep.subr.mxu0 0.0
          %1939 = vmatpush1.msra.mxu0 0.0
          %1940 = vmatprep.subr.mxu0 0.0
          %1941 = vmatpush1.msra.mxu0 0.0
          %1942 = vmatprep.mubr.f32.mxu0 0.0
          %v1943 = vand.u32 %v1795, 4294901760
          %1944 = vmatmul.mubr.f32.gmra.mrb[0].mxu0 %v1943
          %v1945 = vpop.f32.mrb[0].mxu0
          %v1946 = vadd.f32 %v1870, %v1945
          %v1947 = vpop.f32.mrb[0].mxu0
          %1948 = vdwg.mxu0
          %1949 = vmatprep.subr.mxu0 0.0
          %v1950 = vand.u32 %v1791, 4294901760
          %v1951 = vsub.f32 %v1791, %v1950
          %1952 = vmatpush1.msra.mxu0 %v1951
          %1953 = vmatprep.subr.mxu0 0.0
          %1954 = vmatpush1.msra.mxu0 0.0
          %1955 = vmatprep.subr.mxu0 0.0
          %1956 = vmatpush1.msra.mxu0 0.0
          %1957 = vmatprep.subr.mxu0 0.0
          %1958 = vmatpush1.msra.mxu0 0.0
          %1959 = vmatprep.subr.mxu0 0.0
          %1960 = vmatpush1.msra.mxu0 0.0
          %1961 = vmatprep.subr.mxu0 0.0
          %1962 = vmatpush1.msra.mxu0 0.0
          %1963 = vmatprep.subr.mxu0 0.0
          %1964 = vmatpush1.msra.mxu0 0.0
          %1965 = vmatprep.subr.mxu0 0.0
          %1966 = vmatpush1.msra.mxu0 0.0
          %1967 = vmatprep.subr.mxu0 0.0
          %1968 = vmatpush1.msra.mxu0 0.0
          %1969 = vmatprep.subr.mxu0 0.0
          %1970 = vmatpush1.msra.mxu0 0.0
          %1971 = vmatprep.subr.mxu0 0.0
          %1972 = vmatpush1.msra.mxu0 0.0
          %1973 = vmatprep.subr.mxu0 0.0
          %1974 = vmatpush1.msra.mxu0 0.0
          %1975 = vmatprep.subr.mxu0 0.0
          %1976 = vmatpush1.msra.mxu0 0.0
          %1977 = vmatprep.subr.mxu0 0.0
          %1978 = vmatpush1.msra.mxu0 0.0
          %1979 = vmatprep.subr.mxu0 0.0
          %1980 = vmatpush1.msra.mxu0 0.0
          %1981 = vmatprep.subr.mxu0 0.0
          %1982 = vmatpush1.msra.mxu0 0.0
          %1983 = vmatprep.subr.mxu0 0.0
          %1984 = vmatpush1.msra.mxu0 0.0
          %1985 = vmatprep.subr.mxu0 0.0
          %1986 = vmatpush1.msra.mxu0 0.0
          %1987 = vmatprep.subr.mxu0 0.0
          %1988 = vmatpush1.msra.mxu0 0.0
          %1989 = vmatprep.subr.mxu0 0.0
          %1990 = vmatpush1.msra.mxu0 0.0
          %1991 = vmatprep.subr.mxu0 0.0
          %1992 = vmatpush1.msra.mxu0 0.0
          %1993 = vmatprep.subr.mxu0 0.0
          %1994 = vmatpush1.msra.mxu0 0.0
          %1995 = vmatprep.subr.mxu0 0.0
          %1996 = vmatpush1.msra.mxu0 0.0
          %1997 = vmatprep.subr.mxu0 0.0
          %1998 = vmatpush1.msra.mxu0 0.0
          %1999 = vmatprep.subr.mxu0 0.0
          %2000 = vmatpush1.msra.mxu0 0.0
          %2001 = vmatprep.subr.mxu0 0.0
          %2002 = vmatpush1.msra.mxu0 0.0
          %2003 = vmatprep.subr.mxu0 0.0
          %2004 = vmatpush1.msra.mxu0 0.0
          %2005 = vmatprep.subr.mxu0 0.0
          %2006 = vmatpush1.msra.mxu0 0.0
          %2007 = vmatprep.subr.mxu0 0.0
          %2008 = vmatpush1.msra.mxu0 0.0
          %2009 = vmatprep.subr.mxu0 0.0
          %2010 = vmatpush1.msra.mxu0 0.0
          %2011 = vmatprep.subr.mxu0 0.0
          %2012 = vmatpush1.msra.mxu0 0.0
          %2013 = vmatprep.subr.mxu0 0.0
          %2014 = vmatpush1.msra.mxu0 0.0
          %2015 = vmatprep.mubr.f32.mxu0 0.0
          %v2016 = vand.u32 %v1795, 4294901760
          %v2017 = vsub.f32 %v1795, %v2016
          %2018 = vmatmul.mubr.f32.gmra.mrb[0].mxu0 %v2017
          %v2019 = vpop.f32.mrb[0].mxu0
          %v2020 = vadd.f32 %v1946, %v2019
          %v2021 = vpop.f32.mrb[0].mxu0
          %2022 = vdwg.mxu0
          %2023 = vmatprep.subr.mxu0 0.0
          %v2024 = vand.u32 %v1791, 4294901760
          %2025 = vmatpush1.msra.mxu0 %v2024
          %2026 = vmatprep.subr.mxu0 0.0
          %2027 = vmatpush1.msra.mxu0 0.0
          %2028 = vmatprep.subr.mxu0 0.0
          %2029 = vmatpush1.msra.mxu0 0.0
          %2030 = vmatprep.subr.mxu0 0.0
          %2031 = vmatpush1.msra.mxu0 0.0
          %2032 = vmatprep.subr.mxu0 0.0
          %2033 = vmatpush1.msra.mxu0 0.0
          %2034 = vmatprep.subr.mxu0 0.0
          %2035 = vmatpush1.msra.mxu0 0.0
          %2036 = vmatprep.subr.mxu0 0.0
          %2037 = vmatpush1.msra.mxu0 0.0
          %2038 = vmatprep.subr.mxu0 0.0
          %2039 = vmatpush1.msra.mxu0 0.0
          %2040 = vmatprep.subr.mxu0 0.0
          %2041 = vmatpush1.msra.mxu0 0.0
          %2042 = vmatprep.subr.mxu0 0.0
          %2043 = vmatpush1.msra.mxu0 0.0
          %2044 = vmatprep.subr.mxu0 0.0
          %2045 = vmatpush1.msra.mxu0 0.0
          %2046 = vmatprep.subr.mxu0 0.0
          %2047 = vmatpush1.msra.mxu0 0.0
          %2048 = vmatprep.subr.mxu0 0.0
          %2049 = vmatpush1.msra.mxu0 0.0
          %2050 = vmatprep.subr.mxu0 0.0
          %2051 = vmatpush1.msra.mxu0 0.0
          %2052 = vmatprep.subr.mxu0 0.0
          %2053 = vmatpush1.msra.mxu0 0.0
          %2054 = vmatprep.subr.mxu0 0.0
          %2055 = vmatpush1.msra.mxu0 0.0
          %2056 = vmatprep.subr.mxu0 0.0
          %2057 = vmatpush1.msra.mxu0 0.0
          %2058 = vmatprep.subr.mxu0 0.0
          %2059 = vmatpush1.msra.mxu0 0.0
          %2060 = vmatprep.subr.mxu0 0.0
          %2061 = vmatpush1.msra.mxu0 0.0
          %2062 = vmatprep.subr.mxu0 0.0
          %2063 = vmatpush1.msra.mxu0 0.0
          %2064 = vmatprep.subr.mxu0 0.0
          %2065 = vmatpush1.msra.mxu0 0.0
          %2066 = vmatprep.subr.mxu0 0.0
          %2067 = vmatpush1.msra.mxu0 0.0
          %2068 = vmatprep.subr.mxu0 0.0
          %2069 = vmatpush1.msra.mxu0 0.0
          %2070 = vmatprep.subr.mxu0 0.0
          %2071 = vmatpush1.msra.mxu0 0.0
          %2072 = vmatprep.subr.mxu0 0.0
          %2073 = vmatpush1.msra.mxu0 0.0
          %2074 = vmatprep.subr.mxu0 0.0
          %2075 = vmatpush1.msra.mxu0 0.0
          %2076 = vmatprep.subr.mxu0 0.0
          %2077 = vmatpush1.msra.mxu0 0.0
          %2078 = vmatprep.subr.mxu0 0.0
          %2079 = vmatpush1.msra.mxu0 0.0
          %2080 = vmatprep.subr.mxu0 0.0
          %2081 = vmatpush1.msra.mxu0 0.0
          %2082 = vmatprep.subr.mxu0 0.0
          %2083 = vmatpush1.msra.mxu0 0.0
          %2084 = vmatprep.subr.mxu0 0.0
          %2085 = vmatpush1.msra.mxu0 0.0
          %2086 = vmatprep.subr.mxu0 0.0
          %2087 = vmatpush1.msra.mxu0 0.0
          %2088 = vmatprep.mubr.f32.mxu0 0.0
          %v2089 = vand.u32 %v1795, 4294901760
          %v2090 = vsub.f32 %v1795, %v2089
          %v2091 = vand.u32 %v2090, 4294901760
          %2092 = vmatmul.mubr.f32.gmra.mrb[0].mxu0 %v2091
          %v2093 = vpop.f32.mrb[0].mxu0
          %v2094 = vadd.f32 %v2020, %v2093
          %v2095 = vpop.f32.mrb[0].mxu0
          %2096 = vdwg.mxu0
          %2097 = vmatprep.subr.mxu0 0.0
          %v2098 = vand.u32 %v1791, 4294901760
          %v2099 = vsub.f32 %v1791, %v2098
          %v2100 = vand.u32 %v2099, 4294901760
          %2101 = vmatpush1.msra.mxu0 %v2100
          %2102 = vmatprep.subr.mxu0 0.0
          %2103 = vmatpush1.msra.mxu0 0.0
          %2104 = vmatprep.subr.mxu0 0.0
          %2105 = vmatpush1.msra.mxu0 0.0
          %2106 = vmatprep.subr.mxu0 0.0
          %2107 = vmatpush1.msra.mxu0 0.0
          %2108 = vmatprep.subr.mxu0 0.0
          %2109 = vmatpush1.msra.mxu0 0.0
          %2110 = vmatprep.subr.mxu0 0.0
          %2111 = vmatpush1.msra.mxu0 0.0
          %2112 = vmatprep.subr.mxu0 0.0
          %2113 = vmatpush1.msra.mxu0 0.0
          %2114 = vmatprep.subr.mxu0 0.0
          %2115 = vmatpush1.msra.mxu0 0.0
          %2116 = vmatprep.subr.mxu0 0.0
          %2117 = vmatpush1.msra.mxu0 0.0
          %2118 = vmatprep.subr.mxu0 0.0
          %2119 = vmatpush1.msra.mxu0 0.0
          %2120 = vmatprep.subr.mxu0 0.0
          %2121 = vmatpush1.msra.mxu0 0.0
          %2122 = vmatprep.subr.mxu0 0.0
          %2123 = vmatpush1.msra.mxu0 0.0
          %2124 = vmatprep.subr.mxu0 0.0
          %2125 = vmatpush1.msra.mxu0 0.0
          %2126 = vmatprep.subr.mxu0 0.0
          %2127 = vmatpush1.msra.mxu0 0.0
          %2128 = vmatprep.subr.mxu0 0.0
          %2129 = vmatpush1.msra.mxu0 0.0
          %2130 = vmatprep.subr.mxu0 0.0
          %2131 = vmatpush1.msra.mxu0 0.0
          %2132 = vmatprep.subr.mxu0 0.0
          %2133 = vmatpush1.msra.mxu0 0.0
          %2134 = vmatprep.subr.mxu0 0.0
          %2135 = vmatpush1.msra.mxu0 0.0
          %2136 = vmatprep.subr.mxu0 0.0
          %2137 = vmatpush1.msra.mxu0 0.0
          %2138 = vmatprep.subr.mxu0 0.0
          %2139 = vmatpush1.msra.mxu0 0.0
          %2140 = vmatprep.subr.mxu0 0.0
          %2141 = vmatpush1.msra.mxu0 0.0
          %2142 = vmatprep.subr.mxu0 0.0
          %2143 = vmatpush1.msra.mxu0 0.0
          %2144 = vmatprep.subr.mxu0 0.0
          %2145 = vmatpush1.msra.mxu0 0.0
          %2146 = vmatprep.subr.mxu0 0.0
          %2147 = vmatpush1.msra.mxu0 0.0
          %2148 = vmatprep.subr.mxu0 0.0
          %2149 = vmatpush1.msra.mxu0 0.0
          %2150 = vmatprep.subr.mxu0 0.0
          %2151 = vmatpush1.msra.mxu0 0.0
          %2152 = vmatprep.subr.mxu0 0.0
          %2153 = vmatpush1.msra.mxu0 0.0
          %2154 = vmatprep.subr.mxu0 0.0
          %2155 = vmatpush1.msra.mxu0 0.0
          %2156 = vmatprep.subr.mxu0 0.0
          %2157 = vmatpush1.msra.mxu0 0.0
          %2158 = vmatprep.subr.mxu0 0.0
          %2159 = vmatpush1.msra.mxu0 0.0
          %2160 = vmatprep.subr.mxu0 0.0
          %2161 = vmatpush1.msra.mxu0 0.0
          %2162 = vmatprep.subr.mxu0 0.0
          %2163 = vmatpush1.msra.mxu0 0.0
          %2164 = vmatprep.mubr.f32.mxu0 0.0
          %v2165 = vand.u32 %v1795, 4294901760
          %2166 = vmatmul.mubr.f32.gmra.mrb[0].mxu0 %v2165
          %v2167 = vpop.f32.mrb[0].mxu0
          %v2168 = vadd.f32 %v2094, %v2167
          %v2169 = vpop.f32.mrb[0].mxu0
          %2170 = vdwg.mxu0
          %2171 = vmatprep.subr.mxu0 0.0
          %v2172 = vand.u32 %v1791, 4294901760
          %2173 = vmatpush1.msra.mxu0 %v2172
          %2174 = vmatprep.subr.mxu0 0.0
          %2175 = vmatpush1.msra.mxu0 0.0
          %2176 = vmatprep.subr.mxu0 0.0
          %2177 = vmatpush1.msra.mxu0 0.0
          %2178 = vmatprep.subr.mxu0 0.0
          %2179 = vmatpush1.msra.mxu0 0.0
          %2180 = vmatprep.subr.mxu0 0.0
          %2181 = vmatpush1.msra.mxu0 0.0
          %2182 = vmatprep.subr.mxu0 0.0
          %2183 = vmatpush1.msra.mxu0 0.0
          %2184 = vmatprep.subr.mxu0 0.0
          %2185 = vmatpush1.msra.mxu0 0.0
          %2186 = vmatprep.subr.mxu0 0.0
          %2187 = vmatpush1.msra.mxu0 0.0
          %2188 = vmatprep.subr.mxu0 0.0
          %2189 = vmatpush1.msra.mxu0 0.0
          %2190 = vmatprep.subr.mxu0 0.0
          %2191 = vmatpush1.msra.mxu0 0.0
          %2192 = vmatprep.subr.mxu0 0.0
          %2193 = vmatpush1.msra.mxu0 0.0
          %2194 = vmatprep.subr.mxu0 0.0
          %2195 = vmatpush1.msra.mxu0 0.0
          %2196 = vmatprep.subr.mxu0 0.0
          %2197 = vmatpush1.msra.mxu0 0.0
          %2198 = vmatprep.subr.mxu0 0.0
          %2199 = vmatpush1.msra.mxu0 0.0
          %2200 = vmatprep.subr.mxu0 0.0
          %2201 = vmatpush1.msra.mxu0 0.0
          %2202 = vmatprep.subr.mxu0 0.0
          %2203 = vmatpush1.msra.mxu0 0.0
          %2204 = vmatprep.subr.mxu0 0.0
          %2205 = vmatpush1.msra.mxu0 0.0
          %2206 = vmatprep.subr.mxu0 0.0
          %2207 = vmatpush1.msra.mxu0 0.0
          %2208 = vmatprep.subr.mxu0 0.0
          %2209 = vmatpush1.msra.mxu0 0.0
          %2210 = vmatprep.subr.mxu0 0.0
          %2211 = vmatpush1.msra.mxu0 0.0
          %2212 = vmatprep.subr.mxu0 0.0
          %2213 = vmatpush1.msra.mxu0 0.0
          %2214 = vmatprep.subr.mxu0 0.0
          %2215 = vmatpush1.msra.mxu0 0.0
          %2216 = vmatprep.subr.mxu0 0.0
          %2217 = vmatpush1.msra.mxu0 0.0
          %2218 = vmatprep.subr.mxu0 0.0
          %2219 = vmatpush1.msra.mxu0 0.0
          %2220 = vmatprep.subr.mxu0 0.0
          %2221 = vmatpush1.msra.mxu0 0.0
          %2222 = vmatprep.subr.mxu0 0.0
          %2223 = vmatpush1.msra.mxu0 0.0
          %2224 = vmatprep.subr.mxu0 0.0
          %2225 = vmatpush1.msra.mxu0 0.0
          %2226 = vmatprep.subr.mxu0 0.0
          %2227 = vmatpush1.msra.mxu0 0.0
          %2228 = vmatprep.subr.mxu0 0.0
          %2229 = vmatpush1.msra.mxu0 0.0
          %2230 = vmatprep.subr.mxu0 0.0
          %2231 = vmatpush1.msra.mxu0 0.0
          %2232 = vmatprep.subr.mxu0 0.0
          %2233 = vmatpush1.msra.mxu0 0.0
          %2234 = vmatprep.subr.mxu0 0.0
          %2235 = vmatpush1.msra.mxu0 0.0
          %2236 = vmatprep.mubr.f32.mxu0 0.0
          %v2237 = vand.u32 %v1795, 4294901760
          %2238 = vmatmul.mubr.f32.gmra.mrb[0].mxu0 %v2237
          %v2239 = vpop.f32.mrb[0].mxu0
          %v2240 = vadd.f32 %v2168, %v2239
          %v2241 = vpop.f32.mrb[0].mxu0
          %2242 = vdwg.mxu0
          %v2244 = vsel %vm1301, %v1295, 0
          %2246 = vmatprep.subr.mxu0 0.0
          %v2247 = vand.u32 %v1296, 4294901760
          %2248 = vmatpush1.msra.mxu0 %v2247
          %2249 = vmatprep.subr.mxu0 0.0
          %v2250 = vand.u32 %v1297, 4294901760
          %2251 = vmatpush1.msra.mxu0 %v2250
          %2252 = vmatprep.subr.mxu0 0.0
          %v2253 = vand.u32 %v1298, 4294901760
          %2254 = vmatpush1.msra.mxu0 %v2253
          %2255 = vmatprep.subr.mxu0 0.0
          %v2256 = vand.u32 %v1299, 4294901760
          %2257 = vmatpush1.msra.mxu0 %v2256
          %2258 = vmatprep.subr.mxu0 0.0
          %2259 = vmatpush1.msra.mxu0 0.0
          %2260 = vmatprep.subr.mxu0 0.0
          %2261 = vmatpush1.msra.mxu0 0.0
          %2262 = vmatprep.subr.mxu0 0.0
          %2263 = vmatpush1.msra.mxu0 0.0
          %2264 = vmatprep.subr.mxu0 0.0
          %2265 = vmatpush1.msra.mxu0 0.0
          %2266 = vmatprep.subr.mxu0 0.0
          %2267 = vmatpush1.msra.mxu0 0.0
          %2268 = vmatprep.subr.mxu0 0.0
          %2269 = vmatpush1.msra.mxu0 0.0
          %2270 = vmatprep.subr.mxu0 0.0
          %2271 = vmatpush1.msra.mxu0 0.0
          %2272 = vmatprep.subr.mxu0 0.0
          %2273 = vmatpush1.msra.mxu0 0.0
          %2274 = vmatprep.subr.mxu0 0.0
          %2275 = vmatpush1.msra.mxu0 0.0
          %2276 = vmatprep.subr.mxu0 0.0
          %2277 = vmatpush1.msra.mxu0 0.0
          %2278 = vmatprep.subr.mxu0 0.0
          %2279 = vmatpush1.msra.mxu0 0.0
          %2280 = vmatprep.subr.mxu0 0.0
          %2281 = vmatpush1.msra.mxu0 0.0
          %2282 = vmatprep.subr.mxu0 0.0
          %2283 = vmatpush1.msra.mxu0 0.0
          %2284 = vmatprep.subr.mxu0 0.0
          %2285 = vmatpush1.msra.mxu0 0.0
          %2286 = vmatprep.subr.mxu0 0.0
          %2287 = vmatpush1.msra.mxu0 0.0
          %2288 = vmatprep.subr.mxu0 0.0
          %2289 = vmatpush1.msra.mxu0 0.0
          %2290 = vmatprep.subr.mxu0 0.0
          %2291 = vmatpush1.msra.mxu0 0.0
          %2292 = vmatprep.subr.mxu0 0.0
          %2293 = vmatpush1.msra.mxu0 0.0
          %2294 = vmatprep.subr.mxu0 0.0
          %2295 = vmatpush1.msra.mxu0 0.0
          %2296 = vmatprep.subr.mxu0 0.0
          %2297 = vmatpush1.msra.mxu0 0.0
          %2298 = vmatprep.subr.mxu0 0.0
          %2299 = vmatpush1.msra.mxu0 0.0
          %2300 = vmatprep.subr.mxu0 0.0
          %2301 = vmatpush1.msra.mxu0 0.0
          %2302 = vmatprep.subr.mxu0 0.0
          %2303 = vmatpush1.msra.mxu0 0.0
          %2304 = vmatprep.subr.mxu0 0.0
          %2305 = vmatpush1.msra.mxu0 0.0
          %2306 = vmatprep.subr.mxu0 0.0
          %2307 = vmatpush1.msra.mxu0 0.0
          %2308 = vmatprep.subr.mxu0 0.0
          %2309 = vmatpush1.msra.mxu0 0.0
          %2310 = vmatprep.subr.mxu0 0.0
          %2311 = vmatpush1.msra.mxu0 0.0
          %2312 = vmatprep.subr.mxu0 0.0
          %2313 = vmatpush1.msra.mxu0 0.0
          %2314 = vmatprep.mubr.f32.mxu0 0.0
          %v2315 = vand.u32 %v2244, 4294901760
          %v2316 = vsub.f32 %v2244, %v2315
          %v2317 = vand.u32 %v2316, 4294901760
          %v2318 = vsub.f32 %v2316, %v2317
          %v2319 = vand.u32 %v2318, 4294901760
          %2320 = vmatmul.mubr.f32.gmra.mrb[0].mxu0 %v2319
          %v2321 = vpop.f32.mrb[0].mxu0
          %v2322 = vadd.f32 %v1300, %v2321
          %v2323 = vpop.f32.mrb[0].mxu0
          %2324 = vdwg.mxu0
          %2325 = vmatprep.subr.mxu0 0.0
          %v2326 = vand.u32 %v1296, 4294901760
          %v2327 = vsub.f32 %v1296, %v2326
          %v2328 = vand.u32 %v2327, 4294901760
          %v2329 = vsub.f32 %v2327, %v2328
          %v2330 = vand.u32 %v2329, 4294901760
          %2331 = vmatpush1.msra.mxu0 %v2330
          %2332 = vmatprep.subr.mxu0 0.0
          %v2333 = vand.u32 %v1297, 4294901760
          %v2334 = vsub.f32 %v1297, %v2333
          %v2335 = vand.u32 %v2334, 4294901760
          %v2336 = vsub.f32 %v2334, %v2335
          %v2337 = vand.u32 %v2336, 4294901760
          %2338 = vmatpush1.msra.mxu0 %v2337
          %2339 = vmatprep.subr.mxu0 0.0
          %v2340 = vand.u32 %v1298, 4294901760
          %v2341 = vsub.f32 %v1298, %v2340
          %v2342 = vand.u32 %v2341, 4294901760
          %v2343 = vsub.f32 %v2341, %v2342
          %v2344 = vand.u32 %v2343, 4294901760
          %2345 = vmatpush1.msra.mxu0 %v2344
          %2346 = vmatprep.subr.mxu0 0.0
          %v2347 = vand.u32 %v1299, 4294901760
          %v2348 = vsub.f32 %v1299, %v2347
          %v2349 = vand.u32 %v2348, 4294901760
          %v2350 = vsub.f32 %v2348, %v2349
          %v2351 = vand.u32 %v2350, 4294901760
          %2352 = vmatpush1.msra.mxu0 %v2351
          %2353 = vmatprep.subr.mxu0 0.0
          %2354 = vmatpush1.msra.mxu0 0.0
          %2355 = vmatprep.subr.mxu0 0.0
          %2356 = vmatpush1.msra.mxu0 0.0
          %2357 = vmatprep.subr.mxu0 0.0
          %2358 = vmatpush1.msra.mxu0 0.0
          %2359 = vmatprep.subr.mxu0 0.0
          %2360 = vmatpush1.msra.mxu0 0.0
          %2361 = vmatprep.subr.mxu0 0.0
          %2362 = vmatpush1.msra.mxu0 0.0
          %2363 = vmatprep.subr.mxu0 0.0
          %2364 = vmatpush1.msra.mxu0 0.0
          %2365 = vmatprep.subr.mxu0 0.0
          %2366 = vmatpush1.msra.mxu0 0.0
          %2367 = vmatprep.subr.mxu0 0.0
          %2368 = vmatpush1.msra.mxu0 0.0
          %2369 = vmatprep.subr.mxu0 0.0
          %2370 = vmatpush1.msra.mxu0 0.0
          %2371 = vmatprep.subr.mxu0 0.0
          %2372 = vmatpush1.msra.mxu0 0.0
          %2373 = vmatprep.subr.mxu0 0.0
          %2374 = vmatpush1.msra.mxu0 0.0
          %2375 = vmatprep.subr.mxu0 0.0
          %2376 = vmatpush1.msra.mxu0 0.0
          %2377 = vmatprep.subr.mxu0 0.0
          %2378 = vmatpush1.msra.mxu0 0.0
          %2379 = vmatprep.subr.mxu0 0.0
          %2380 = vmatpush1.msra.mxu0 0.0
          %2381 = vmatprep.subr.mxu0 0.0
          %2382 = vmatpush1.msra.mxu0 0.0
          %2383 = vmatprep.subr.mxu0 0.0
          %2384 = vmatpush1.msra.mxu0 0.0
          %2385 = vmatprep.subr.mxu0 0.0
          %2386 = vmatpush1.msra.mxu0 0.0
          %2387 = vmatprep.subr.mxu0 0.0
          %2388 = vmatpush1.msra.mxu0 0.0
          %2389 = vmatprep.subr.mxu0 0.0
          %2390 = vmatpush1.msra.mxu0 0.0
          %2391 = vmatprep.subr.mxu0 0.0
          %2392 = vmatpush1.msra.mxu0 0.0
          %2393 = vmatprep.subr.mxu0 0.0
          %2394 = vmatpush1.msra.mxu0 0.0
          %2395 = vmatprep.subr.mxu0 0.0
          %2396 = vmatpush1.msra.mxu0 0.0
          %2397 = vmatprep.subr.mxu0 0.0
          %2398 = vmatpush1.msra.mxu0 0.0
          %2399 = vmatprep.subr.mxu0 0.0
          %2400 = vmatpush1.msra.mxu0 0.0
          %2401 = vmatprep.subr.mxu0 0.0
          %2402 = vmatpush1.msra.mxu0 0.0
          %2403 = vmatprep.subr.mxu0 0.0
          %2404 = vmatpush1.msra.mxu0 0.0
          %2405 = vmatprep.subr.mxu0 0.0
          %2406 = vmatpush1.msra.mxu0 0.0
          %2407 = vmatprep.subr.mxu0 0.0
          %2408 = vmatpush1.msra.mxu0 0.0
          %2409 = vmatprep.mubr.f32.mxu0 0.0
          %v2410 = vand.u32 %v2244, 4294901760
          %2411 = vmatmul.mubr.f32.gmra.mrb[0].mxu0 %v2410
          %v2412 = vpop.f32.mrb[0].mxu0
          %v2413 = vadd.f32 %v2322, %v2412
          %v2414 = vpop.f32.mrb[0].mxu0
          %2415 = vdwg.mxu0
          %2416 = vmatprep.subr.mxu0 0.0
          %v2417 = vand.u32 %v1296, 4294901760
          %v2418 = vsub.f32 %v1296, %v2417
          %2419 = vmatpush1.msra.mxu0 %v2418
          %2420 = vmatprep.subr.mxu0 0.0
          %v2421 = vand.u32 %v1297, 4294901760
          %v2422 = vsub.f32 %v1297, %v2421
          %2423 = vmatpush1.msra.mxu0 %v2422
          %2424 = vmatprep.subr.mxu0 0.0
          %v2425 = vand.u32 %v1298, 4294901760
          %v2426 = vsub.f32 %v1298, %v2425
          %2427 = vmatpush1.msra.mxu0 %v2426
          %2428 = vmatprep.subr.mxu0 0.0
          %v2429 = vand.u32 %v1299, 4294901760
          %v2430 = vsub.f32 %v1299, %v2429
          %2431 = vmatpush1.msra.mxu0 %v2430
          %2432 = vmatprep.subr.mxu0 0.0
          %2433 = vmatpush1.msra.mxu0 0.0
          %2434 = vmatprep.subr.mxu0 0.0
          %2435 = vmatpush1.msra.mxu0 0.0
          %2436 = vmatprep.subr.mxu0 0.0
          %2437 = vmatpush1.msra.mxu0 0.0
          %2438 = vmatprep.subr.mxu0 0.0
          %2439 = vmatpush1.msra.mxu0 0.0
          %2440 = vmatprep.subr.mxu0 0.0
          %2441 = vmatpush1.msra.mxu0 0.0
          %2442 = vmatprep.subr.mxu0 0.0
          %2443 = vmatpush1.msra.mxu0 0.0
          %2444 = vmatprep.subr.mxu0 0.0
          %2445 = vmatpush1.msra.mxu0 0.0
          %2446 = vmatprep.subr.mxu0 0.0
          %2447 = vmatpush1.msra.mxu0 0.0
          %2448 = vmatprep.subr.mxu0 0.0
          %2449 = vmatpush1.msra.mxu0 0.0
          %2450 = vmatprep.subr.mxu0 0.0
          %2451 = vmatpush1.msra.mxu0 0.0
          %2452 = vmatprep.subr.mxu0 0.0
          %2453 = vmatpush1.msra.mxu0 0.0
          %2454 = vmatprep.subr.mxu0 0.0
          %2455 = vmatpush1.msra.mxu0 0.0
          %2456 = vmatprep.subr.mxu0 0.0
          %2457 = vmatpush1.msra.mxu0 0.0
          %2458 = vmatprep.subr.mxu0 0.0
          %2459 = vmatpush1.msra.mxu0 0.0
          %2460 = vmatprep.subr.mxu0 0.0
          %2461 = vmatpush1.msra.mxu0 0.0
          %2462 = vmatprep.subr.mxu0 0.0
          %2463 = vmatpush1.msra.mxu0 0.0
          %2464 = vmatprep.subr.mxu0 0.0
          %2465 = vmatpush1.msra.mxu0 0.0
          %2466 = vmatprep.subr.mxu0 0.0
          %2467 = vmatpush1.msra.mxu0 0.0
          %2468 = vmatprep.subr.mxu0 0.0
          %2469 = vmatpush1.msra.mxu0 0.0
          %2470 = vmatprep.subr.mxu0 0.0
          %2471 = vmatpush1.msra.mxu0 0.0
          %2472 = vmatprep.subr.mxu0 0.0
          %2473 = vmatpush1.msra.mxu0 0.0
          %2474 = vmatprep.subr.mxu0 0.0
          %2475 = vmatpush1.msra.mxu0 0.0
          %2476 = vmatprep.subr.mxu0 0.0
          %2477 = vmatpush1.msra.mxu0 0.0
          %2478 = vmatprep.subr.mxu0 0.0
          %2479 = vmatpush1.msra.mxu0 0.0
          %2480 = vmatprep.subr.mxu0 0.0
          %2481 = vmatpush1.msra.mxu0 0.0
          %2482 = vmatprep.subr.mxu0 0.0
          %2483 = vmatpush1.msra.mxu0 0.0
          %2484 = vmatprep.subr.mxu0 0.0
          %2485 = vmatpush1.msra.mxu0 0.0
          %2486 = vmatprep.subr.mxu0 0.0
          %2487 = vmatpush1.msra.mxu0 0.0
          %2488 = vmatprep.mubr.f32.mxu0 0.0
          %v2489 = vand.u32 %v2244, 4294901760
          %v2490 = vsub.f32 %v2244, %v2489
          %2491 = vmatmul.mubr.f32.gmra.mrb[0].mxu0 %v2490
          %v2492 = vpop.f32.mrb[0].mxu0
          %v2493 = vadd.f32 %v2413, %v2492
          %v2494 = vpop.f32.mrb[0].mxu0
          %2495 = vdwg.mxu0
          %2496 = vmatprep.subr.mxu0 0.0
          %v2497 = vand.u32 %v1296, 4294901760
          %2498 = vmatpush1.msra.mxu0 %v2497
          %2499 = vmatprep.subr.mxu0 0.0
          %v2500 = vand.u32 %v1297, 4294901760
          %2501 = vmatpush1.msra.mxu0 %v2500
          %2502 = vmatprep.subr.mxu0 0.0
          %v2503 = vand.u32 %v1298, 4294901760
          %2504 = vmatpush1.msra.mxu0 %v2503
          %2505 = vmatprep.subr.mxu0 0.0
          %v2506 = vand.u32 %v1299, 4294901760
          %2507 = vmatpush1.msra.mxu0 %v2506
          %2508 = vmatprep.subr.mxu0 0.0
          %2509 = vmatpush1.msra.mxu0 0.0
          %2510 = vmatprep.subr.mxu0 0.0
          %2511 = vmatpush1.msra.mxu0 0.0
          %2512 = vmatprep.subr.mxu0 0.0
          %2513 = vmatpush1.msra.mxu0 0.0
          %2514 = vmatprep.subr.mxu0 0.0
          %2515 = vmatpush1.msra.mxu0 0.0
          %2516 = vmatprep.subr.mxu0 0.0
          %2517 = vmatpush1.msra.mxu0 0.0
          %2518 = vmatprep.subr.mxu0 0.0
          %2519 = vmatpush1.msra.mxu0 0.0
          %2520 = vmatprep.subr.mxu0 0.0
          %2521 = vmatpush1.msra.mxu0 0.0
          %2522 = vmatprep.subr.mxu0 0.0
          %2523 = vmatpush1.msra.mxu0 0.0
          %2524 = vmatprep.subr.mxu0 0.0
          %2525 = vmatpush1.msra.mxu0 0.0
          %2526 = vmatprep.subr.mxu0 0.0
          %2527 = vmatpush1.msra.mxu0 0.0
          %2528 = vmatprep.subr.mxu0 0.0
          %2529 = vmatpush1.msra.mxu0 0.0
          %2530 = vmatprep.subr.mxu0 0.0
          %2531 = vmatpush1.msra.mxu0 0.0
          %2532 = vmatprep.subr.mxu0 0.0
          %2533 = vmatpush1.msra.mxu0 0.0
          %2534 = vmatprep.subr.mxu0 0.0
          %2535 = vmatpush1.msra.mxu0 0.0
          %2536 = vmatprep.subr.mxu0 0.0
          %2537 = vmatpush1.msra.mxu0 0.0
          %2538 = vmatprep.subr.mxu0 0.0
          %2539 = vmatpush1.msra.mxu0 0.0
          %2540 = vmatprep.subr.mxu0 0.0
          %2541 = vmatpush1.msra.mxu0 0.0
          %2542 = vmatprep.subr.mxu0 0.0
          %2543 = vmatpush1.msra.mxu0 0.0
          %2544 = vmatprep.subr.mxu0 0.0
          %2545 = vmatpush1.msra.mxu0 0.0
          %2546 = vmatprep.subr.mxu0 0.0
          %2547 = vmatpush1.msra.mxu0 0.0
          %2548 = vmatprep.subr.mxu0 0.0
          %2549 = vmatpush1.msra.mxu0 0.0
          %2550 = vmatprep.subr.mxu0 0.0
          %2551 = vmatpush1.msra.mxu0 0.0
          %2552 = vmatprep.subr.mxu0 0.0
          %2553 = vmatpush1.msra.mxu0 0.0
          %2554 = vmatprep.subr.mxu0 0.0
          %2555 = vmatpush1.msra.mxu0 0.0
          %2556 = vmatprep.subr.mxu0 0.0
          %2557 = vmatpush1.msra.mxu0 0.0
          %2558 = vmatprep.subr.mxu0 0.0
          %2559 = vmatpush1.msra.mxu0 0.0
          %2560 = vmatprep.subr.mxu0 0.0
          %2561 = vmatpush1.msra.mxu0 0.0
          %2562 = vmatprep.subr.mxu0 0.0
          %2563 = vmatpush1.msra.mxu0 0.0
          %2564 = vmatprep.mubr.f32.mxu0 0.0
          %v2565 = vand.u32 %v2244, 4294901760
          %v2566 = vsub.f32 %v2244, %v2565
          %v2567 = vand.u32 %v2566, 4294901760
          %2568 = vmatmul.mubr.f32.gmra.mrb[0].mxu0 %v2567
          %v2569 = vpop.f32.mrb[0].mxu0
          %v2570 = vadd.f32 %v2493, %v2569
          %v2571 = vpop.f32.mrb[0].mxu0
          %2572 = vdwg.mxu0
          %2573 = vmatprep.subr.mxu0 0.0
          %v2574 = vand.u32 %v1296, 4294901760
          %v2575 = vsub.f32 %v1296, %v2574
          %v2576 = vand.u32 %v2575, 4294901760
          %2577 = vmatpush1.msra.mxu0 %v2576
          %2578 = vmatprep.subr.mxu0 0.0
          %v2579 = vand.u32 %v1297, 4294901760
          %v2580 = vsub.f32 %v1297, %v2579
          %v2581 = vand.u32 %v2580, 4294901760
          %2582 = vmatpush1.msra.mxu0 %v2581
          %2583 = vmatprep.subr.mxu0 0.0
          %v2584 = vand.u32 %v1298, 4294901760
          %v2585 = vsub.f32 %v1298, %v2584
          %v2586 = vand.u32 %v2585, 4294901760
          %2587 = vmatpush1.msra.mxu0 %v2586
          %2588 = vmatprep.subr.mxu0 0.0
          %v2589 = vand.u32 %v1299, 4294901760
          %v2590 = vsub.f32 %v1299, %v2589
          %v2591 = vand.u32 %v2590, 4294901760
          %2592 = vmatpush1.msra.mxu0 %v2591
          %2593 = vmatprep.subr.mxu0 0.0
          %2594 = vmatpush1.msra.mxu0 0.0
          %2595 = vmatprep.subr.mxu0 0.0
          %2596 = vmatpush1.msra.mxu0 0.0
          %2597 = vmatprep.subr.mxu0 0.0
          %2598 = vmatpush1.msra.mxu0 0.0
          %2599 = vmatprep.subr.mxu0 0.0
          %2600 = vmatpush1.msra.mxu0 0.0
          %2601 = vmatprep.subr.mxu0 0.0
          %2602 = vmatpush1.msra.mxu0 0.0
          %2603 = vmatprep.subr.mxu0 0.0
          %2604 = vmatpush1.msra.mxu0 0.0
          %2605 = vmatprep.subr.mxu0 0.0
          %2606 = vmatpush1.msra.mxu0 0.0
          %2607 = vmatprep.subr.mxu0 0.0
          %2608 = vmatpush1.msra.mxu0 0.0
          %2609 = vmatprep.subr.mxu0 0.0
          %2610 = vmatpush1.msra.mxu0 0.0
          %2611 = vmatprep.subr.mxu0 0.0
          %2612 = vmatpush1.msra.mxu0 0.0
          %2613 = vmatprep.subr.mxu0 0.0
          %2614 = vmatpush1.msra.mxu0 0.0
          %2615 = vmatprep.subr.mxu0 0.0
          %2616 = vmatpush1.msra.mxu0 0.0
          %2617 = vmatprep.subr.mxu0 0.0
          %2618 = vmatpush1.msra.mxu0 0.0
          %2619 = vmatprep.subr.mxu0 0.0
          %2620 = vmatpush1.msra.mxu0 0.0
          %2621 = vmatprep.subr.mxu0 0.0
          %2622 = vmatpush1.msra.mxu0 0.0
          %2623 = vmatprep.subr.mxu0 0.0
          %2624 = vmatpush1.msra.mxu0 0.0
          %2625 = vmatprep.subr.mxu0 0.0
          %2626 = vmatpush1.msra.mxu0 0.0
          %2627 = vmatprep.subr.mxu0 0.0
          %2628 = vmatpush1.msra.mxu0 0.0
          %2629 = vmatprep.subr.mxu0 0.0
          %2630 = vmatpush1.msra.mxu0 0.0
          %2631 = vmatprep.subr.mxu0 0.0
          %2632 = vmatpush1.msra.mxu0 0.0
          %2633 = vmatprep.subr.mxu0 0.0
          %2634 = vmatpush1.msra.mxu0 0.0
          %2635 = vmatprep.subr.mxu0 0.0
          %2636 = vmatpush1.msra.mxu0 0.0
          %2637 = vmatprep.subr.mxu0 0.0
          %2638 = vmatpush1.msra.mxu0 0.0
          %2639 = vmatprep.subr.mxu0 0.0
          %2640 = vmatpush1.msra.mxu0 0.0
          %2641 = vmatprep.subr.mxu0 0.0
          %2642 = vmatpush1.msra.mxu0 0.0
          %2643 = vmatprep.subr.mxu0 0.0
          %2644 = vmatpush1.msra.mxu0 0.0
          %2645 = vmatprep.subr.mxu0 0.0
          %2646 = vmatpush1.msra.mxu0 0.0
          %2647 = vmatprep.subr.mxu0 0.0
          %2648 = vmatpush1.msra.mxu0 0.0
          %2649 = vmatprep.mubr.f32.mxu0 0.0
          %v2650 = vand.u32 %v2244, 4294901760
          %2651 = vmatmul.mubr.f32.gmra.mrb[0].mxu0 %v2650
          %v2652 = vpop.f32.mrb[0].mxu0
          %v2653 = vadd.f32 %v2570, %v2652
          %v2654 = vpop.f32.mrb[0].mxu0
          %2655 = vdwg.mxu0
          %2656 = vmatprep.subr.mxu0 0.0
          %v2657 = vand.u32 %v1296, 4294901760
          %2658 = vmatpush1.msra.mxu0 %v2657
          %2659 = vmatprep.subr.mxu0 0.0
          %v2660 = vand.u32 %v1297, 4294901760
          %2661 = vmatpush1.msra.mxu0 %v2660
          %2662 = vmatprep.subr.mxu0 0.0
          %v2663 = vand.u32 %v1298, 4294901760
          %2664 = vmatpush1.msra.mxu0 %v2663
          %2665 = vmatprep.subr.mxu0 0.0
          %v2666 = vand.u32 %v1299, 4294901760
          %2667 = vmatpush1.msra.mxu0 %v2666
          %2668 = vmatprep.subr.mxu0 0.0
          %2669 = vmatpush1.msra.mxu0 0.0
          %2670 = vmatprep.subr.mxu0 0.0
          %2671 = vmatpush1.msra.mxu0 0.0
          %2672 = vmatprep.subr.mxu0 0.0
          %2673 = vmatpush1.msra.mxu0 0.0
          %2674 = vmatprep.subr.mxu0 0.0
          %2675 = vmatpush1.msra.mxu0 0.0
          %2676 = vmatprep.subr.mxu0 0.0
          %2677 = vmatpush1.msra.mxu0 0.0
          %2678 = vmatprep.subr.mxu0 0.0
          %2679 = vmatpush1.msra.mxu0 0.0
          %2680 = vmatprep.subr.mxu0 0.0
          %2681 = vmatpush1.msra.mxu0 0.0
          %2682 = vmatprep.subr.mxu0 0.0
          %2683 = vmatpush1.msra.mxu0 0.0
          %2684 = vmatprep.subr.mxu0 0.0
          %2685 = vmatpush1.msra.mxu0 0.0
          %2686 = vmatprep.subr.mxu0 0.0
          %2687 = vmatpush1.msra.mxu0 0.0
          %2688 = vmatprep.subr.mxu0 0.0
          %2689 = vmatpush1.msra.mxu0 0.0
          %2690 = vmatprep.subr.mxu0 0.0
          %2691 = vmatpush1.msra.mxu0 0.0
          %2692 = vmatprep.subr.mxu0 0.0
          %2693 = vmatpush1.msra.mxu0 0.0
          %2694 = vmatprep.subr.mxu0 0.0
          %2695 = vmatpush1.msra.mxu0 0.0
          %2696 = vmatprep.subr.mxu0 0.0
          %2697 = vmatpush1.msra.mxu0 0.0
          %2698 = vmatprep.subr.mxu0 0.0
          %2699 = vmatpush1.msra.mxu0 0.0
          %2700 = vmatprep.subr.mxu0 0.0
          %2701 = vmatpush1.msra.mxu0 0.0
          %2702 = vmatprep.subr.mxu0 0.0
          %2703 = vmatpush1.msra.mxu0 0.0
          %2704 = vmatprep.subr.mxu0 0.0
          %2705 = vmatpush1.msra.mxu0 0.0
          %2706 = vmatprep.subr.mxu0 0.0
          %2707 = vmatpush1.msra.mxu0 0.0
          %2708 = vmatprep.subr.mxu0 0.0
          %2709 = vmatpush1.msra.mxu0 0.0
          %2710 = vmatprep.subr.mxu0 0.0
          %2711 = vmatpush1.msra.mxu0 0.0
          %2712 = vmatprep.subr.mxu0 0.0
          %2713 = vmatpush1.msra.mxu0 0.0
          %2714 = vmatprep.subr.mxu0 0.0
          %2715 = vmatpush1.msra.mxu0 0.0
          %2716 = vmatprep.subr.mxu0 0.0
          %2717 = vmatpush1.msra.mxu0 0.0
          %2718 = vmatprep.subr.mxu0 0.0
          %2719 = vmatpush1.msra.mxu0 0.0
          %2720 = vmatprep.subr.mxu0 0.0
          %2721 = vmatpush1.msra.mxu0 0.0
          %2722 = vmatprep.subr.mxu0 0.0
          %2723 = vmatpush1.msra.mxu0 0.0
          %2724 = vmatprep.mubr.f32.mxu0 0.0
          %v2725 = vand.u32 %v2244, 4294901760
          %2726 = vmatmul.mubr.f32.gmra.mrb[0].mxu0 %v2725
          %v2727 = vpop.f32.mrb[0].mxu0
          %v2728 = vadd.f32 %v2653, %v2727
          %v2729 = vpop.f32.mrb[0].mxu0
          %2730 = vdwg.mxu0
          %v2731 = vmax.f32 %v2728, 0.0
          %v2733 = vsel %vm1793, %v2731, 0
          %2735 = vmatprep.subr.mxu0 0.0
          %v2736 = vand.u32 %v1791, 4294901760
          %2737 = vmatpush1.msra.mxu0 %v2736
          %2738 = vmatprep.subr.mxu0 0.0
          %2739 = vmatpush1.msra.mxu0 0.0
          %2740 = vmatprep.subr.mxu0 0.0
          %2741 = vmatpush1.msra.mxu0 0.0
          %2742 = vmatprep.subr.mxu0 0.0
          %2743 = vmatpush1.msra.mxu0 0.0
          %2744 = vmatprep.subr.mxu0 0.0
          %2745 = vmatpush1.msra.mxu0 0.0
          %2746 = vmatprep.subr.mxu0 0.0
          %2747 = vmatpush1.msra.mxu0 0.0
          %2748 = vmatprep.subr.mxu0 0.0
          %2749 = vmatpush1.msra.mxu0 0.0
          %2750 = vmatprep.subr.mxu0 0.0
          %2751 = vmatpush1.msra.mxu0 0.0
          %2752 = vmatprep.subr.mxu0 0.0
          %2753 = vmatpush1.msra.mxu0 0.0
          %2754 = vmatprep.subr.mxu0 0.0
          %2755 = vmatpush1.msra.mxu0 0.0
          %2756 = vmatprep.subr.mxu0 0.0
          %2757 = vmatpush1.msra.mxu0 0.0
          %2758 = vmatprep.subr.mxu0 0.0
          %2759 = vmatpush1.msra.mxu0 0.0
          %2760 = vmatprep.subr.mxu0 0.0
          %2761 = vmatpush1.msra.mxu0 0.0
          %2762 = vmatprep.subr.mxu0 0.0
          %2763 = vmatpush1.msra.mxu0 0.0
          %2764 = vmatprep.subr.mxu0 0.0
          %2765 = vmatpush1.msra.mxu0 0.0
          %2766 = vmatprep.subr.mxu0 0.0
          %2767 = vmatpush1.msra.mxu0 0.0
          %2768 = vmatprep.subr.mxu0 0.0
          %2769 = vmatpush1.msra.mxu0 0.0
          %2770 = vmatprep.subr.mxu0 0.0
          %2771 = vmatpush1.msra.mxu0 0.0
          %2772 = vmatprep.subr.mxu0 0.0
          %2773 = vmatpush1.msra.mxu0 0.0
          %2774 = vmatprep.subr.mxu0 0.0
          %2775 = vmatpush1.msra.mxu0 0.0
          %2776 = vmatprep.subr.mxu0 0.0
          %2777 = vmatpush1.msra.mxu0 0.0
          %2778 = vmatprep.subr.mxu0 0.0
          %2779 = vmatpush1.msra.mxu0 0.0
          %2780 = vmatprep.subr.mxu0 0.0
          %2781 = vmatpush1.msra.mxu0 0.0
          %2782 = vmatprep.subr.mxu0 0.0
          %2783 = vmatpush1.msra.mxu0 0.0
          %2784 = vmatprep.subr.mxu0 0.0
          %2785 = vmatpush1.msra.mxu0 0.0
          %2786 = vmatprep.subr.mxu0 0.0
          %2787 = vmatpush1.msra.mxu0 0.0
          %2788 = vmatprep.subr.mxu0 0.0
          %2789 = vmatpush1.msra.mxu0 0.0
          %2790 = vmatprep.subr.mxu0 0.0
          %2791 = vmatpush1.msra.mxu0 0.0
          %2792 = vmatprep.subr.mxu0 0.0
          %2793 = vmatpush1.msra.mxu0 0.0
          %2794 = vmatprep.subr.mxu0 0.0
          %2795 = vmatpush1.msra.mxu0 0.0
          %2796 = vmatprep.subr.mxu0 0.0
          %2797 = vmatpush1.msra.mxu0 0.0
          %2798 = vmatprep.subr.mxu0 0.0
          %2799 = vmatpush1.msra.mxu0 0.0
          %2800 = vmatprep.mubr.f32.mxu0 0.0
          %v2801 = vand.u32 %v2733, 4294901760
          %v2802 = vsub.f32 %v2733, %v2801
          %v2803 = vand.u32 %v2802, 4294901760
          %v2804 = vsub.f32 %v2802, %v2803
          %v2805 = vand.u32 %v2804, 4294901760
          %2806 = vmatmul.mubr.f32.gmra.mrb[0].mxu0 %v2805
          %v2807 = vpop.f32.mrb[0].mxu0
          %v2808 = vadd.f32 %v1792, %v2807
          %v2809 = vpop.f32.mrb[0].mxu0
          %2810 = vdwg.mxu0
          %2811 = vmatprep.subr.mxu0 0.0
          %v2812 = vand.u32 %v1791, 4294901760
          %v2813 = vsub.f32 %v1791, %v2812
          %v2814 = vand.u32 %v2813, 4294901760
          %v2815 = vsub.f32 %v2813, %v2814
          %v2816 = vand.u32 %v2815, 4294901760
          %2817 = vmatpush1.msra.mxu0 %v2816
          %2818 = vmatprep.subr.mxu0 0.0
          %2819 = vmatpush1.msra.mxu0 0.0
          %2820 = vmatprep.subr.mxu0 0.0
          %2821 = vmatpush1.msra.mxu0 0.0
          %2822 = vmatprep.subr.mxu0 0.0
          %2823 = vmatpush1.msra.mxu0 0.0
          %2824 = vmatprep.subr.mxu0 0.0
          %2825 = vmatpush1.msra.mxu0 0.0
          %2826 = vmatprep.subr.mxu0 0.0
          %2827 = vmatpush1.msra.mxu0 0.0
          %2828 = vmatprep.subr.mxu0 0.0
          %2829 = vmatpush1.msra.mxu0 0.0
          %2830 = vmatprep.subr.mxu0 0.0
          %2831 = vmatpush1.msra.mxu0 0.0
          %2832 = vmatprep.subr.mxu0 0.0
          %2833 = vmatpush1.msra.mxu0 0.0
          %2834 = vmatprep.subr.mxu0 0.0
          %2835 = vmatpush1.msra.mxu0 0.0
          %2836 = vmatprep.subr.mxu0 0.0
          %2837 = vmatpush1.msra.mxu0 0.0
          %2838 = vmatprep.subr.mxu0 0.0
          %2839 = vmatpush1.msra.mxu0 0.0
          %2840 = vmatprep.subr.mxu0 0.0
          %2841 = vmatpush1.msra.mxu0 0.0
          %2842 = vmatprep.subr.mxu0 0.0
          %2843 = vmatpush1.msra.mxu0 0.0
          %2844 = vmatprep.subr.mxu0 0.0
          %2845 = vmatpush1.msra.mxu0 0.0
          %2846 = vmatprep.subr.mxu0 0.0
          %2847 = vmatpush1.msra.mxu0 0.0
          %2848 = vmatprep.subr.mxu0 0.0
          %2849 = vmatpush1.msra.mxu0 0.0
          %2850 = vmatprep.subr.mxu0 0.0
          %2851 = vmatpush1.msra.mxu0 0.0
          %2852 = vmatprep.subr.mxu0 0.0
          %2853 = vmatpush1.msra.mxu0 0.0
          %2854 = vmatprep.subr.mxu0 0.0
          %2855 = vmatpush1.msra.mxu0 0.0
          %2856 = vmatprep.subr.mxu0 0.0
          %2857 = vmatpush1.msra.mxu0 0.0
          %2858 = vmatprep.subr.mxu0 0.0
          %2859 = vmatpush1.msra.mxu0 0.0
          %2860 = vmatprep.subr.mxu0 0.0
          %2861 = vmatpush1.msra.mxu0 0.0
          %2862 = vmatprep.subr.mxu0 0.0
          %2863 = vmatpush1.msra.mxu0 0.0
          %2864 = vmatprep.subr.mxu0 0.0
          %2865 = vmatpush1.msra.mxu0 0.0
          %2866 = vmatprep.subr.mxu0 0.0
          %2867 = vmatpush1.msra.mxu0 0.0
          %2868 = vmatprep.subr.mxu0 0.0
          %2869 = vmatpush1.msra.mxu0 0.0
          %2870 = vmatprep.subr.mxu0 0.0
          %2871 = vmatpush1.msra.mxu0 0.0
          %2872 = vmatprep.subr.mxu0 0.0
          %2873 = vmatpush1.msra.mxu0 0.0
          %2874 = vmatprep.subr.mxu0 0.0
          %2875 = vmatpush1.msra.mxu0 0.0
          %2876 = vmatprep.subr.mxu0 0.0
          %2877 = vmatpush1.msra.mxu0 0.0
          %2878 = vmatprep.subr.mxu0 0.0
          %2879 = vmatpush1.msra.mxu0 0.0
          %2880 = vmatprep.mubr.f32.mxu0 0.0
          %v2881 = vand.u32 %v2733, 4294901760
          %2882 = vmatmul.mubr.f32.gmra.mrb[0].mxu0 %v2881
          %v2883 = vpop.f32.mrb[0].mxu0
          %v2884 = vadd.f32 %v2808, %v2883
          %v2885 = vpop.f32.mrb[0].mxu0
          %2886 = vdwg.mxu0
          %2887 = vmatprep.subr.mxu0 0.0
          %v2888 = vand.u32 %v1791, 4294901760
          %v2889 = vsub.f32 %v1791, %v2888
          %2890 = vmatpush1.msra.mxu0 %v2889
          %2891 = vmatprep.subr.mxu0 0.0
          %2892 = vmatpush1.msra.mxu0 0.0
          %2893 = vmatprep.subr.mxu0 0.0
          %2894 = vmatpush1.msra.mxu0 0.0
          %2895 = vmatprep.subr.mxu0 0.0
          %2896 = vmatpush1.msra.mxu0 0.0
          %2897 = vmatprep.subr.mxu0 0.0
          %2898 = vmatpush1.msra.mxu0 0.0
          %2899 = vmatprep.subr.mxu0 0.0
          %2900 = vmatpush1.msra.mxu0 0.0
          %2901 = vmatprep.subr.mxu0 0.0
          %2902 = vmatpush1.msra.mxu0 0.0
          %2903 = vmatprep.subr.mxu0 0.0
          %2904 = vmatpush1.msra.mxu0 0.0
          %2905 = vmatprep.subr.mxu0 0.0
          %2906 = vmatpush1.msra.mxu0 0.0
          %2907 = vmatprep.subr.mxu0 0.0
          %2908 = vmatpush1.msra.mxu0 0.0
          %2909 = vmatprep.subr.mxu0 0.0
          %2910 = vmatpush1.msra.mxu0 0.0
          %2911 = vmatprep.subr.mxu0 0.0
          %2912 = vmatpush1.msra.mxu0 0.0
          %2913 = vmatprep.subr.mxu0 0.0
          %2914 = vmatpush1.msra.mxu0 0.0
          %2915 = vmatprep.subr.mxu0 0.0
          %2916 = vmatpush1.msra.mxu0 0.0
          %2917 = vmatprep.subr.mxu0 0.0
          %2918 = vmatpush1.msra.mxu0 0.0
          %2919 = vmatprep.subr.mxu0 0.0
          %2920 = vmatpush1.msra.mxu0 0.0
          %2921 = vmatprep.subr.mxu0 0.0
          %2922 = vmatpush1.msra.mxu0 0.0
          %2923 = vmatprep.subr.mxu0 0.0
          %2924 = vmatpush1.msra.mxu0 0.0
          %2925 = vmatprep.subr.mxu0 0.0
          %2926 = vmatpush1.msra.mxu0 0.0
          %2927 = vmatprep.subr.mxu0 0.0
          %2928 = vmatpush1.msra.mxu0 0.0
          %2929 = vmatprep.subr.mxu0 0.0
          %2930 = vmatpush1.msra.mxu0 0.0
          %2931 = vmatprep.subr.mxu0 0.0
          %2932 = vmatpush1.msra.mxu0 0.0
          %2933 = vmatprep.subr.mxu0 0.0
          %2934 = vmatpush1.msra.mxu0 0.0
          %2935 = vmatprep.subr.mxu0 0.0
          %2936 = vmatpush1.msra.mxu0 0.0
          %2937 = vmatprep.subr.mxu0 0.0
          %2938 = vmatpush1.msra.mxu0 0.0
          %2939 = vmatprep.subr.mxu0 0.0
          %2940 = vmatpush1.msra.mxu0 0.0
          %2941 = vmatprep.subr.mxu0 0.0
          %2942 = vmatpush1.msra.mxu0 0.0
          %2943 = vmatprep.subr.mxu0 0.0
          %2944 = vmatpush1.msra.mxu0 0.0
          %2945 = vmatprep.subr.mxu0 0.0
          %2946 = vmatpush1.msra.mxu0 0.0
          %2947 = vmatprep.subr.mxu0 0.0
          %2948 = vmatpush1.msra.mxu0 0.0
          %2949 = vmatprep.subr.mxu0 0.0
          %2950 = vmatpush1.msra.mxu0 0.0
          %2951 = vmatprep.subr.mxu0 0.0
          %2952 = vmatpush1.msra.mxu0 0.0
          %2953 = vmatprep.mubr.f32.mxu0 0.0
          %v2954 = vand.u32 %v2733, 4294901760
          %v2955 = vsub.f32 %v2733, %v2954
          %2956 = vmatmul.mubr.f32.gmra.mrb[0].mxu0 %v2955
          %v2957 = vpop.f32.mrb[0].mxu0
          %v2958 = vadd.f32 %v2884, %v2957
          %v2959 = vpop.f32.mrb[0].mxu0
          %2960 = vdwg.mxu0
          %2961 = vmatprep.subr.mxu0 0.0
          %v2962 = vand.u32 %v1791, 4294901760
          %2963 = vmatpush1.msra.mxu0 %v2962
          %2964 = vmatprep.subr.mxu0 0.0
          %2965 = vmatpush1.msra.mxu0 0.0
          %2966 = vmatprep.subr.mxu0 0.0
          %2967 = vmatpush1.msra.mxu0 0.0
          %2968 = vmatprep.subr.mxu0 0.0
          %2969 = vmatpush1.msra.mxu0 0.0
          %2970 = vmatprep.subr.mxu0 0.0
          %2971 = vmatpush1.msra.mxu0 0.0
          %2972 = vmatprep.subr.mxu0 0.0
          %2973 = vmatpush1.msra.mxu0 0.0
          %2974 = vmatprep.subr.mxu0 0.0
          %2975 = vmatpush1.msra.mxu0 0.0
          %2976 = vmatprep.subr.mxu0 0.0
          %2977 = vmatpush1.msra.mxu0 0.0
          %2978 = vmatprep.subr.mxu0 0.0
          %2979 = vmatpush1.msra.mxu0 0.0
          %2980 = vmatprep.subr.mxu0 0.0
          %2981 = vmatpush1.msra.mxu0 0.0
          %2982 = vmatprep.subr.mxu0 0.0
          %2983 = vmatpush1.msra.mxu0 0.0
          %2984 = vmatprep.subr.mxu0 0.0
          %2985 = vmatpush1.msra.mxu0 0.0
          %2986 = vmatprep.subr.mxu0 0.0
          %2987 = vmatpush1.msra.mxu0 0.0
          %2988 = vmatprep.subr.mxu0 0.0
          %2989 = vmatpush1.msra.mxu0 0.0
          %2990 = vmatprep.subr.mxu0 0.0
          %2991 = vmatpush1.msra.mxu0 0.0
          %2992 = vmatprep.subr.mxu0 0.0
          %2993 = vmatpush1.msra.mxu0 0.0
          %2994 = vmatprep.subr.mxu0 0.0
          %2995 = vmatpush1.msra.mxu0 0.0
          %2996 = vmatprep.subr.mxu0 0.0
          %2997 = vmatpush1.msra.mxu0 0.0
          %2998 = vmatprep.subr.mxu0 0.0
          %2999 = vmatpush1.msra.mxu0 0.0
          %3000 = vmatprep.subr.mxu0 0.0
          %3001 = vmatpush1.msra.mxu0 0.0
          %3002 = vmatprep.subr.mxu0 0.0
          %3003 = vmatpush1.msra.mxu0 0.0
          %3004 = vmatprep.subr.mxu0 0.0
          %3005 = vmatpush1.msra.mxu0 0.0
          %3006 = vmatprep.subr.mxu0 0.0
          %3007 = vmatpush1.msra.mxu0 0.0
          %3008 = vmatprep.subr.mxu0 0.0
          %3009 = vmatpush1.msra.mxu0 0.0
          %3010 = vmatprep.subr.mxu0 0.0
          %3011 = vmatpush1.msra.mxu0 0.0
          %3012 = vmatprep.subr.mxu0 0.0
          %3013 = vmatpush1.msra.mxu0 0.0
          %3014 = vmatprep.subr.mxu0 0.0
          %3015 = vmatpush1.msra.mxu0 0.0
          %3016 = vmatprep.subr.mxu0 0.0
          %3017 = vmatpush1.msra.mxu0 0.0
          %3018 = vmatprep.subr.mxu0 0.0
          %3019 = vmatpush1.msra.mxu0 0.0
          %3020 = vmatprep.subr.mxu0 0.0
          %3021 = vmatpush1.msra.mxu0 0.0
          %3022 = vmatprep.subr.mxu0 0.0
          %3023 = vmatpush1.msra.mxu0 0.0
          %3024 = vmatprep.subr.mxu0 0.0
          %3025 = vmatpush1.msra.mxu0 0.0
          %3026 = vmatprep.mubr.f32.mxu0 0.0
          %v3027 = vand.u32 %v2733, 4294901760
          %v3028 = vsub.f32 %v2733, %v3027
          %v3029 = vand.u32 %v3028, 4294901760
          %3030 = vmatmul.mubr.f32.gmra.mrb[0].mxu0 %v3029
          %v3031 = vpop.f32.mrb[0].mxu0
          %v3032 = vadd.f32 %v2958, %v3031
          %v3033 = vpop.f32.mrb[0].mxu0
          %3034 = vdwg.mxu0
          %3035 = vmatprep.subr.mxu0 0.0
          %v3036 = vand.u32 %v1791, 4294901760
          %v3037 = vsub.f32 %v1791, %v3036
          %v3038 = vand.u32 %v3037, 4294901760
          %3039 = vmatpush1.msra.mxu0 %v3038
          %3040 = vmatprep.subr.mxu0 0.0
          %3041 = vmatpush1.msra.mxu0 0.0
          %3042 = vmatprep.subr.mxu0 0.0
          %3043 = vmatpush1.msra.mxu0 0.0
          %3044 = vmatprep.subr.mxu0 0.0
          %3045 = vmatpush1.msra.mxu0 0.0
          %3046 = vmatprep.subr.mxu0 0.0
          %3047 = vmatpush1.msra.mxu0 0.0
          %3048 = vmatprep.subr.mxu0 0.0
          %3049 = vmatpush1.msra.mxu0 0.0
          %3050 = vmatprep.subr.mxu0 0.0
          %3051 = vmatpush1.msra.mxu0 0.0
          %3052 = vmatprep.subr.mxu0 0.0
          %3053 = vmatpush1.msra.mxu0 0.0
          %3054 = vmatprep.subr.mxu0 0.0
          %3055 = vmatpush1.msra.mxu0 0.0
          %3056 = vmatprep.subr.mxu0 0.0
          %3057 = vmatpush1.msra.mxu0 0.0
          %3058 = vmatprep.subr.mxu0 0.0
          %3059 = vmatpush1.msra.mxu0 0.0
          %3060 = vmatprep.subr.mxu0 0.0
          %3061 = vmatpush1.msra.mxu0 0.0
          %3062 = vmatprep.subr.mxu0 0.0
          %3063 = vmatpush1.msra.mxu0 0.0
          %3064 = vmatprep.subr.mxu0 0.0
          %3065 = vmatpush1.msra.mxu0 0.0
          %3066 = vmatprep.subr.mxu0 0.0
          %3067 = vmatpush1.msra.mxu0 0.0
          %3068 = vmatprep.subr.mxu0 0.0
          %3069 = vmatpush1.msra.mxu0 0.0
          %3070 = vmatprep.subr.mxu0 0.0
          %3071 = vmatpush1.msra.mxu0 0.0
          %3072 = vmatprep.subr.mxu0 0.0
          %3073 = vmatpush1.msra.mxu0 0.0
          %3074 = vmatprep.subr.mxu0 0.0
          %3075 = vmatpush1.msra.mxu0 0.0
          %3076 = vmatprep.subr.mxu0 0.0
          %3077 = vmatpush1.msra.mxu0 0.0
          %3078 = vmatprep.subr.mxu0 0.0
          %3079 = vmatpush1.msra.mxu0 0.0
          %3080 = vmatprep.subr.mxu0 0.0
          %3081 = vmatpush1.msra.mxu0 0.0
          %3082 = vmatprep.subr.mxu0 0.0
          %3083 = vmatpush1.msra.mxu0 0.0
          %3084 = vmatprep.subr.mxu0 0.0
          %3085 = vmatpush1.msra.mxu0 0.0
          %3086 = vmatprep.subr.mxu0 0.0
          %3087 = vmatpush1.msra.mxu0 0.0
          %3088 = vmatprep.subr.mxu0 0.0
          %3089 = vmatpush1.msra.mxu0 0.0
          %3090 = vmatprep.subr.mxu0 0.0
          %3091 = vmatpush1.msra.mxu0 0.0
          %3092 = vmatprep.subr.mxu0 0.0
          %3093 = vmatpush1.msra.mxu0 0.0
          %3094 = vmatprep.subr.mxu0 0.0
          %3095 = vmatpush1.msra.mxu0 0.0
          %3096 = vmatprep.subr.mxu0 0.0
          %3097 = vmatpush1.msra.mxu0 0.0
          %3098 = vmatprep.subr.mxu0 0.0
          %3099 = vmatpush1.msra.mxu0 0.0
          %3100 = vmatprep.subr.mxu0 0.0
          %3101 = vmatpush1.msra.mxu0 0.0
          %3102 = vmatprep.mubr.f32.mxu0 0.0
          %v3103 = vand.u32 %v2733, 4294901760
          %3104 = vmatmul.mubr.f32.gmra.mrb[0].mxu0 %v3103
          %v3105 = vpop.f32.mrb[0].mxu0
          %v3106 = vadd.f32 %v3032, %v3105
          %v3107 = vpop.f32.mrb[0].mxu0
          %3108 = vdwg.mxu0
          %3109 = vmatprep.subr.mxu0 0.0
          %v3110 = vand.u32 %v1791, 4294901760
          %3111 = vmatpush1.msra.mxu0 %v3110
          %3112 = vmatprep.subr.mxu0 0.0
          %3113 = vmatpush1.msra.mxu0 0.0
          %3114 = vmatprep.subr.mxu0 0.0
          %3115 = vmatpush1.msra.mxu0 0.0
          %3116 = vmatprep.subr.mxu0 0.0
          %3117 = vmatpush1.msra.mxu0 0.0
          %3118 = vmatprep.subr.mxu0 0.0
          %3119 = vmatpush1.msra.mxu0 0.0
          %3120 = vmatprep.subr.mxu0 0.0
          %3121 = vmatpush1.msra.mxu0 0.0
          %3122 = vmatprep.subr.mxu0 0.0
          %3123 = vmatpush1.msra.mxu0 0.0
          %3124 = vmatprep.subr.mxu0 0.0
          %3125 = vmatpush1.msra.mxu0 0.0
          %3126 = vmatprep.subr.mxu0 0.0
          %3127 = vmatpush1.msra.mxu0 0.0
          %3128 = vmatprep.subr.mxu0 0.0
          %3129 = vmatpush1.msra.mxu0 0.0
          %3130 = vmatprep.subr.mxu0 0.0
          %3131 = vmatpush1.msra.mxu0 0.0
          %3132 = vmatprep.subr.mxu0 0.0
          %3133 = vmatpush1.msra.mxu0 0.0
          %3134 = vmatprep.subr.mxu0 0.0
          %3135 = vmatpush1.msra.mxu0 0.0
          %3136 = vmatprep.subr.mxu0 0.0
          %3137 = vmatpush1.msra.mxu0 0.0
          %3138 = vmatprep.subr.mxu0 0.0
          %3139 = vmatpush1.msra.mxu0 0.0
          %3140 = vmatprep.subr.mxu0 0.0
          %3141 = vmatpush1.msra.mxu0 0.0
          %3142 = vmatprep.subr.mxu0 0.0
          %3143 = vmatpush1.msra.mxu0 0.0
          %3144 = vmatprep.subr.mxu0 0.0
          %3145 = vmatpush1.msra.mxu0 0.0
          %3146 = vmatprep.subr.mxu0 0.0
          %3147 = vmatpush1.msra.mxu0 0.0
          %3148 = vmatprep.subr.mxu0 0.0
          %3149 = vmatpush1.msra.mxu0 0.0
          %3150 = vmatprep.subr.mxu0 0.0
          %3151 = vmatpush1.msra.mxu0 0.0
          %3152 = vmatprep.subr.mxu0 0.0
          %3153 = vmatpush1.msra.mxu0 0.0
          %3154 = vmatprep.subr.mxu0 0.0
          %3155 = vmatpush1.msra.mxu0 0.0
          %3156 = vmatprep.subr.mxu0 0.0
          %3157 = vmatpush1.msra.mxu0 0.0
          %3158 = vmatprep.subr.mxu0 0.0
          %3159 = vmatpush1.msra.mxu0 0.0
          %3160 = vmatprep.subr.mxu0 0.0
          %3161 = vmatpush1.msra.mxu0 0.0
          %3162 = vmatprep.subr.mxu0 0.0
          %3163 = vmatpush1.msra.mxu0 0.0
          %3164 = vmatprep.subr.mxu0 0.0
          %3165 = vmatpush1.msra.mxu0 0.0
          %3166 = vmatprep.subr.mxu0 0.0
          %3167 = vmatpush1.msra.mxu0 0.0
          %3168 = vmatprep.subr.mxu0 0.0
          %3169 = vmatpush1.msra.mxu0 0.0
          %3170 = vmatprep.subr.mxu0 0.0
          %3171 = vmatpush1.msra.mxu0 0.0
          %3172 = vmatprep.subr.mxu0 0.0
          %3173 = vmatpush1.msra.mxu0 0.0
          %3174 = vmatprep.mubr.f32.mxu0 0.0
          %v3175 = vand.u32 %v2733, 4294901760
          %3176 = vmatmul.mubr.f32.gmra.mrb[0].mxu0 %v3175
          %v3177 = vpop.f32.mrb[0].mxu0
          %v3178 = vadd.f32 %v3106, %v3177
          %v3179 = vpop.f32.mrb[0].mxu0
          %3180 = vdwg.mxu0
          %v3181 = vadd.f32 %v2240, %v3178
          %v3182 = vxor.u32 %v3181, 2147483648
          %v3183 = vmul.f32 %v3182, 1.442695
          %v3184 = vpow.pop %v3183
          %v3185 = vadd.f32 %v3184, 1.0
          %v3186 = vrcp.pop %v3185
          %v3187 = vmul.f32 1.0, %v3186
          %vm3188 = vcmask 253952
          %3189 = vst.msk [vmem:[%s257] sm:$0x1] %vm3188, %v3187
        $region56: #{tpu_custom_call.1} parent=39 // pred_fallthru
          _
        %s3190 = sand.u32 %s154, 1
        %s3191 = scalar_lea.sflag [#allocation6], %s3190
        %s3192 = sand.u32 %s154, 1
        %s3193 = scalar_lea.vmem [#allocation7], %s3192
        // Predicated region
        $region57: #{tpu_custom_call.1} parent=39 // pred_check
          %p3194 = pneg %p164
        $region58: #{tpu_custom_call.1} parent=39 // pred_check_branch
          %3196 = sbr.rel (%p3194) target = $region60
        $region59: #{tpu_custom_call.1} parent=39 // pred_region
          %s3198 = ssub.s32 16, 16
          %3199 = vsyncadd %s3191, %s3198
          %s3200 = smul.addr %s26, 16
          %s3201 = scalar_lea.hbm %s5, %s3200
          %s3203 = sshll.u32 %s3193, 4
          %s3204 = int_to_ptr.vmem [resolvable:$true] %s3203
          %3206 = dma.vmem_to_hbm [thread:$0]  %s3204, 16, %s3201, %s3191
        $region60: #{tpu_custom_call.1} parent=39 // pred_fallthru
          _
      $region40: #{tpu_custom_call.1} parent=5 // pred_fallthru
        _
      %p3207 = scmp.le.s32.totalorder 2, %s17
      // Predicated region
      $region61: #{tpu_custom_call.1} parent=5 // pred_check
        %p3208 = pneg %p3207
      $region62: #{tpu_custom_call.1} parent=5 // pred_check_branch
        %3210 = sbr.rel (%p3208) target = $region64
      $region63: #{tpu_custom_call.1} parent=5 // pred_region
        %s3211 = ssub.s32 %s17, 2
        // Predicated region
        $region65: #{tpu_custom_call.1} parent=63 // pred_check
          %p3212 = pneg %p170
        $region66: #{tpu_custom_call.1} parent=63 // pred_check_branch
          %3214 = sbr.rel (%p3212) target = $region68
        $region67: #{tpu_custom_call.1} parent=63 // pred_region
          %s3215 = sand.u32 %s155, 1
          %s3216 = scalar_lea.sflag [#allocation6], %s3215
          %s3217 = sand.u32 %s155, 1
          %s3218 = scalar_lea.vmem [#allocation7], %s3217
          %3219 = dma.done %s3216, 16
        $region68: #{tpu_custom_call.1} parent=63 // pred_fallthru
          _
      $region64: #{tpu_custom_call.1} parent=5 // pred_fallthru
        _
    $region6: #{tpu_custom_call.1} parent=1 // loop_footer
      %s21 = sadd.s32 1, %s17
    $region7: #{tpu_custom_call.1} parent=1 // loop_footer_branch
      %16 = sbr.rel target = $region3
    $region8: #{tpu_custom_call.1} parent=1 // loop_exit
      _
    %3220 = vsyncpa [#allocation5], 1
    %s3221 = scalar_lea.sflag [#allocation5], 1
    %3222 = vsyncpa %s3221, 1
    %3223 = vsyncpa [#allocation6], 1
    %s3224 = scalar_lea.sflag [#allocation6], 1
    %3225 = vsyncpa %s3224, 1

</llo_original>
